<compile_context>
chip_gen: v6e
topology: v6e:2x2x1
jax: 0.10.0
libtpu: 0.0.40
codegen_flags: <defaults>
</compile_context>

<pallas_src>
import functools
import math

import jax
import jax.numpy as jnp
from jax import lax
from jax.experimental import pallas as pl
from jax.experimental.pallas import tpu as pltpu

# Module hyper-parameters (d_model is forced to 1000 by the module's own
# AdaptiveAvgPool2d((1, 1000)) and Linear(1000, ...) layers).
D_MODEL = 1000
D_PAD = 1024                 # zero-padded contraction width (exact, lane-dense)
D_K = 64
D_V = 64
H = 4
D_OUT = 128
HDK = H * D_K                # 256
HDV = H * D_V                # 256
QKV_W = 2 * HDK + HDV        # 768


def _fusion_kernel(x_ref, wqkv_ref, bqkv_ref, woc_ref, boc_ref, out_ref, qkv_acc,
                   *, b_s, n):
    k_idx = pl.program_id(0)

    @pl.when(k_idx == 0)
    def _():
        qkv_acc[...] = jnp.zeros_like(qkv_acc)

    # K-chunked fused QKV projection, accumulated in a f32 VMEM scratch:
    # (b_s*n, TK)bf16 @ (TK, 768)bf16 -> f32.  1/sqrt(d_k) already in wq/bq.
    qkv_acc[...] += jnp.dot(x_ref[...], wqkv_ref[...],
                            preferred_element_type=jnp.float32)

    @pl.when(k_idx == pl.num_programs(0) - 1)
    def _():
        qkv = qkv_acc[...] + bqkv_ref[...]     # bias added once, after accumulation
        q = qkv[:, 0:HDK]                      # 256-aligned lane slices
        k = qkv[:, HDK:2 * HDK]
        v = qkv[:, 2 * HDK:2 * HDK + HDV]

        # All (batch, head) score tiles stacked along sublanes -> ONE softmax.
        # dot_general contracts dim 1 of both operands -> no explicit k.T (no XLU).
        tiles = []
        for b in range(b_s):                   # b_s, H tiny & static -> unrolled
            q_b = q[b * n:(b + 1) * n, :]
            k_b = k[b * n:(b + 1) * n, :]
            for h in range(H):
                tiles.append(lax.dot_general(
                    q_b[:, h * D_K:(h + 1) * D_K],
                    k_b[:, h * D_K:(h + 1) * D_K],
                    (((1,), (1,)), ((), ())),
                    preferred_element_type=jnp.float32))
        s_all = jnp.concatenate(tiles, axis=0)                       # (b_s*H*n, n)
        s_all = s_all - jnp.max(s_all, axis=-1, keepdims=True)
        p_all = jnp.exp(s_all)
        p_all = p_all * pl.reciprocal(
            jnp.sum(p_all, axis=-1, keepdims=True), approx=False)
        # dropout(att) is identity in eval/inference mode.

        # AdaptiveAvgPool2d((1,1000)) == mean over n.  Commute the mean with the
        # P@V matmul:  mean_q(P @ V) == (mean over query rows of P) @ V.
        inv_n = 1.0 / n
        pooled_rows = []
        for b in range(b_s):
            v_b = v[b * n:(b + 1) * n, :]
            heads = []
            for h in range(H):
                p_bh = p_all[(b * H + h) * n:(b * H + h + 1) * n, :]     # (n, n)
                p_mean = jnp.sum(p_bh, axis=0, keepdims=True) * inv_n    # (1, n)
                heads.append(jnp.dot(p_mean, v_b[:, h * D_V:(h + 1) * D_V],
                                     preferred_element_type=jnp.float32))
            pooled_rows.append(jnp.concatenate(heads, axis=1))           # (1, 256)
        pooled = jnp.concatenate(pooled_rows, axis=0)                    # (b_s, 256)

        # Folded output projection + final linear (f32 throughout):
        # tanh(pooled @ (wo@w1) + (bo@w1 + b1)).
        fused = jnp.dot(pooled, woc_ref[...],
                        preferred_element_type=jnp.float32) + boc_ref[...]
        out_ref[...] = jnp.tanh(fused)         # single lane-dense (b_s, 128) store


def fold_params(p):
    """One-time host-side algebraic folding / packing of the module weights."""
    s = 1.0 / math.sqrt(D_K)
    wqkv = jnp.concatenate([p["wq"] * s, p["wk"], p["wv"]], axis=1)     # (1000, 768)
    wqkv = jnp.pad(wqkv, ((0, D_PAD - D_MODEL), (0, 0)))                # zero rows -> exact
    bqkv = jnp.concatenate([p["bq"] * s, p["bk"], p["bv"]], axis=1)     # (1, 768)
    w_oc = p["wo"] @ p["w1"]                                            # (256, 128)
    b_oc = p["bo"] @ p["w1"] + p["b1"]                                  # (1, 128)
    return {
        "wqkv": wqkv.astype(jnp.bfloat16),
        "bqkv": bqkv.astype(jnp.float32),
        "w_oc": w_oc.astype(jnp.float32),      # kept f32: removes stacked roundings
        "b_oc": b_oc.astype(jnp.float32),
    }


def _default_k_steps():
    """2 K-chunks (overlap wqkv DMA with MXU) on v5e/v6e; 1 on v7x (fast HBM)."""
    try:
        kind = jax.devices()[0].device_kind.lower()
        if "v7" in kind or "7x" in kind:
            return 1
    except Exception:
        pass
    return 2


def image_fusion_forward(image, folded, k_steps=None):
    """image: (b_s, n, 1000) float32 -> (b_s, 128) float32."""
    b_s, n, d = image.shape
    assert d == D_MODEL
    if k_steps is None:
        k_steps = _default_k_steps()
    assert D_PAD % k_steps == 0
    tk = D_PAD // k_steps
    assert tk % 128 == 0

    m = b_s * n
    # Host-side zero-pad 1000 -> 1024 (matches the zero rows padded into wqkv),
    # flatten the batch, cast activations to bf16.
    x = jnp.pad(image, ((0, 0), (0, 0), (0, D_PAD - D_MODEL)))
    x = x.reshape(m, D_PAD).astype(jnp.bfloat16)

    wqkv = folded["wqkv"]
    bqkv = folded["bqkv"]
    w_oc = folded["w_oc"]
    b_oc = folded["b_oc"]

    flops = (2 * m * D_PAD * QKV_W
             + b_s * H * (2 * n * n * D_K + 2 * n * D_V)
             + 2 * b_s * HDV * D_OUT)
    transcendentals = b_s * H * n * n + b_s * D_OUT
    bytes_accessed = (x.size * x.dtype.itemsize
                      + wqkv.size * wqkv.dtype.itemsize
                      + bqkv.size * bqkv.dtype.itemsize
                      + w_oc.size * w_oc.dtype.itemsize
                      + b_oc.size * b_oc.dtype.itemsize
                      + b_s * D_OUT * 4)

    kernel = functools.partial(_fusion_kernel, b_s=b_s, n=n)
    return pl.pallas_call(
        kernel,
        out_shape=jax.ShapeDtypeStruct((b_s, D_OUT), jnp.float32),
        grid_spec=pltpu.PrefetchScalarGridSpec(
            num_scalar_prefetch=0,
            grid=(k_steps,),
            in_specs=[
                pl.BlockSpec((m, tk), lambda kk: (0, kk)),        # x K-chunk
                pl.BlockSpec((tk, QKV_W), lambda kk: (kk, 0)),    # wqkv K-chunk (pipelined DMA)
                pl.BlockSpec((1, QKV_W), lambda kk: (0, 0)),      # bqkv (resident)
                pl.BlockSpec((HDV, D_OUT), lambda kk: (0, 0)),    # folded wo@w1 (resident)
                pl.BlockSpec((1, D_OUT), lambda kk: (0, 0)),      # folded bias   (resident)
            ],
            out_specs=pl.BlockSpec((b_s, D_OUT), lambda kk: (0, 0)),
            scratch_shapes=[pltpu.VMEM((m, QKV_W), jnp.float32)],  # qkv accumulator
        ),
        compiler_params=pltpu.CompilerParams(
            dimension_semantics=("arbitrary",)),
        cost_estimate=pl.CostEstimate(
            flops=int(flops),
            transcendentals=int(transcendentals),
            bytes_accessed=int(bytes_accessed)),
    )(x, wqkv, bqkv, w_oc, b_oc)


def _init_params(key):
    ks = jax.random.split(key, 10)

    def lin(kw, fan_in, fan_out):
        s = 1.0 / math.sqrt(fan_in)
        return jax.random.uniform(kw, (fan_in, fan_out), jnp.float32, -s, s)

    return {
        "wq": lin(ks[0], D_MODEL, H * D_K), "bq": jnp.zeros((1, H * D_K), jnp.float32),
        "wk": lin(ks[1], D_MODEL, H * D_K), "bk": jnp.zeros((1, H * D_K), jnp.float32),
        "wv": lin(ks[2], D_MODEL, H * D_V), "bv": jnp.zeros((1, H * D_V), jnp.float32),
        "wo": lin(ks[3], H * D_V, D_MODEL), "bo": jnp.zeros((1, D_MODEL), jnp.float32),
        "w1": lin(ks[4], D_MODEL, D_OUT),   "b1": jnp.zeros((1, D_OUT), jnp.float32),
        # TODO(synk): self.image_linear (Linear(1000,1000)) is unused in forward -> omitted.
    }


def _reference(image, p):
    """Pure-JAX f32 reference mirroring the PyTorch forward (eval mode)."""
    q = image @ p["wq"] + p["bq"]
    k = image @ p["wk"] + p["bk"]
    v = image @ p["wv"] + p["bv"]
    b_s, n, _ = image.shape
    qh = q.reshape(b_s, n, H, D_K).transpose(0, 2, 1, 3)
    kh = k.reshape(b_s, n, H, D_K).transpose(0, 2, 1, 3)
    vh = v.reshape(b_s, n, H, D_V).transpose(0, 2, 1, 3)
    att = jnp.einsum("bhqd,bhkd->bhqk", qh, kh) / math.sqrt(D_K)
    att = jax.nn.softmax(att, axis=-1)
    o = jnp.einsum("bhqk,bhkd->bhqd", att, vh).transpose(0, 2, 1, 3).reshape(b_s, n, H * D_V)
    attn_out = o @ p["wo"] + p["bo"]
    pooled = jnp.mean(attn_out, axis=1)            # AdaptiveAvgPool2d((1,1000)) + squeeze
    return jnp.tanh(pooled @ p["w1"] + p["b1"])


if __name__ == "__main__":
    key = jax.random.PRNGKey(0)
    k_param, k_x = jax.random.split(key)
    params = _init_params(k_param)
    folded = fold_params(params)                   # one-time host-side fold

    b_s, n = 2, 8
    image = jax.random.normal(k_x, (b_s, n, D_MODEL), jnp.float32)

    out = jax.block_until_ready(image_fusion_forward(image, folded))

    ref = _reference(image, params)
    assert out.shape == (b_s, D_OUT)
    assert jnp.allclose(out, ref, rtol=1e-2, atol=1e-2), "mismatch vs reference"

    print("KERNEL_OK")
</pallas_src>

<mosaic_0001>
module attributes {stable_mosaic.version = 11 : i64} {
  func.func @_fusion_kernel(%arg0: i32, %arg1: memref<16x512xbf16, #tpu.memory_space<vmem>>, %arg2: memref<512x768xbf16, #tpu.memory_space<vmem>>, %arg3: memref<1x768xf32, #tpu.memory_space<vmem>>, %arg4: memref<256x128xf32, #tpu.memory_space<vmem>>, %arg5: memref<1x128xf32, #tpu.memory_space<vmem>>, %arg6: memref<2x128xf32, #tpu.memory_space<vmem>>, %arg7: memref<16x768xf32, #tpu.memory_space<vmem>>) attributes {dimension_semantics = [#tpu.dimension_semantics<arbitrary>], iteration_bounds = array<i64: 2>, scalar_prefetch = 0 : i64, scratch_operands = 1 : i64, tpu.core_type = #tpu.core_type<tc>, window_params = [{transform_indices = @transform_0, window_bounds = array<i64: 16, 512>}, {transform_indices = @transform_1, window_bounds = array<i64: 512, 768>}, {pipeline_mode = #tpu.pipeline_mode<synchronous>, transform_indices = @transform_2, window_bounds = array<i64: 1, 768>}, {pipeline_mode = #tpu.pipeline_mode<synchronous>, transform_indices = @transform_3, window_bounds = array<i64: 256, 128>}, {pipeline_mode = #tpu.pipeline_mode<synchronous>, transform_indices = @transform_4, window_bounds = array<i64: 1, 128>}, {pipeline_mode = #tpu.pipeline_mode<synchronous>, transform_indices = @transform_5, window_bounds = array<i64: 2, 128>}]} {
    %c0_i32 = arith.constant 0 : i32
    %0 = arith.cmpi eq, %arg0, %c0_i32 : i32
    %1 = arith.extui %0 : i1 to i32
    %c0_i32_0 = arith.constant 0 : i32
    %2 = arith.cmpi ne, %1, %c0_i32_0 : i32
    scf.if %2 {
      %cst_9 = arith.constant 0.000000e+00 : f32
      %12 = vector.broadcast %cst_9 : f32 to vector<16x768xf32>
      %c0_10 = arith.constant 0 : index
      %c0_11 = arith.constant 0 : index
      %13 = vector.load %arg7[%c0_10, %c0_11] : memref<16x768xf32, #tpu.memory_space<vmem>>, vector<16x768xf32>
      tpu.vector_store %arg7[%c0_10, %c0_11], %12 {strides = array<i32>} : memref<16x768xf32, #tpu.memory_space<vmem>>, vector<16x768xf32>,
    } else {
    }
    %c0 = arith.constant 0 : index
    %c0_1 = arith.constant 0 : index
    %3 = vector.load %arg7[%c0, %c0_1] : memref<16x768xf32, #tpu.memory_space<vmem>>, vector<16x768xf32>
    %c0_2 = arith.constant 0 : index
    %c0_3 = arith.constant 0 : index
    %4 = vector.load %arg1[%c0_2, %c0_3] : memref<16x512xbf16, #tpu.memory_space<vmem>>, vector<16x512xbf16>
    %c0_4 = arith.constant 0 : index
    %c0_5 = arith.constant 0 : index
    %5 = vector.load %arg2[%c0_4, %c0_5] : memref<512x768xbf16, #tpu.memory_space<vmem>>, vector<512x768xbf16>
    %cst = arith.constant dense<0.000000e+00> : vector<16x768xf32>
    %6 = tpu.matmul %4, %5, %cst {dimension_numbers = #tpu.dot_dimension_numbers<[1], [0], [0], [1], [0, 0, 1, 1], [], []>} : vector<16x512xbf16>, vector<512x768xbf16>, vector<16x768xf32> -> vector<16x768xf32>
    %7 = arith.addf %3, %6 : vector<16x768xf32>
    %c0_6 = arith.constant 0 : index
    %c0_7 = arith.constant 0 : index
    %8 = vector.load %arg7[%c0_6, %c0_7] : memref<16x768xf32, #tpu.memory_space<vmem>>, vector<16x768xf32>
    tpu.vector_store %arg7[%c0_6, %c0_7], %7 {strides = array<i32>} : memref<16x768xf32, #tpu.memory_space<vmem>>, vector<16x768xf32>,
    %c1_i32 = arith.constant 1 : i32
    %9 = arith.cmpi eq, %arg0, %c1_i32 : i32
    %10 = arith.extui %9 : i1 to i32
    %c0_i32_8 = arith.constant 0 : i32
    %11 = arith.cmpi ne, %10, %c0_i32_8 : i32
    scf.if %11 {
      %c0_9 = arith.constant 0 : index
      %c0_10 = arith.constant 0 : index
      %12 = vector.load %arg7[%c0_9, %c0_10] : memref<16x768xf32, #tpu.memory_space<vmem>>, vector<16x768xf32>
      %c0_11 = arith.constant 0 : index
      %c0_12 = arith.constant 0 : index
      %13 = vector.load %arg3[%c0_11, %c0_12] : memref<1x768xf32, #tpu.memory_space<vmem>>, vector<1x768xf32>
      %14 = vector.broadcast %13 : vector<1x768xf32> to vector<16x768xf32>
      %15 = arith.addf %12, %14 : vector<16x768xf32>
      %16 = vector.extract_strided_slice %15 {offsets = [0, 0], sizes = [16, 256], strides = [1, 1]} : vector<16x768xf32> to vector<16x256xf32>
      %17 = vector.extract_strided_slice %15 {offsets = [0, 256], sizes = [16, 256], strides = [1, 1]} : vector<16x768xf32> to vector<16x256xf32>
      %18 = vector.extract_strided_slice %15 {offsets = [0, 512], sizes = [16, 256], strides = [1, 1]} : vector<16x768xf32> to vector<16x256xf32>
      %19 = vector.extract_strided_slice %16 {offsets = [0, 0], sizes = [8, 256], strides = [1, 1]} : vector<16x256xf32> to vector<8x256xf32>
      %20 = vector.extract_strided_slice %17 {offsets = [0, 0], sizes = [8, 256], strides = [1, 1]} : vector<16x256xf32> to vector<8x256xf32>
      %21 = vector.extract_strided_slice %19 {offsets = [0, 0], sizes = [8, 64], strides = [1, 1]} : vector<8x256xf32> to vector<8x64xf32>
      %22 = vector.extract_strided_slice %20 {offsets = [0, 0], sizes = [8, 64], strides = [1, 1]} : vector<8x256xf32> to vector<8x64xf32>
      %cst_13 = arith.constant dense<0.000000e+00> : vector<8x8xf32>
      %23 = tpu.matmul %21, %22, %cst_13 {dimension_numbers = #tpu.dot_dimension_numbers<[1], [1], [0], [0], [0, 0, 1, 0], [], []>} : vector<8x64xf32>, vector<8x64xf32>, vector<8x8xf32> -> vector<8x8xf32>
      %24 = vector.extract_strided_slice %19 {offsets = [0, 64], sizes = [8, 64], strides = [1, 1]} : vector<8x256xf32> to vector<8x64xf32>
      %25 = vector.extract_strided_slice %20 {offsets = [0, 64], sizes = [8, 64], strides = [1, 1]} : vector<8x256xf32> to vector<8x64xf32>
      %cst_14 = arith.constant dense<0.000000e+00> : vector<8x8xf32>
      %26 = tpu.matmul %24, %25, %cst_14 {dimension_numbers = #tpu.dot_dimension_numbers<[1], [1], [0], [0], [0, 0, 1, 0], [], []>} : vector<8x64xf32>, vector<8x64xf32>, vector<8x8xf32> -> vector<8x8xf32>
      %27 = vector.extract_strided_slice %19 {offsets = [0, 128], sizes = [8, 64], strides = [1, 1]} : vector<8x256xf32> to vector<8x64xf32>
      %28 = vector.extract_strided_slice %20 {offsets = [0, 128], sizes = [8, 64], strides = [1, 1]} : vector<8x256xf32> to vector<8x64xf32>
      %cst_15 = arith.constant dense<0.000000e+00> : vector<8x8xf32>
      %29 = tpu.matmul %27, %28, %cst_15 {dimension_numbers = #tpu.dot_dimension_numbers<[1], [1], [0], [0], [0, 0, 1, 0], [], []>} : vector<8x64xf32>, vector<8x64xf32>, vector<8x8xf32> -> vector<8x8xf32>
      %30 = vector.extract_strided_slice %19 {offsets = [0, 192], sizes = [8, 64], strides = [1, 1]} : vector<8x256xf32> to vector<8x64xf32>
      %31 = vector.extract_strided_slice %20 {offsets = [0, 192], sizes = [8, 64], strides = [1, 1]} : vector<8x256xf32> to vector<8x64xf32>
      %cst_16 = arith.constant dense<0.000000e+00> : vector<8x8xf32>
      %32 = tpu.matmul %30, %31, %cst_16 {dimension_numbers = #tpu.dot_dimension_numbers<[1], [1], [0], [0], [0, 0, 1, 0], [], []>} : vector<8x64xf32>, vector<8x64xf32>, vector<8x8xf32> -> vector<8x8xf32>
      %33 = vector.extract_strided_slice %16 {offsets = [8, 0], sizes = [8, 256], strides = [1, 1]} : vector<16x256xf32> to vector<8x256xf32>
      %34 = vector.extract_strided_slice %17 {offsets = [8, 0], sizes = [8, 256], strides = [1, 1]} : vector<16x256xf32> to vector<8x256xf32>
      %35 = vector.extract_strided_slice %33 {offsets = [0, 0], sizes = [8, 64], strides = [1, 1]} : vector<8x256xf32> to vector<8x64xf32>
      %36 = vector.extract_strided_slice %34 {offsets = [0, 0], sizes = [8, 64], strides = [1, 1]} : vector<8x256xf32> to vector<8x64xf32>
      %cst_17 = arith.constant dense<0.000000e+00> : vector<8x8xf32>
      %37 = tpu.matmul %35, %36, %cst_17 {dimension_numbers = #tpu.dot_dimension_numbers<[1], [1], [0], [0], [0, 0, 1, 0], [], []>} : vector<8x64xf32>, vector<8x64xf32>, vector<8x8xf32> -> vector<8x8xf32>
      %38 = vector.extract_strided_slice %33 {offsets = [0, 64], sizes = [8, 64], strides = [1, 1]} : vector<8x256xf32> to vector<8x64xf32>
      %39 = vector.extract_strided_slice %34 {offsets = [0, 64], sizes = [8, 64], strides = [1, 1]} : vector<8x256xf32> to vector<8x64xf32>
      %cst_18 = arith.constant dense<0.000000e+00> : vector<8x8xf32>
      %40 = tpu.matmul %38, %39, %cst_18 {dimension_numbers = #tpu.dot_dimension_numbers<[1], [1], [0], [0], [0, 0, 1, 0], [], []>} : vector<8x64xf32>, vector<8x64xf32>, vector<8x8xf32> -> vector<8x8xf32>
      %41 = vector.extract_strided_slice %33 {offsets = [0, 128], sizes = [8, 64], strides = [1, 1]} : vector<8x256xf32> to vector<8x64xf32>
      %42 = vector.extract_strided_slice %34 {offsets = [0, 128], sizes = [8, 64], strides = [1, 1]} : vector<8x256xf32> to vector<8x64xf32>
      %cst_19 = arith.constant dense<0.000000e+00> : vector<8x8xf32>
      %43 = tpu.matmul %41, %42, %cst_19 {dimension_numbers = #tpu.dot_dimension_numbers<[1], [1], [0], [0], [0, 0, 1, 0], [], []>} : vector<8x64xf32>, vector<8x64xf32>, vector<8x8xf32> -> vector<8x8xf32>
      %44 = vector.extract_strided_slice %33 {offsets = [0, 192], sizes = [8, 64], strides = [1, 1]} : vector<8x256xf32> to vector<8x64xf32>
      %45 = vector.extract_strided_slice %34 {offsets = [0, 192], sizes = [8, 64], strides = [1, 1]} : vector<8x256xf32> to vector<8x64xf32>
      %cst_20 = arith.constant dense<0.000000e+00> : vector<8x8xf32>
      %46 = tpu.matmul %44, %45, %cst_20 {dimension_numbers = #tpu.dot_dimension_numbers<[1], [1], [0], [0], [0, 0, 1, 0], [], []>} : vector<8x64xf32>, vector<8x64xf32>, vector<8x8xf32> -> vector<8x8xf32>
      %47 = tpu.concatenate %23, %26, %29, %32, %37, %40, %43, %46 in 0 : vector<8x8xf32>, vector<8x8xf32>, vector<8x8xf32>, vector<8x8xf32>, vector<8x8xf32>, vector<8x8xf32>, vector<8x8xf32>, vector<8x8xf32> -> vector<64x8xf32>
      %cst_21 = arith.constant dense<0xFF800000> : vector<64xf32>
      %48 = vector.multi_reduction <maximumf>, %47, %cst_21 [1] : vector<64x8xf32> to vector<64xf32>
      %49 = vector.shape_cast %48 : vector<64xf32> to vector<64x1xf32>
      %50 = vector.broadcast %49 : vector<64x1xf32> to vector<64x8xf32>
      %51 = arith.subf %47, %50 : vector<64x8xf32>
      %52 = math.exp %51 : vector<64x8xf32>
      %cst_22 = arith.constant dense<0.000000e+00> : vector<64xf32>
      %53 = vector.multi_reduction <add>, %52, %cst_22 [1] : vector<64x8xf32> to vector<64xf32>
      %54 = vector.shape_cast %53 : vector<64xf32> to vector<64x1xf32>
      %55 = tpu.reciprocal %54 : vector<64x1xf32> -> vector<64x1xf32>
      %56 = vector.broadcast %55 : vector<64x1xf32> to vector<64x8xf32>
      %57 = arith.mulf %52, %56 : vector<64x8xf32>
      %58 = vector.extract_strided_slice %18 {offsets = [0, 0], sizes = [8, 256], strides = [1, 1]} : vector<16x256xf32> to vector<8x256xf32>
      %59 = vector.extract_strided_slice %57 {offsets = [0, 0], sizes = [8, 8], strides = [1, 1]} : vector<64x8xf32> to vector<8x8xf32>
      %cst_23 = arith.constant dense<0.000000e+00> : vector<8xf32>
      %60 = vector.multi_reduction <add>, %59, %cst_23 [0] : vector<8x8xf32> to vector<8xf32>
      %61 = vector.shape_cast %60 : vector<8xf32> to vector<1x8xf32>
      %cst_24 = arith.constant 1.250000e-01 : f32
      %62 = vector.broadcast %cst_24 : f32 to vector<1x8xf32>
      %63 = arith.mulf %61, %62 : vector<1x8xf32>
      %64 = vector.extract_strided_slice %58 {offsets = [0, 0], sizes = [8, 64], strides = [1, 1]} : vector<8x256xf32> to vector<8x64xf32>
      %cst_25 = arith.constant dense<0.000000e+00> : vector<1x64xf32>
      %65 = tpu.matmul %63, %64, %cst_25 {dimension_numbers = #tpu.dot_dimension_numbers<[1], [0], [0], [1], [0, 0, 1, 1], [], []>} : vector<1x8xf32>, vector<8x64xf32>, vector<1x64xf32> -> vector<1x64xf32>
      %66 = vector.extract_strided_slice %57 {offsets = [8, 0], sizes = [8, 8], strides = [1, 1]} : vector<64x8xf32> to vector<8x8xf32>
      %cst_26 = arith.constant dense<0.000000e+00> : vector<8xf32>
      %67 = vector.multi_reduction <add>, %66, %cst_26 [0] : vector<8x8xf32> to vector<8xf32>
      %68 = vector.shape_cast %67 : vector<8xf32> to vector<1x8xf32>
      %cst_27 = arith.constant 1.250000e-01 : f32
      %69 = vector.broadcast %cst_27 : f32 to vector<1x8xf32>
      %70 = arith.mulf %68, %69 : vector<1x8xf32>
      %71 = vector.extract_strided_slice %58 {offsets = [0, 64], sizes = [8, 64], strides = [1, 1]} : vector<8x256xf32> to vector<8x64xf32>
      %cst_28 = arith.constant dense<0.000000e+00> : vector<1x64xf32>
      %72 = tpu.matmul %70, %71, %cst_28 {dimension_numbers = #tpu.dot_dimension_numbers<[1], [0], [0], [1], [0, 0, 1, 1], [], []>} : vector<1x8xf32>, vector<8x64xf32>, vector<1x64xf32> -> vector<1x64xf32>
      %73 = vector.extract_strided_slice %57 {offsets = [16, 0], sizes = [8, 8], strides = [1, 1]} : vector<64x8xf32> to vector<8x8xf32>
      %cst_29 = arith.constant dense<0.000000e+00> : vector<8xf32>
      %74 = vector.multi_reduction <add>, %73, %cst_29 [0] : vector<8x8xf32> to vector<8xf32>
      %75 = vector.shape_cast %74 : vector<8xf32> to vector<1x8xf32>
      %cst_30 = arith.constant 1.250000e-01 : f32
      %76 = vector.broadcast %cst_30 : f32 to vector<1x8xf32>
      %77 = arith.mulf %75, %76 : vector<1x8xf32>
      %78 = vector.extract_strided_slice %58 {offsets = [0, 128], sizes = [8, 64], strides = [1, 1]} : vector<8x256xf32> to vector<8x64xf32>
      %cst_31 = arith.constant dense<0.000000e+00> : vector<1x64xf32>
      %79 = tpu.matmul %77, %78, %cst_31 {dimension_numbers = #tpu.dot_dimension_numbers<[1], [0], [0], [1], [0, 0, 1, 1], [], []>} : vector<1x8xf32>, vector<8x64xf32>, vector<1x64xf32> -> vector<1x64xf32>
      %80 = vector.extract_strided_slice %57 {offsets = [24, 0], sizes = [8, 8], strides = [1, 1]} : vector<64x8xf32> to vector<8x8xf32>
      %cst_32 = arith.constant dense<0.000000e+00> : vector<8xf32>
      %81 = vector.multi_reduction <add>, %80, %cst_32 [0] : vector<8x8xf32> to vector<8xf32>
      %82 = vector.shape_cast %81 : vector<8xf32> to vector<1x8xf32>
      %cst_33 = arith.constant 1.250000e-01 : f32
      %83 = vector.broadcast %cst_33 : f32 to vector<1x8xf32>
      %84 = arith.mulf %82, %83 : vector<1x8xf32>
      %85 = vector.extract_strided_slice %58 {offsets = [0, 192], sizes = [8, 64], strides = [1, 1]} : vector<8x256xf32> to vector<8x64xf32>
      %cst_34 = arith.constant dense<0.000000e+00> : vector<1x64xf32>
      %86 = tpu.matmul %84, %85, %cst_34 {dimension_numbers = #tpu.dot_dimension_numbers<[1], [0], [0], [1], [0, 0, 1, 1], [], []>} : vector<1x8xf32>, vector<8x64xf32>, vector<1x64xf32> -> vector<1x64xf32>
      %87 = tpu.concatenate %65, %72, %79, %86 in 1 : vector<1x64xf32>, vector<1x64xf32>, vector<1x64xf32>, vector<1x64xf32> -> vector<1x256xf32>
      %88 = vector.extract_strided_slice %18 {offsets = [8, 0], sizes = [8, 256], strides = [1, 1]} : vector<16x256xf32> to vector<8x256xf32>
      %89 = vector.extract_strided_slice %57 {offsets = [32, 0], sizes = [8, 8], strides = [1, 1]} : vector<64x8xf32> to vector<8x8xf32>
      %cst_35 = arith.constant dense<0.000000e+00> : vector<8xf32>
      %90 = vector.multi_reduction <add>, %89, %cst_35 [0] : vector<8x8xf32> to vector<8xf32>
      %91 = vector.shape_cast %90 : vector<8xf32> to vector<1x8xf32>
      %cst_36 = arith.constant 1.250000e-01 : f32
      %92 = vector.broadcast %cst_36 : f32 to vector<1x8xf32>
      %93 = arith.mulf %91, %92 : vector<1x8xf32>
      %94 = vector.extract_strided_slice %88 {offsets = [0, 0], sizes = [8, 64], strides = [1, 1]} : vector<8x256xf32> to vector<8x64xf32>
      %cst_37 = arith.constant dense<0.000000e+00> : vector<1x64xf32>
      %95 = tpu.matmul %93, %94, %cst_37 {dimension_numbers = #tpu.dot_dimension_numbers<[1], [0], [0], [1], [0, 0, 1, 1], [], []>} : vector<1x8xf32>, vector<8x64xf32>, vector<1x64xf32> -> vector<1x64xf32>
      %96 = vector.extract_strided_slice %57 {offsets = [40, 0], sizes = [8, 8], strides = [1, 1]} : vector<64x8xf32> to vector<8x8xf32>
      %cst_38 = arith.constant dense<0.000000e+00> : vector<8xf32>
      %97 = vector.multi_reduction <add>, %96, %cst_38 [0] : vector<8x8xf32> to vector<8xf32>
      %98 = vector.shape_cast %97 : vector<8xf32> to vector<1x8xf32>
      %cst_39 = arith.constant 1.250000e-01 : f32
      %99 = vector.broadcast %cst_39 : f32 to vector<1x8xf32>
      %100 = arith.mulf %98, %99 : vector<1x8xf32>
      %101 = vector.extract_strided_slice %88 {offsets = [0, 64], sizes = [8, 64], strides = [1, 1]} : vector<8x256xf32> to vector<8x64xf32>
      %cst_40 = arith.constant dense<0.000000e+00> : vector<1x64xf32>
      %102 = tpu.matmul %100, %101, %cst_40 {dimension_numbers = #tpu.dot_dimension_numbers<[1], [0], [0], [1], [0, 0, 1, 1], [], []>} : vector<1x8xf32>, vector<8x64xf32>, vector<1x64xf32> -> vector<1x64xf32>
      %103 = vector.extract_strided_slice %57 {offsets = [48, 0], sizes = [8, 8], strides = [1, 1]} : vector<64x8xf32> to vector<8x8xf32>
      %cst_41 = arith.constant dense<0.000000e+00> : vector<8xf32>
      %104 = vector.multi_reduction <add>, %103, %cst_41 [0] : vector<8x8xf32> to vector<8xf32>
      %105 = vector.shape_cast %104 : vector<8xf32> to vector<1x8xf32>
      %cst_42 = arith.constant 1.250000e-01 : f32
      %106 = vector.broadcast %cst_42 : f32 to vector<1x8xf32>
      %107 = arith.mulf %105, %106 : vector<1x8xf32>
      %108 = vector.extract_strided_slice %88 {offsets = [0, 128], sizes = [8, 64], strides = [1, 1]} : vector<8x256xf32> to vector<8x64xf32>
      %cst_43 = arith.constant dense<0.000000e+00> : vector<1x64xf32>
      %109 = tpu.matmul %107, %108, %cst_43 {dimension_numbers = #tpu.dot_dimension_numbers<[1], [0], [0], [1], [0, 0, 1, 1], [], []>} : vector<1x8xf32>, vector<8x64xf32>, vector<1x64xf32> -> vector<1x64xf32>
      %110 = vector.extract_strided_slice %57 {offsets = [56, 0], sizes = [8, 8], strides = [1, 1]} : vector<64x8xf32> to vector<8x8xf32>
      %cst_44 = arith.constant dense<0.000000e+00> : vector<8xf32>
      %111 = vector.multi_reduction <add>, %110, %cst_44 [0] : vector<8x8xf32> to vector<8xf32>
      %112 = vector.shape_cast %111 : vector<8xf32> to vector<1x8xf32>
      %cst_45 = arith.constant 1.250000e-01 : f32
      %113 = vector.broadcast %cst_45 : f32 to vector<1x8xf32>
      %114 = arith.mulf %112, %113 : vector<1x8xf32>
      %115 = vector.extract_strided_slice %88 {offsets = [0, 192], sizes = [8, 64], strides = [1, 1]} : vector<8x256xf32> to vector<8x64xf32>
      %cst_46 = arith.constant dense<0.000000e+00> : vector<1x64xf32>
      %116 = tpu.matmul %114, %115, %cst_46 {dimension_numbers = #tpu.dot_dimension_numbers<[1], [0], [0], [1], [0, 0, 1, 1], [], []>} : vector<1x8xf32>, vector<8x64xf32>, vector<1x64xf32> -> vector<1x64xf32>
      %117 = tpu.concatenate %95, %102, %109, %116 in 1 : vector<1x64xf32>, vector<1x64xf32>, vector<1x64xf32>, vector<1x64xf32> -> vector<1x256xf32>
      %118 = tpu.concatenate %87, %117 in 0 : vector<1x256xf32>, vector<1x256xf32> -> vector<2x256xf32>
      %c0_47 = arith.constant 0 : index
      %c0_48 = arith.constant 0 : index
      %119 = vector.load %arg4[%c0_47, %c0_48] : memref<256x128xf32, #tpu.memory_space<vmem>>, vector<256x128xf32>
      %cst_49 = arith.constant dense<0.000000e+00> : vector<2x128xf32>
      %120 = tpu.matmul %118, %119, %cst_49 {dimension_numbers = #tpu.dot_dimension_numbers<[1], [0], [0], [1], [0, 0, 1, 1], [], []>} : vector<2x256xf32>, vector<256x128xf32>, vector<2x128xf32> -> vector<2x128xf32>
      %c0_50 = arith.constant 0 : index
      %c0_51 = arith.constant 0 : index
      %121 = vector.load %arg5[%c0_50, %c0_51] : memref<1x128xf32, #tpu.memory_space<vmem>>, vector<1x128xf32>
      %122 = vector.broadcast %121 : vector<1x128xf32> to vector<2x128xf32>
      %123 = arith.addf %120, %122 : vector<2x128xf32>
      %124 = math.tanh %123 : vector<2x128xf32>
      %c0_52 = arith.constant 0 : index
      %c0_53 = arith.constant 0 : index
      %125 = vector.load %arg6[%c0_52, %c0_53] : memref<2x128xf32, #tpu.memory_space<vmem>>, vector<2x128xf32>
      tpu.vector_store %arg6[%c0_52, %c0_53], %124 {strides = array<i32>} : memref<2x128xf32, #tpu.memory_space<vmem>>, vector<2x128xf32>,
    } else {
    }
    return
  }
  func.func @transform_0(%arg0: i32) -> (i32, i32) {
    %c0_i32 = arith.constant 0 : i32
    %c0_i32_0 = arith.constant 0 : i32
    return %c0_i32, %arg0 : i32, i32
  }
  func.func @transform_1(%arg0: i32) -> (i32, i32) {
    %c0_i32 = arith.constant 0 : i32
    %c0_i32_0 = arith.constant 0 : i32
    return %arg0, %c0_i32 : i32, i32
  }
  func.func @transform_2(%arg0: i32) -> (i32, i32) {
    %c0_i32 = arith.constant 0 : i32
    %c0_i32_0 = arith.constant 0 : i32
    %c0_i32_1 = arith.constant 0 : i32
    return %c0_i32, %c0_i32_0 : i32, i32
  }
  func.func @transform_3(%arg0: i32) -> (i32, i32) {
    %c0_i32 = arith.constant 0 : i32
    %c0_i32_0 = arith.constant 0 : i32
    %c0_i32_1 = arith.constant 0 : i32
    return %c0_i32, %c0_i32_0 : i32, i32
  }
  func.func @transform_4(%arg0: i32) -> (i32, i32) {
    %c0_i32 = arith.constant 0 : i32
    %c0_i32_0 = arith.constant 0 : i32
    %c0_i32_1 = arith.constant 0 : i32
    return %c0_i32, %c0_i32_0 : i32, i32
  }
  func.func @transform_5(%arg0: i32) -> (i32, i32) {
    %c0_i32 = arith.constant 0 : i32
    %c0_i32_0 = arith.constant 0 : i32
    %c0_i32_1 = arith.constant 0 : i32
    return %c0_i32, %c0_i32_0 : i32, i32
  }
}

</mosaic_0001>

<llo_original>
// kernel: tpu_custom_call.1
$region0: #{tpu_custom_call.1}
  #allocation0 [shape = 'u32[]', space=smem, size = 0x4, offset = 0x4, fixed_abs, tag = 'smem constant byte address 0x4 - core index']
  #allocation1 [shape = 'u32[144,128]{1,0:T(1,128)}', space=vmem, size = 0x12000, scoped, tag = 'internal scratch']
  #allocation2 [shape = 'f32[16,768]{1,0:T(8,128)}', space=vmem, size = 0xc000, scoped, tag = 'scratch operand']
  %s0 = inlined_call_operand.hbm [shape: bf16[16,1024], index: 0, kind: input, shape index: {}]
  %s1 = inlined_call_operand.hbm [shape: bf16[1024,768], index: 1, kind: input, shape index: {}]
  %s2 = inlined_call_operand.hbm [shape: f32[1,768], index: 2, kind: input, shape index: {}]
  %s3 = inlined_call_operand.hbm [shape: f32[256,128], index: 3, kind: input, shape index: {}]
  %s4 = inlined_call_operand.hbm [shape: f32[1,128], index: 4, kind: input, shape index: {}]
  %s5 = inlined_call_operand.hbm [shape: f32[2,128], index: 5, kind: output, shape index: {}]
  %s6 = sld [smem:[#allocation0]]
  $region81: #{tpu_custom_call.1} parent=0
    _
  %s8 = ssub.s32 1, %s6
  %s9 = scalar_select 0, %s8, %s6
  $region1: #{tpu_custom_call.1} parent=0
    #allocation3 [shape = 'u8[32768]{0}', space=vmem, size = 0x8000, scoped, tag = 'input window, operand 0']
    #allocation4 [shape = 's32[2]{0}', space=sflag, size = 0x8, scoped, tag = 'scoped memory for tpu_custom_call.1']
    #allocation5 [shape = 's32[2]{0}', space=sflag, size = 0x8, scoped, tag = 'scoped memory for tpu_custom_call.1']
    #allocation6 [shape = 'u8[1572864]{0}', space=vmem, size = 0x180000, scoped, tag = 'input window, operand 1']
    #allocation7 [shape = 's32[2]{0}', space=sflag, size = 0x8, scoped, tag = 'scoped memory for tpu_custom_call.1']
    #allocation8 [shape = 'u8[3072]{0}', space=vmem, size = 0xc00, scoped, tag = 'input window, operand 2, single buffered']
    #allocation9 [shape = 'u8[131072]{0}', space=vmem, size = 0x20000, scoped, tag = 'input window, operand 3, single buffered']
    #allocation10 [shape = 's32[1]{0}', space=sflag, size = 0x4, scoped, tag = 'scoped memory for tpu_custom_call.1']
    #allocation11 [shape = 'u8[512]{0}', space=vmem, size = 0x400, scoped, tag = 'input window, operand 4, single buffered']
    #allocation12 [shape = 'u8[1024]{0}', space=vmem, size = 0x400, scoped, tag = 'output window, operand 0, single buffered']
    %10 = vsyncpa [#allocation4], 0
    %s11 = scalar_lea.sflag [#allocation4], 1
    %12 = vsyncpa %s11, 0
    %13 = vsyncpa [#allocation7], 0
    %s14 = scalar_lea.sflag [#allocation7], 1
    %15 = vsyncpa %s14, 0
    %16 = vsyncpa [#allocation10], 0
    %17 = vsyncpa [#allocation5], 0
    loop: start=0, step=1, limit=4
    $region2: #{tpu_custom_call.1} parent=1 // loop_pre_header
      _
    $region3: #{tpu_custom_call.1} parent=1 // loop_header
      %s19 = sphi 0, %s23
      %p20 = scmp.ge.s32.totalorder %s19, 4
      %s29 = sphi 0, %s31
      %s32 = sphi 0, %s29
      %s33 = sphi 0, %s32
      %s49 = sphi 0, %s33
      %s55 = sphi 0, %s57
      %s58 = sphi 0, %s55
      %s59 = sphi 0, %s58
      %s75 = sphi 0, %s59
      %s79 = sphi 0, %s79
      %s81 = sphi 0, %s79
      %s82 = sphi 0, %s81
      %s96 = sphi 0, %s82
      %s100 = sphi 0, %s100
      %s102 = sphi 0, %s100
      %s103 = sphi 0, %s102
      %s117 = sphi 0, %s103
      %s121 = sphi 0, %s121
      %s123 = sphi 0, %s121
      %s124 = sphi 0, %s123
      %s138 = sphi 0, %s124
      %s142 = sphi 0, %s142
      %s144 = sphi 0, %s142
      %s145 = sphi 0, %s144
      %s159 = sphi 0, %s145
    $region4: #{tpu_custom_call.1} parent=1 // loop_header_branch
      %22 = sbr.rel (%p20) target = $region8
    $region5: #{tpu_custom_call.1} parent=1 // loop_body
      %s24 = ssub.s32 %s19, 1
      %s25 = ssub.s32 %s19, 2
      %s26 = sadd.s32 %s19, 1
      %s27 = ssub.s32 %s19, %s26
      %p28 = scmp.eq.s32.totalorder %s27, 0
      %s30 = sadd.s32 %s29, 1
      %s31 = scalar_select %p28, %s29, %s30
      %p34 = pneg %p28
      %p35 = scmp.eq.s32.totalorder %s19, 1
      %p36 = por %p34, %p35
      %p37 = scmp.ne.s32.totalorder %s29, %s32
      %p38 = scmp.eq.s32.totalorder %s19, 0
      %p39 = por %p37, %p38
      %p40 = scmp.ne.s32.totalorder %s29, %s32
      %p41 = scmp.eq.s32.totalorder %s24, 1
      %p42 = por %p40, %p41
      %p43 = scmp.ne.s32.totalorder %s32, %s33
      %p44 = scmp.eq.s32.totalorder %s24, 0
      %p45 = por %p43, %p44
      %p46 = scmp.ne.s32.totalorder %s32, %s33
      %p47 = scmp.eq.s32.totalorder %s25, 1
      %p48 = por %p46, %p47
      %p50 = scmp.ne.s32.totalorder %s33, %s49
      %p51 = scmp.eq.s32.totalorder %s25, 0
      %p52 = por %p50, %p51
      %s53 = ssub.s32 %s19, %s26
      %p54 = scmp.eq.s32.totalorder %s53, 0
      %s56 = sadd.s32 %s55, 1
      %s57 = scalar_select %p54, %s55, %s56
      %p60 = pneg %p54
      %p61 = scmp.eq.s32.totalorder %s19, 1
      %p62 = por %p60, %p61
      %p63 = scmp.ne.s32.totalorder %s55, %s58
      %p64 = scmp.eq.s32.totalorder %s19, 0
      %p65 = por %p63, %p64
      %p66 = scmp.ne.s32.totalorder %s55, %s58
      %p67 = scmp.eq.s32.totalorder %s24, 1
      %p68 = por %p66, %p67
      %p69 = scmp.ne.s32.totalorder %s58, %s59
      %p70 = scmp.eq.s32.totalorder %s24, 0
      %p71 = por %p69, %p70
      %p72 = scmp.ne.s32.totalorder %s58, %s59
      %p73 = scmp.eq.s32.totalorder %s25, 1
      %p74 = por %p72, %p73
      %p76 = scmp.ne.s32.totalorder %s59, %s75
      %p77 = scmp.eq.s32.totalorder %s25, 0
      %p78 = por %p76, %p77
      %s80 = sadd.s32 %s79, 1
      %p83 = scmp.eq.s32.totalorder %s19, 1
      %p84 = scmp.ne.s32.totalorder %s79, %s81
      %p85 = scmp.eq.s32.totalorder %s19, 0
      %p86 = por %p84, %p85
      %p87 = scmp.ne.s32.totalorder %s79, %s81
      %p88 = scmp.eq.s32.totalorder %s24, 1
      %p89 = por %p87, %p88
      %p90 = scmp.ne.s32.totalorder %s81, %s82
      %p91 = scmp.eq.s32.totalorder %s24, 0
      %p92 = por %p90, %p91
      %p93 = scmp.ne.s32.totalorder %s81, %s82
      %p94 = scmp.eq.s32.totalorder %s25, 1
      %p95 = por %p93, %p94
      %p97 = scmp.ne.s32.totalorder %s82, %s96
      %p98 = scmp.eq.s32.totalorder %s25, 0
      %p99 = por %p97, %p98
      %s101 = sadd.s32 %s100, 1
      %p104 = scmp.eq.s32.totalorder %s19, 1
      %p105 = scmp.ne.s32.totalorder %s100, %s102
      %p106 = scmp.eq.s32.totalorder %s19, 0
      %p107 = por %p105, %p106
      %p108 = scmp.ne.s32.totalorder %s100, %s102
      %p109 = scmp.eq.s32.totalorder %s24, 1
      %p110 = por %p108, %p109
      %p111 = scmp.ne.s32.totalorder %s102, %s103
      %p112 = scmp.eq.s32.totalorder %s24, 0
      %p113 = por %p111, %p112
      %p114 = scmp.ne.s32.totalorder %s102, %s103
      %p115 = scmp.eq.s32.totalorder %s25, 1
      %p116 = por %p114, %p115
      %p118 = scmp.ne.s32.totalorder %s103, %s117
      %p119 = scmp.eq.s32.totalorder %s25, 0
      %p120 = por %p118, %p119
      %s122 = sadd.s32 %s121, 1
      %p125 = scmp.eq.s32.totalorder %s19, 1
      %p126 = scmp.ne.s32.totalorder %s121, %s123
      %p127 = scmp.eq.s32.totalorder %s19, 0
      %p128 = por %p126, %p127
      %p129 = scmp.ne.s32.totalorder %s121, %s123
      %p130 = scmp.eq.s32.totalorder %s24, 1
      %p131 = por %p129, %p130
      %p132 = scmp.ne.s32.totalorder %s123, %s124
      %p133 = scmp.eq.s32.totalorder %s24, 0
      %p134 = por %p132, %p133
      %p135 = scmp.ne.s32.totalorder %s123, %s124
      %p136 = scmp.eq.s32.totalorder %s25, 1
      %p137 = por %p135, %p136
      %p139 = scmp.ne.s32.totalorder %s124, %s138
      %p140 = scmp.eq.s32.totalorder %s25, 0
      %p141 = por %p139, %p140
      %s143 = sadd.s32 %s142, 1
      %p146 = scmp.eq.s32.totalorder %s19, 1
      %p147 = scmp.ne.s32.totalorder %s142, %s144
      %p148 = scmp.eq.s32.totalorder %s19, 0
      %p149 = por %p147, %p148
      %p150 = scmp.ne.s32.totalorder %s142, %s144
      %p151 = scmp.eq.s32.totalorder %s24, 1
      %p152 = por %p150, %p151
      %p153 = scmp.ne.s32.totalorder %s144, %s145
      %p154 = scmp.eq.s32.totalorder %s24, 0
      %p155 = por %p153, %p154
      %p156 = scmp.ne.s32.totalorder %s144, %s145
      %p157 = scmp.eq.s32.totalorder %s25, 1
      %p158 = por %p156, %p157
      %p160 = scmp.ne.s32.totalorder %s145, %s159
      %p161 = scmp.eq.s32.totalorder %s25, 0
      %p162 = por %p160, %p161
      %p163 = scmp.le.s32.totalorder 1, %s19
      %p164 = scmp.lt.s32.totalorder %s19, 3
      %p165 = pnand %p163, %p164
      %p166 = pneg %p165
      // Predicated region
      $region9: #{tpu_custom_call.1} parent=5 // pred_check
        _
      $region10: #{tpu_custom_call.1} parent=5 // pred_check_branch
        %168 = sbr.rel (%p165) target = $region12
      $region11: #{tpu_custom_call.1} parent=5 // pred_region
        %s169 = ssub.s32 %s19, 1
        // Predicated region
        $region13: #{tpu_custom_call.1} parent=11 // pred_check
          %p170 = pneg %p92
        $region14: #{tpu_custom_call.1} parent=11 // pred_check_branch
          %172 = sbr.rel (%p170) target = $region16
        $region15: #{tpu_custom_call.1} parent=11 // pred_region
          %s174 = ssub.s32 96, 96
          %175 = vsyncadd [#allocation7], %s174
          %s177 = sshll.u32 [#allocation8], 4
          %s178 = int_to_ptr.vmem [resolvable:$true] %s177
          %180 = dma.hbm_to_vmem [thread:$0]  %s2, 96, %s178, [#allocation7]
        $region16: #{tpu_custom_call.1} parent=11 // pred_fallthru
          _
        // Predicated region
        $region17: #{tpu_custom_call.1} parent=11 // pred_check
          %p181 = pneg %p113
        $region18: #{tpu_custom_call.1} parent=11 // pred_check_branch
          %183 = sbr.rel (%p181) target = $region20
        $region19: #{tpu_custom_call.1} parent=11 // pred_region
          %s185 = ssub.s32 4096, 4096
          %186 = vsyncadd [#allocation10], %s185
          %s187 = sshll.u32 [#allocation9], 4
          %s188 = int_to_ptr.vmem [resolvable:$true] %s187
          %193 = dma.hbm_to_vmem [thread:$0]  %s3, 4096, %s188, [#allocation10], 128, 128, 8
        $region20: #{tpu_custom_call.1} parent=11 // pred_fallthru
          _
        // Predicated region
        $region21: #{tpu_custom_call.1} parent=11 // pred_check
          %p194 = pneg %p134
        $region22: #{tpu_custom_call.1} parent=11 // pred_check_branch
          %196 = sbr.rel (%p194) target = $region24
        $region23: #{tpu_custom_call.1} parent=11 // pred_region
          %s198 = ssub.s32 16, 16
          %199 = vsyncadd [#allocation10], %s198
          %s201 = sshll.u32 [#allocation11], 4
          %s202 = int_to_ptr.vmem [resolvable:$true] %s201
          %204 = dma.hbm_to_vmem [thread:$0]  %s4, 16, %s202, [#allocation10]
        $region24: #{tpu_custom_call.1} parent=11 // pred_fallthru
          _
      $region12: #{tpu_custom_call.1} parent=5 // pred_fallthru
        _
      %p205 = scmp.lt.s32.totalorder %s19, 2
      // Predicated region
      $region25: #{tpu_custom_call.1} parent=5 // pred_check
        %p206 = pneg %p205
      $region26: #{tpu_custom_call.1} parent=5 // pred_check_branch
        %208 = sbr.rel (%p206) target = $region28
      $region27: #{tpu_custom_call.1} parent=5 // pred_region
        // Predicated region
        $region29: #{tpu_custom_call.1} parent=27 // pred_check
          %p209 = pneg %p39
        $region30: #{tpu_custom_call.1} parent=27 // pred_check_branch
          %211 = sbr.rel (%p209) target = $region32
        $region31: #{tpu_custom_call.1} parent=27 // pred_region
          %s212 = sand.u32 %s29, 1
          %s213 = scalar_lea.sflag [#allocation4], %s212
          %s214 = sand.u32 %s29, 1
          %s215 = smul.addr %s214, 32
          %s216 = scalar_lea.vmem [#allocation3], %s215
          %s217 = smul.u32 4, %s19
          %s219 = ssub.s32 512, 512
          %220 = vsyncadd %s213, %s219
          %s221 = smul.addr %s217, 64
          %s222 = scalar_lea.hbm %s0, %s221
          %s223 = sshll.u32 %s216, 4
          %s224 = int_to_ptr.vmem [resolvable:$true] %s223
          %229 = dma.hbm_to_vmem [thread:$0]  %s222, 512, %s224, %s213, 512, 256, 16
        $region32: #{tpu_custom_call.1} parent=27 // pred_fallthru
          _
        // Predicated region
        $region33: #{tpu_custom_call.1} parent=27 // pred_check
          %p230 = pneg %p65
        $region34: #{tpu_custom_call.1} parent=27 // pred_check_branch
          %232 = sbr.rel (%p230) target = $region36
        $region35: #{tpu_custom_call.1} parent=27 // pred_region
          %s233 = sand.u32 %s19, 1
          %s234 = scalar_lea.sflag [#allocation7], %s233
          %s235 = sand.u32 %s55, 1
          %s236 = smul.addr %s235, 1536
          %s237 = scalar_lea.vmem [#allocation6], %s236
          %s238 = smul.u32 64, %s19
          %s240 = ssub.s32 24576, 24576
          %241 = vsyncadd %s234, %s240
          %s242 = smul.addr %s238, 6
          %s243 = smul.addr %s242, 64
          %s244 = scalar_lea.hbm %s1, %s243
          %s245 = sshll.u32 %s237, 4
          %s246 = int_to_ptr.vmem [resolvable:$true] %s245
          %251 = dma.hbm_to_vmem [thread:$0]  %s244, 24576, %s246, %s234, 384, 384, 24
        $region36: #{tpu_custom_call.1} parent=27 // pred_fallthru
          _
      $region28: #{tpu_custom_call.1} parent=5 // pred_fallthru
        _
      %p252 = scmp.le.s32.totalorder 1, %s19
      %p253 = scmp.lt.s32.totalorder %s19, 3
      %p254 = pnand %p252, %p253
      %p255 = pneg %p254
      // Predicated region
      $region37: #{tpu_custom_call.1} parent=5 // pred_check
        _
      $region38: #{tpu_custom_call.1} parent=5 // pred_check_branch
        %257 = sbr.rel (%p254) target = $region40
      $region39: #{tpu_custom_call.1} parent=5 // pred_region
        %s258 = ssub.s32 %s19, 1
        %s259 = sand.u32 %s32, 1
        %s260 = scalar_lea.sflag [#allocation4], %s259
        %s261 = sand.u32 %s32, 1
        %s262 = smul.addr %s261, 32
        %s263 = scalar_lea.vmem [#allocation3], %s262
        // Predicated region
        $region41: #{tpu_custom_call.1} parent=39 // pred_check
          %p264 = pneg %p45
        $region42: #{tpu_custom_call.1} parent=39 // pred_check_branch
          %266 = sbr.rel (%p264) target = $region44
        $region43: #{tpu_custom_call.1} parent=39 // pred_region
          %267 = dma.done %s260, 512
        $region44: #{tpu_custom_call.1} parent=39 // pred_fallthru
          _
        %s268 = sand.u32 %s24, 1
        %s269 = scalar_lea.sflag [#allocation7], %s268
        %s270 = sand.u32 %s58, 1
        %s271 = smul.addr %s270, 1536
        %s272 = scalar_lea.vmem [#allocation6], %s271
        // Predicated region
        $region45: #{tpu_custom_call.1} parent=39 // pred_check
          %p273 = pneg %p71
        $region46: #{tpu_custom_call.1} parent=39 // pred_check_branch
          %275 = sbr.rel (%p273) target = $region48
        $region47: #{tpu_custom_call.1} parent=39 // pred_region
          %276 = dma.done %s269, 24576
        $region48: #{tpu_custom_call.1} parent=39 // pred_fallthru
          _
        // Predicated region
        $region49: #{tpu_custom_call.1} parent=39 // pred_check
          %p277 = pneg %p92
        $region50: #{tpu_custom_call.1} parent=39 // pred_check_branch
          %279 = sbr.rel (%p277) target = $region52
        $region51: #{tpu_custom_call.1} parent=39 // pred_region
          %280 = dma.done [#allocation7], 96
        $region52: #{tpu_custom_call.1} parent=39 // pred_fallthru
          _
        // Predicated region
        $region53: #{tpu_custom_call.1} parent=39 // pred_check
          %p281 = pneg %p113
        $region54: #{tpu_custom_call.1} parent=39 // pred_check_branch
          %283 = sbr.rel (%p281) target = $region56
        $region55: #{tpu_custom_call.1} parent=39 // pred_region
          %284 = dma.done [#allocation10], 4096
        $region56: #{tpu_custom_call.1} parent=39 // pred_fallthru
          _
        // Predicated region
        $region57: #{tpu_custom_call.1} parent=39 // pred_check
          %p285 = pneg %p134
        $region58: #{tpu_custom_call.1} parent=39 // pred_check_branch
          %287 = sbr.rel (%p285) target = $region60
        $region59: #{tpu_custom_call.1} parent=39 // pred_region
          %288 = dma.done [#allocation10], 16
        $region60: #{tpu_custom_call.1} parent=39 // pred_fallthru
          _
        %s289 = sand.u32 %s32, 1
        %s290 = scalar_lea.sflag [#allocation4], %s289
        %s291 = sand.u32 %s32, 1
        %s292 = smul.addr %s291, 32
        %s293 = scalar_lea.vmem [#allocation3], %s292
        %p294 = pneg %p45
        %p295 = pneg %p42
        %s296 = sand.u32 %s24, 1
        %s297 = scalar_lea.sflag [#allocation7], %s296
        %s298 = sand.u32 %s58, 1
        %s299 = smul.addr %s298, 1536
        %s300 = scalar_lea.vmem [#allocation6], %s299
        %p301 = pneg %p71
        %p302 = pneg %p68
        %p303 = pneg %p92
        %p304 = pneg %p89
        %p305 = pneg %p113
        %p306 = pneg %p110
        %p307 = pneg %p134
        %p308 = pneg %p131
        %p309 = pneg %p155
        %p310 = pneg %p152
        %s311 = smul.u32 4, %s24
        %s312 = smul.u32 64, %s24
        %p313 = scmp.eq.s32.totalorder %s24, 0
        // Predicated region
        $region61: #{tpu_custom_call.1} parent=39 // pred_check
          %p314 = pneg %p313
        $region62: #{tpu_custom_call.1} parent=39 // pred_check_branch
          %316 = sbr.rel (%p314) target = $region64
        $region63: #{tpu_custom_call.1} parent=39 // pred_region
          %317 = vst [vmem:[#allocation2] sm:$0xff] 0.0
          %318 = vst [vmem:[#allocation2 + $0x8] sm:$0xff] 0.0
          %319 = vst [vmem:[#allocation2 + $0x10] sm:$0xff] 0.0
          %320 = vst [vmem:[#allocation2 + $0x18] sm:$0xff] 0.0
          %321 = vst [vmem:[#allocation2 + $0x20] sm:$0xff] 0.0
          %322 = vst [vmem:[#allocation2 + $0x28] sm:$0xff] 0.0
          %323 = vst [vmem:[#allocation2 + $0x30] sm:$0xff] 0.0
          %324 = vst [vmem:[#allocation2 + $0x38] sm:$0xff] 0.0
          %325 = vst [vmem:[#allocation2 + $0x40] sm:$0xff] 0.0
          %326 = vst [vmem:[#allocation2 + $0x48] sm:$0xff] 0.0
          %327 = vst [vmem:[#allocation2 + $0x50] sm:$0xff] 0.0
          %328 = vst [vmem:[#allocation2 + $0x58] sm:$0xff] 0.0
        $region64: #{tpu_custom_call.1} parent=39 // pred_fallthru
          _
        %v329 = vld [vmem:[#allocation2] sm:$0xff]
        %v330 = vld [vmem:[#allocation2 + $0x8] sm:$0xff]
        %v331 = vld [vmem:[#allocation2 + $0x10] sm:$0xff]
        %v332 = vld [vmem:[#allocation2 + $0x18] sm:$0xff]
        %v333 = vld [vmem:[#allocation2 + $0x20] sm:$0xff]
        %v334 = vld [vmem:[#allocation2 + $0x28] sm:$0xff]
        %v335 = vld [vmem:[#allocation2 + $0x30] sm:$0xff]
        %v336 = vld [vmem:[#allocation2 + $0x38] sm:$0xff]
        %v337 = vld [vmem:[#allocation2 + $0x40] sm:$0xff]
        %v338 = vld [vmem:[#allocation2 + $0x48] sm:$0xff]
        %v339 = vld [vmem:[#allocation2 + $0x50] sm:$0xff]
        %v340 = vld [vmem:[#allocation2 + $0x58] sm:$0xff]
        %v341 = vld [vmem:[%s263] sm:$0xff]
        %v342 = vld [vmem:[%s263 + $0x8] sm:$0xff]
        %v343 = vld [vmem:[%s263 + $0x10] sm:$0xff]
        %v344 = vld [vmem:[%s263 + $0x18] sm:$0xff]
        %v345 = vld [vmem:[%s272] sm:$0xff]
        %v346 = vld [vmem:[%s272 + $0x8] sm:$0xff]
        %v347 = vld [vmem:[%s272 + $0x10] sm:$0xff]
        %v348 = vld [vmem:[%s272 + $0x18] sm:$0xff]
        %v349 = vld [vmem:[%s272 + $0x20] sm:$0xff]
        %v350 = vld [vmem:[%s272 + $0x28] sm:$0xff]
        %v351 = vld [vmem:[%s272 + $0x30] sm:$0xff]
        %v352 = vld [vmem:[%s272 + $0x38] sm:$0xff]
        %v353 = vld [vmem:[%s272 + $0x40] sm:$0xff]
        %v354 = vld [vmem:[%s272 + $0x48] sm:$0xff]
        %v355 = vld [vmem:[%s272 + $0x50] sm:$0xff]
        %v356 = vld [vmem:[%s272 + $0x58] sm:$0xff]
        %v357 = vld [vmem:[%s272 + $0x60] sm:$0xff]
        %v358 = vld [vmem:[%s272 + $0x68] sm:$0xff]
        %v359 = vld [vmem:[%s272 + $0x70] sm:$0xff]
        %v360 = vld [vmem:[%s272 + $0x78] sm:$0xff]
        %v361 = vld [vmem:[%s272 + $0x80] sm:$0xff]
        %v362 = vld [vmem:[%s272 + $0x88] sm:$0xff]
        %v363 = vld [vmem:[%s272 + $0x90] sm:$0xff]
        %v364 = vld [vmem:[%s272 + $0x98] sm:$0xff]
        %v365 = vld [vmem:[%s272 + $0xa0] sm:$0xff]
        %v366 = vld [vmem:[%s272 + $0xa8] sm:$0xff]
        %v367 = vld [vmem:[%s272 + $0xb0] sm:$0xff]
        %v368 = vld [vmem:[%s272 + $0xb8] sm:$0xff]
        %v369 = vld [vmem:[%s272 + $0xc0] sm:$0xff]
        %v370 = vld [vmem:[%s272 + $0xc8] sm:$0xff]
        %v371 = vld [vmem:[%s272 + $0xd0] sm:$0xff]
        %v372 = vld [vmem:[%s272 + $0xd8] sm:$0xff]
        %v373 = vld [vmem:[%s272 + $0xe0] sm:$0xff]
        %v374 = vld [vmem:[%s272 + $0xe8] sm:$0xff]
        %v375 = vld [vmem:[%s272 + $0xf0] sm:$0xff]
        %v376 = vld [vmem:[%s272 + $0xf8] sm:$0xff]
        %v377 = vld [vmem:[%s272 + $0x100] sm:$0xff]
        %v378 = vld [vmem:[%s272 + $0x108] sm:$0xff]
        %v379 = vld [vmem:[%s272 + $0x110] sm:$0xff]
        %v380 = vld [vmem:[%s272 + $0x118] sm:$0xff]
        %v381 = vld [vmem:[%s272 + $0x120] sm:$0xff]
        %v382 = vld [vmem:[%s272 + $0x128] sm:$0xff]
        %v383 = vld [vmem:[%s272 + $0x130] sm:$0xff]
        %v384 = vld [vmem:[%s272 + $0x138] sm:$0xff]
        %v385 = vld [vmem:[%s272 + $0x140] sm:$0xff]
        %v386 = vld [vmem:[%s272 + $0x148] sm:$0xff]
        %v387 = vld [vmem:[%s272 + $0x150] sm:$0xff]
        %v388 = vld [vmem:[%s272 + $0x158] sm:$0xff]
        %v389 = vld [vmem:[%s272 + $0x160] sm:$0xff]
        %v390 = vld [vmem:[%s272 + $0x168] sm:$0xff]
        %v391 = vld [vmem:[%s272 + $0x170] sm:$0xff]
        %v392 = vld [vmem:[%s272 + $0x178] sm:$0xff]
        %v393 = vld [vmem:[%s272 + $0x180] sm:$0xff]
        %v394 = vld [vmem:[%s272 + $0x188] sm:$0xff]
        %v395 = vld [vmem:[%s272 + $0x190] sm:$0xff]
        %v396 = vld [vmem:[%s272 + $0x198] sm:$0xff]
        %v397 = vld [vmem:[%s272 + $0x1a0] sm:$0xff]
        %v398 = vld [vmem:[%s272 + $0x1a8] sm:$0xff]
        %v399 = vld [vmem:[%s272 + $0x1b0] sm:$0xff]
        %v400 = vld [vmem:[%s272 + $0x1b8] sm:$0xff]
        %v401 = vld [vmem:[%s272 + $0x1c0] sm:$0xff]
        %v402 = vld [vmem:[%s272 + $0x1c8] sm:$0xff]
        %v403 = vld [vmem:[%s272 + $0x1d0] sm:$0xff]
        %v404 = vld [vmem:[%s272 + $0x1d8] sm:$0xff]
        %v405 = vld [vmem:[%s272 + $0x1e0] sm:$0xff]
        %v406 = vld [vmem:[%s272 + $0x1e8] sm:$0xff]
        %v407 = vld [vmem:[%s272 + $0x1f0] sm:$0xff]
        %v408 = vld [vmem:[%s272 + $0x1f8] sm:$0xff]
        %v409 = vld [vmem:[%s272 + $0x200] sm:$0xff]
        %v410 = vld [vmem:[%s272 + $0x208] sm:$0xff]
        %v411 = vld [vmem:[%s272 + $0x210] sm:$0xff]
        %v412 = vld [vmem:[%s272 + $0x218] sm:$0xff]
        %v413 = vld [vmem:[%s272 + $0x220] sm:$0xff]
        %v414 = vld [vmem:[%s272 + $0x228] sm:$0xff]
        %v415 = vld [vmem:[%s272 + $0x230] sm:$0xff]
        %v416 = vld [vmem:[%s272 + $0x238] sm:$0xff]
        %v417 = vld [vmem:[%s272 + $0x240] sm:$0xff]
        %v418 = vld [vmem:[%s272 + $0x248] sm:$0xff]
        %v419 = vld [vmem:[%s272 + $0x250] sm:$0xff]
        %v420 = vld [vmem:[%s272 + $0x258] sm:$0xff]
        %v421 = vld [vmem:[%s272 + $0x260] sm:$0xff]
        %v422 = vld [vmem:[%s272 + $0x268] sm:$0xff]
        %v423 = vld [vmem:[%s272 + $0x270] sm:$0xff]
        %v424 = vld [vmem:[%s272 + $0x278] sm:$0xff]
        %v425 = vld [vmem:[%s272 + $0x280] sm:$0xff]
        %v426 = vld [vmem:[%s272 + $0x288] sm:$0xff]
        %v427 = vld [vmem:[%s272 + $0x290] sm:$0xff]
        %v428 = vld [vmem:[%s272 + $0x298] sm:$0xff]
        %v429 = vld [vmem:[%s272 + $0x2a0] sm:$0xff]
        %v430 = vld [vmem:[%s272 + $0x2a8] sm:$0xff]
        %v431 = vld [vmem:[%s272 + $0x2b0] sm:$0xff]
        %v432 = vld [vmem:[%s272 + $0x2b8] sm:$0xff]
        %v433 = vld [vmem:[%s272 + $0x2c0] sm:$0xff]
        %v434 = vld [vmem:[%s272 + $0x2c8] sm:$0xff]
        %v435 = vld [vmem:[%s272 + $0x2d0] sm:$0xff]
        %v436 = vld [vmem:[%s272 + $0x2d8] sm:$0xff]
        %v437 = vld [vmem:[%s272 + $0x2e0] sm:$0xff]
        %v438 = vld [vmem:[%s272 + $0x2e8] sm:$0xff]
        %v439 = vld [vmem:[%s272 + $0x2f0] sm:$0xff]
        %v440 = vld [vmem:[%s272 + $0x2f8] sm:$0xff]
        %v441 = vld [vmem:[%s272 + $0x300] sm:$0xff]
        %v442 = vld [vmem:[%s272 + $0x308] sm:$0xff]
        %v443 = vld [vmem:[%s272 + $0x310] sm:$0xff]
        %v444 = vld [vmem:[%s272 + $0x318] sm:$0xff]
        %v445 = vld [vmem:[%s272 + $0x320] sm:$0xff]
        %v446 = vld [vmem:[%s272 + $0x328] sm:$0xff]
        %v447 = vld [vmem:[%s272 + $0x330] sm:$0xff]
        %v448 = vld [vmem:[%s272 + $0x338] sm:$0xff]
        %v449 = vld [vmem:[%s272 + $0x340] sm:$0xff]
        %v450 = vld [vmem:[%s272 + $0x348] sm:$0xff]
        %v451 = vld [vmem:[%s272 + $0x350] sm:$0xff]
        %v452 = vld [vmem:[%s272 + $0x358] sm:$0xff]
        %v453 = vld [vmem:[%s272 + $0x360] sm:$0xff]
        %v454 = vld [vmem:[%s272 + $0x368] sm:$0xff]
        %v455 = vld [vmem:[%s272 + $0x370] sm:$0xff]
        %v456 = vld [vmem:[%s272 + $0x378] sm:$0xff]
        %v457 = vld [vmem:[%s272 + $0x380] sm:$0xff]
        %v458 = vld [vmem:[%s272 + $0x388] sm:$0xff]
        %v459 = vld [vmem:[%s272 + $0x390] sm:$0xff]
        %v460 = vld [vmem:[%s272 + $0x398] sm:$0xff]
        %v461 = vld [vmem:[%s272 + $0x3a0] sm:$0xff]
        %v462 = vld [vmem:[%s272 + $0x3a8] sm:$0xff]
        %v463 = vld [vmem:[%s272 + $0x3b0] sm:$0xff]
        %v464 = vld [vmem:[%s272 + $0x3b8] sm:$0xff]
        %v465 = vld [vmem:[%s272 + $0x3c0] sm:$0xff]
        %v466 = vld [vmem:[%s272 + $0x3c8] sm:$0xff]
        %v467 = vld [vmem:[%s272 + $0x3d0] sm:$0xff]
        %v468 = vld [vmem:[%s272 + $0x3d8] sm:$0xff]
        %v469 = vld [vmem:[%s272 + $0x3e0] sm:$0xff]
        %v470 = vld [vmem:[%s272 + $0x3e8] sm:$0xff]
        %v471 = vld [vmem:[%s272 + $0x3f0] sm:$0xff]
        %v472 = vld [vmem:[%s272 + $0x3f8] sm:$0xff]
        %v473 = vld [vmem:[%s272 + $0x400] sm:$0xff]
        %v474 = vld [vmem:[%s272 + $0x408] sm:$0xff]
        %v475 = vld [vmem:[%s272 + $0x410] sm:$0xff]
        %v476 = vld [vmem:[%s272 + $0x418] sm:$0xff]
        %v477 = vld [vmem:[%s272 + $0x420] sm:$0xff]
        %v478 = vld [vmem:[%s272 + $0x428] sm:$0xff]
        %v479 = vld [vmem:[%s272 + $0x430] sm:$0xff]
        %v480 = vld [vmem:[%s272 + $0x438] sm:$0xff]
        %v481 = vld [vmem:[%s272 + $0x440] sm:$0xff]
        %v482 = vld [vmem:[%s272 + $0x448] sm:$0xff]
        %v483 = vld [vmem:[%s272 + $0x450] sm:$0xff]
        %v484 = vld [vmem:[%s272 + $0x458] sm:$0xff]
        %v485 = vld [vmem:[%s272 + $0x460] sm:$0xff]
        %v486 = vld [vmem:[%s272 + $0x468] sm:$0xff]
        %v487 = vld [vmem:[%s272 + $0x470] sm:$0xff]
        %v488 = vld [vmem:[%s272 + $0x478] sm:$0xff]
        %v489 = vld [vmem:[%s272 + $0x480] sm:$0xff]
        %v490 = vld [vmem:[%s272 + $0x488] sm:$0xff]
        %v491 = vld [vmem:[%s272 + $0x490] sm:$0xff]
        %v492 = vld [vmem:[%s272 + $0x498] sm:$0xff]
        %v493 = vld [vmem:[%s272 + $0x4a0] sm:$0xff]
        %v494 = vld [vmem:[%s272 + $0x4a8] sm:$0xff]
        %v495 = vld [vmem:[%s272 + $0x4b0] sm:$0xff]
        %v496 = vld [vmem:[%s272 + $0x4b8] sm:$0xff]
        %v497 = vld [vmem:[%s272 + $0x4c0] sm:$0xff]
        %v498 = vld [vmem:[%s272 + $0x4c8] sm:$0xff]
        %v499 = vld [vmem:[%s272 + $0x4d0] sm:$0xff]
        %v500 = vld [vmem:[%s272 + $0x4d8] sm:$0xff]
        %v501 = vld [vmem:[%s272 + $0x4e0] sm:$0xff]
        %v502 = vld [vmem:[%s272 + $0x4e8] sm:$0xff]
        %v503 = vld [vmem:[%s272 + $0x4f0] sm:$0xff]
        %v504 = vld [vmem:[%s272 + $0x4f8] sm:$0xff]
        %v505 = vld [vmem:[%s272 + $0x500] sm:$0xff]
        %v506 = vld [vmem:[%s272 + $0x508] sm:$0xff]
        %v507 = vld [vmem:[%s272 + $0x510] sm:$0xff]
        %v508 = vld [vmem:[%s272 + $0x518] sm:$0xff]
        %v509 = vld [vmem:[%s272 + $0x520] sm:$0xff]
        %v510 = vld [vmem:[%s272 + $0x528] sm:$0xff]
        %v511 = vld [vmem:[%s272 + $0x530] sm:$0xff]
        %v512 = vld [vmem:[%s272 + $0x538] sm:$0xff]
        %v513 = vld [vmem:[%s272 + $0x540] sm:$0xff]
        %v514 = vld [vmem:[%s272 + $0x548] sm:$0xff]
        %v515 = vld [vmem:[%s272 + $0x550] sm:$0xff]
        %v516 = vld [vmem:[%s272 + $0x558] sm:$0xff]
        %v517 = vld [vmem:[%s272 + $0x560] sm:$0xff]
        %v518 = vld [vmem:[%s272 + $0x568] sm:$0xff]
        %v519 = vld [vmem:[%s272 + $0x570] sm:$0xff]
        %v520 = vld [vmem:[%s272 + $0x578] sm:$0xff]
        %v521 = vld [vmem:[%s272 + $0x580] sm:$0xff]
        %v522 = vld [vmem:[%s272 + $0x588] sm:$0xff]
        %v523 = vld [vmem:[%s272 + $0x590] sm:$0xff]
        %v524 = vld [vmem:[%s272 + $0x598] sm:$0xff]
        %v525 = vld [vmem:[%s272 + $0x5a0] sm:$0xff]
        %v526 = vld [vmem:[%s272 + $0x5a8] sm:$0xff]
        %v527 = vld [vmem:[%s272 + $0x5b0] sm:$0xff]
        %v528 = vld [vmem:[%s272 + $0x5b8] sm:$0xff]
        %v529 = vld [vmem:[%s272 + $0x5c0] sm:$0xff]
        %v530 = vld [vmem:[%s272 + $0x5c8] sm:$0xff]
        %v531 = vld [vmem:[%s272 + $0x5d0] sm:$0xff]
        %v532 = vld [vmem:[%s272 + $0x5d8] sm:$0xff]
        %v533 = vld [vmem:[%s272 + $0x5e0] sm:$0xff]
        %v534 = vld [vmem:[%s272 + $0x5e8] sm:$0xff]
        %v535 = vld [vmem:[%s272 + $0x5f0] sm:$0xff]
        %v536 = vld [vmem:[%s272 + $0x5f8] sm:$0xff]
        %v541 = vunpack.c.l.b16 %v341
        %v542 = vunpack.c.h.b16 %v341
        %v543 = vunpack.c.l.b16 %v342
        %v544 = vunpack.c.h.b16 %v342
        %v545 = vunpack.c.l.b16 %v343
        %v546 = vunpack.c.h.b16 %v343
        %v547 = vunpack.c.l.b16 %v344
        %v548 = vunpack.c.h.b16 %v344
        %v549 = vpack.c.b16 %v545, %v541
        %v550 = vpack.c.b16 %v546, %v542
        %v551 = vpack.c.b16 %v547, %v543
        %v552 = vpack.c.b16 %v548, %v544
        %v749 = vunpack.c.l.b16 %v345
        %v750 = vunpack.c.h.b16 %v345
        %v751 = vunpack.c.l.b16 %v346
        %v752 = vunpack.c.h.b16 %v346
        %v753 = vunpack.c.l.b16 %v347
        %v754 = vunpack.c.h.b16 %v347
        %v755 = vunpack.c.l.b16 %v348
        %v756 = vunpack.c.h.b16 %v348
        %v757 = vunpack.c.l.b16 %v349
        %v758 = vunpack.c.h.b16 %v349
        %v759 = vunpack.c.l.b16 %v350
        %v760 = vunpack.c.h.b16 %v350
        %v761 = vunpack.c.l.b16 %v351
        %v762 = vunpack.c.h.b16 %v351
        %v763 = vunpack.c.l.b16 %v352
        %v764 = vunpack.c.h.b16 %v352
        %v765 = vunpack.c.l.b16 %v353
        %v766 = vunpack.c.h.b16 %v353
        %v767 = vunpack.c.l.b16 %v354
        %v768 = vunpack.c.h.b16 %v354
        %v769 = vunpack.c.l.b16 %v355
        %v770 = vunpack.c.h.b16 %v355
        %v771 = vunpack.c.l.b16 %v356
        %v772 = vunpack.c.h.b16 %v356
        %v773 = vunpack.c.l.b16 %v357
        %v774 = vunpack.c.h.b16 %v357
        %v775 = vunpack.c.l.b16 %v358
        %v776 = vunpack.c.h.b16 %v358
        %v777 = vunpack.c.l.b16 %v359
        %v778 = vunpack.c.h.b16 %v359
        %v779 = vunpack.c.l.b16 %v360
        %v780 = vunpack.c.h.b16 %v360
        %v781 = vunpack.c.l.b16 %v361
        %v782 = vunpack.c.h.b16 %v361
        %v783 = vunpack.c.l.b16 %v362
        %v784 = vunpack.c.h.b16 %v362
        %v785 = vunpack.c.l.b16 %v363
        %v786 = vunpack.c.h.b16 %v363
        %v787 = vunpack.c.l.b16 %v364
        %v788 = vunpack.c.h.b16 %v364
        %v789 = vunpack.c.l.b16 %v365
        %v790 = vunpack.c.h.b16 %v365
        %v791 = vunpack.c.l.b16 %v366
        %v792 = vunpack.c.h.b16 %v366
        %v793 = vunpack.c.l.b16 %v367
        %v794 = vunpack.c.h.b16 %v367
        %v795 = vunpack.c.l.b16 %v368
        %v796 = vunpack.c.h.b16 %v368
        %v797 = vunpack.c.l.b16 %v369
        %v798 = vunpack.c.h.b16 %v369
        %v799 = vunpack.c.l.b16 %v370
        %v800 = vunpack.c.h.b16 %v370
        %v801 = vunpack.c.l.b16 %v371
        %v802 = vunpack.c.h.b16 %v371
        %v803 = vunpack.c.l.b16 %v372
        %v804 = vunpack.c.h.b16 %v372
        %v805 = vunpack.c.l.b16 %v373
        %v806 = vunpack.c.h.b16 %v373
        %v807 = vunpack.c.l.b16 %v374
        %v808 = vunpack.c.h.b16 %v374
        %v809 = vunpack.c.l.b16 %v375
        %v810 = vunpack.c.h.b16 %v375
        %v811 = vunpack.c.l.b16 %v376
        %v812 = vunpack.c.h.b16 %v376
        %v813 = vunpack.c.l.b16 %v377
        %v814 = vunpack.c.h.b16 %v377
        %v815 = vunpack.c.l.b16 %v378
        %v816 = vunpack.c.h.b16 %v378
        %v817 = vunpack.c.l.b16 %v379
        %v818 = vunpack.c.h.b16 %v379
        %v819 = vunpack.c.l.b16 %v380
        %v820 = vunpack.c.h.b16 %v380
        %v821 = vunpack.c.l.b16 %v381
        %v822 = vunpack.c.h.b16 %v381
        %v823 = vunpack.c.l.b16 %v382
        %v824 = vunpack.c.h.b16 %v382
        %v825 = vunpack.c.l.b16 %v383
        %v826 = vunpack.c.h.b16 %v383
        %v827 = vunpack.c.l.b16 %v384
        %v828 = vunpack.c.h.b16 %v384
        %v829 = vunpack.c.l.b16 %v385
        %v830 = vunpack.c.h.b16 %v385
        %v831 = vunpack.c.l.b16 %v386
        %v832 = vunpack.c.h.b16 %v386
        %v833 = vunpack.c.l.b16 %v387
        %v834 = vunpack.c.h.b16 %v387
        %v835 = vunpack.c.l.b16 %v388
        %v836 = vunpack.c.h.b16 %v388
        %v837 = vunpack.c.l.b16 %v389
        %v838 = vunpack.c.h.b16 %v389
        %v839 = vunpack.c.l.b16 %v390
        %v840 = vunpack.c.h.b16 %v390
        %v841 = vunpack.c.l.b16 %v391
        %v842 = vunpack.c.h.b16 %v391
        %v843 = vunpack.c.l.b16 %v392
        %v844 = vunpack.c.h.b16 %v392
        %v845 = vunpack.c.l.b16 %v393
        %v846 = vunpack.c.h.b16 %v393
        %v847 = vunpack.c.l.b16 %v394
        %v848 = vunpack.c.h.b16 %v394
        %v849 = vunpack.c.l.b16 %v395
        %v850 = vunpack.c.h.b16 %v395
        %v851 = vunpack.c.l.b16 %v396
        %v852 = vunpack.c.h.b16 %v396
        %v853 = vunpack.c.l.b16 %v397
        %v854 = vunpack.c.h.b16 %v397
        %v855 = vunpack.c.l.b16 %v398
        %v856 = vunpack.c.h.b16 %v398
        %v857 = vunpack.c.l.b16 %v399
        %v858 = vunpack.c.h.b16 %v399
        %v859 = vunpack.c.l.b16 %v400
        %v860 = vunpack.c.h.b16 %v400
        %v861 = vunpack.c.l.b16 %v401
        %v862 = vunpack.c.h.b16 %v401
        %v863 = vunpack.c.l.b16 %v402
        %v864 = vunpack.c.h.b16 %v402
        %v865 = vunpack.c.l.b16 %v403
        %v866 = vunpack.c.h.b16 %v403
        %v867 = vunpack.c.l.b16 %v404
        %v868 = vunpack.c.h.b16 %v404
        %v869 = vunpack.c.l.b16 %v405
        %v870 = vunpack.c.h.b16 %v405
        %v871 = vunpack.c.l.b16 %v406
        %v872 = vunpack.c.h.b16 %v406
        %v873 = vunpack.c.l.b16 %v407
        %v874 = vunpack.c.h.b16 %v407
        %v875 = vunpack.c.l.b16 %v408
        %v876 = vunpack.c.h.b16 %v408
        %v877 = vunpack.c.l.b16 %v409
        %v878 = vunpack.c.h.b16 %v409
        %v879 = vunpack.c.l.b16 %v410
        %v880 = vunpack.c.h.b16 %v410
        %v881 = vunpack.c.l.b16 %v411
        %v882 = vunpack.c.h.b16 %v411
        %v883 = vunpack.c.l.b16 %v412
        %v884 = vunpack.c.h.b16 %v412
        %v885 = vunpack.c.l.b16 %v413
        %v886 = vunpack.c.h.b16 %v413
        %v887 = vunpack.c.l.b16 %v414
        %v888 = vunpack.c.h.b16 %v414
        %v889 = vunpack.c.l.b16 %v415
        %v890 = vunpack.c.h.b16 %v415
        %v891 = vunpack.c.l.b16 %v416
        %v892 = vunpack.c.h.b16 %v416
        %v893 = vunpack.c.l.b16 %v417
        %v894 = vunpack.c.h.b16 %v417
        %v895 = vunpack.c.l.b16 %v418
        %v896 = vunpack.c.h.b16 %v418
        %v897 = vunpack.c.l.b16 %v419
        %v898 = vunpack.c.h.b16 %v419
        %v899 = vunpack.c.l.b16 %v420
        %v900 = vunpack.c.h.b16 %v420
        %v901 = vunpack.c.l.b16 %v421
        %v902 = vunpack.c.h.b16 %v421
        %v903 = vunpack.c.l.b16 %v422
        %v904 = vunpack.c.h.b16 %v422
        %v905 = vunpack.c.l.b16 %v423
        %v906 = vunpack.c.h.b16 %v423
        %v907 = vunpack.c.l.b16 %v424
        %v908 = vunpack.c.h.b16 %v424
        %v909 = vunpack.c.l.b16 %v425
        %v910 = vunpack.c.h.b16 %v425
        %v911 = vunpack.c.l.b16 %v426
        %v912 = vunpack.c.h.b16 %v426
        %v913 = vunpack.c.l.b16 %v427
        %v914 = vunpack.c.h.b16 %v427
        %v915 = vunpack.c.l.b16 %v428
        %v916 = vunpack.c.h.b16 %v428
        %v917 = vunpack.c.l.b16 %v429
        %v918 = vunpack.c.h.b16 %v429
        %v919 = vunpack.c.l.b16 %v430
        %v920 = vunpack.c.h.b16 %v430
        %v921 = vunpack.c.l.b16 %v431
        %v922 = vunpack.c.h.b16 %v431
        %v923 = vunpack.c.l.b16 %v432
        %v924 = vunpack.c.h.b16 %v432
        %v925 = vunpack.c.l.b16 %v433
        %v926 = vunpack.c.h.b16 %v433
        %v927 = vunpack.c.l.b16 %v434
        %v928 = vunpack.c.h.b16 %v434
        %v929 = vunpack.c.l.b16 %v435
        %v930 = vunpack.c.h.b16 %v435
        %v931 = vunpack.c.l.b16 %v436
        %v932 = vunpack.c.h.b16 %v436
        %v933 = vunpack.c.l.b16 %v437
        %v934 = vunpack.c.h.b16 %v437
        %v935 = vunpack.c.l.b16 %v438
        %v936 = vunpack.c.h.b16 %v438
        %v937 = vunpack.c.l.b16 %v439
        %v938 = vunpack.c.h.b16 %v439
        %v939 = vunpack.c.l.b16 %v440
        %v940 = vunpack.c.h.b16 %v440
        %v941 = vunpack.c.l.b16 %v441
        %v942 = vunpack.c.h.b16 %v441
        %v943 = vunpack.c.l.b16 %v442
        %v944 = vunpack.c.h.b16 %v442
        %v945 = vunpack.c.l.b16 %v443
        %v946 = vunpack.c.h.b16 %v443
        %v947 = vunpack.c.l.b16 %v444
        %v948 = vunpack.c.h.b16 %v444
        %v949 = vunpack.c.l.b16 %v445
        %v950 = vunpack.c.h.b16 %v445
        %v951 = vunpack.c.l.b16 %v446
        %v952 = vunpack.c.h.b16 %v446
        %v953 = vunpack.c.l.b16 %v447
        %v954 = vunpack.c.h.b16 %v447
        %v955 = vunpack.c.l.b16 %v448
        %v956 = vunpack.c.h.b16 %v448
        %v957 = vunpack.c.l.b16 %v449
        %v958 = vunpack.c.h.b16 %v449
        %v959 = vunpack.c.l.b16 %v450
        %v960 = vunpack.c.h.b16 %v450
        %v961 = vunpack.c.l.b16 %v451
        %v962 = vunpack.c.h.b16 %v451
        %v963 = vunpack.c.l.b16 %v452
        %v964 = vunpack.c.h.b16 %v452
        %v965 = vunpack.c.l.b16 %v453
        %v966 = vunpack.c.h.b16 %v453
        %v967 = vunpack.c.l.b16 %v454
        %v968 = vunpack.c.h.b16 %v454
        %v969 = vunpack.c.l.b16 %v455
        %v970 = vunpack.c.h.b16 %v455
        %v971 = vunpack.c.l.b16 %v456
        %v972 = vunpack.c.h.b16 %v456
        %v973 = vunpack.c.l.b16 %v457
        %v974 = vunpack.c.h.b16 %v457
        %v975 = vunpack.c.l.b16 %v458
        %v976 = vunpack.c.h.b16 %v458
        %v977 = vunpack.c.l.b16 %v459
        %v978 = vunpack.c.h.b16 %v459
        %v979 = vunpack.c.l.b16 %v460
        %v980 = vunpack.c.h.b16 %v460
        %v981 = vunpack.c.l.b16 %v461
        %v982 = vunpack.c.h.b16 %v461
        %v983 = vunpack.c.l.b16 %v462
        %v984 = vunpack.c.h.b16 %v462
        %v985 = vunpack.c.l.b16 %v463
        %v986 = vunpack.c.h.b16 %v463
        %v987 = vunpack.c.l.b16 %v464
        %v988 = vunpack.c.h.b16 %v464
        %v989 = vunpack.c.l.b16 %v465
        %v990 = vunpack.c.h.b16 %v465
        %v991 = vunpack.c.l.b16 %v466
        %v992 = vunpack.c.h.b16 %v466
        %v993 = vunpack.c.l.b16 %v467
        %v994 = vunpack.c.h.b16 %v467
        %v995 = vunpack.c.l.b16 %v468
        %v996 = vunpack.c.h.b16 %v468
        %v997 = vunpack.c.l.b16 %v469
        %v998 = vunpack.c.h.b16 %v469
        %v999 = vunpack.c.l.b16 %v470
        %v1000 = vunpack.c.h.b16 %v470
        %v1001 = vunpack.c.l.b16 %v471
        %v1002 = vunpack.c.h.b16 %v471
        %v1003 = vunpack.c.l.b16 %v472
        %v1004 = vunpack.c.h.b16 %v472
        %v1005 = vunpack.c.l.b16 %v473
        %v1006 = vunpack.c.h.b16 %v473
        %v1007 = vunpack.c.l.b16 %v474
        %v1008 = vunpack.c.h.b16 %v474
        %v1009 = vunpack.c.l.b16 %v475
        %v1010 = vunpack.c.h.b16 %v475
        %v1011 = vunpack.c.l.b16 %v476
        %v1012 = vunpack.c.h.b16 %v476
        %v1013 = vunpack.c.l.b16 %v477
        %v1014 = vunpack.c.h.b16 %v477
        %v1015 = vunpack.c.l.b16 %v478
        %v1016 = vunpack.c.h.b16 %v478
        %v1017 = vunpack.c.l.b16 %v479
        %v1018 = vunpack.c.h.b16 %v479
        %v1019 = vunpack.c.l.b16 %v480
        %v1020 = vunpack.c.h.b16 %v480
        %v1021 = vunpack.c.l.b16 %v481
        %v1022 = vunpack.c.h.b16 %v481
        %v1023 = vunpack.c.l.b16 %v482
        %v1024 = vunpack.c.h.b16 %v482
        %v1025 = vunpack.c.l.b16 %v483
        %v1026 = vunpack.c.h.b16 %v483
        %v1027 = vunpack.c.l.b16 %v484
        %v1028 = vunpack.c.h.b16 %v484
        %v1029 = vunpack.c.l.b16 %v485
        %v1030 = vunpack.c.h.b16 %v485
        %v1031 = vunpack.c.l.b16 %v486
        %v1032 = vunpack.c.h.b16 %v486
        %v1033 = vunpack.c.l.b16 %v487
        %v1034 = vunpack.c.h.b16 %v487
        %v1035 = vunpack.c.l.b16 %v488
        %v1036 = vunpack.c.h.b16 %v488
        %v1037 = vunpack.c.l.b16 %v489
        %v1038 = vunpack.c.h.b16 %v489
        %v1039 = vunpack.c.l.b16 %v490
        %v1040 = vunpack.c.h.b16 %v490
        %v1041 = vunpack.c.l.b16 %v491
        %v1042 = vunpack.c.h.b16 %v491
        %v1043 = vunpack.c.l.b16 %v492
        %v1044 = vunpack.c.h.b16 %v492
        %v1045 = vunpack.c.l.b16 %v493
        %v1046 = vunpack.c.h.b16 %v493
        %v1047 = vunpack.c.l.b16 %v494
        %v1048 = vunpack.c.h.b16 %v494
        %v1049 = vunpack.c.l.b16 %v495
        %v1050 = vunpack.c.h.b16 %v495
        %v1051 = vunpack.c.l.b16 %v496
        %v1052 = vunpack.c.h.b16 %v496
        %v1053 = vunpack.c.l.b16 %v497
        %v1054 = vunpack.c.h.b16 %v497
        %v1055 = vunpack.c.l.b16 %v498
        %v1056 = vunpack.c.h.b16 %v498
        %v1057 = vunpack.c.l.b16 %v499
        %v1058 = vunpack.c.h.b16 %v499
        %v1059 = vunpack.c.l.b16 %v500
        %v1060 = vunpack.c.h.b16 %v500
        %v1061 = vunpack.c.l.b16 %v501
        %v1062 = vunpack.c.h.b16 %v501
        %v1063 = vunpack.c.l.b16 %v502
        %v1064 = vunpack.c.h.b16 %v502
        %v1065 = vunpack.c.l.b16 %v503
        %v1066 = vunpack.c.h.b16 %v503
        %v1067 = vunpack.c.l.b16 %v504
        %v1068 = vunpack.c.h.b16 %v504
        %v1069 = vunpack.c.l.b16 %v505
        %v1070 = vunpack.c.h.b16 %v505
        %v1071 = vunpack.c.l.b16 %v506
        %v1072 = vunpack.c.h.b16 %v506
        %v1073 = vunpack.c.l.b16 %v507
        %v1074 = vunpack.c.h.b16 %v507
        %v1075 = vunpack.c.l.b16 %v508
        %v1076 = vunpack.c.h.b16 %v508
        %v1077 = vunpack.c.l.b16 %v509
        %v1078 = vunpack.c.h.b16 %v509
        %v1079 = vunpack.c.l.b16 %v510
        %v1080 = vunpack.c.h.b16 %v510
        %v1081 = vunpack.c.l.b16 %v511
        %v1082 = vunpack.c.h.b16 %v511
        %v1083 = vunpack.c.l.b16 %v512
        %v1084 = vunpack.c.h.b16 %v512
        %v1085 = vunpack.c.l.b16 %v513
        %v1086 = vunpack.c.h.b16 %v513
        %v1087 = vunpack.c.l.b16 %v514
        %v1088 = vunpack.c.h.b16 %v514
        %v1089 = vunpack.c.l.b16 %v515
        %v1090 = vunpack.c.h.b16 %v515
        %v1091 = vunpack.c.l.b16 %v516
        %v1092 = vunpack.c.h.b16 %v516
        %v1093 = vunpack.c.l.b16 %v517
        %v1094 = vunpack.c.h.b16 %v517
        %v1095 = vunpack.c.l.b16 %v518
        %v1096 = vunpack.c.h.b16 %v518
        %v1097 = vunpack.c.l.b16 %v519
        %v1098 = vunpack.c.h.b16 %v519
        %v1099 = vunpack.c.l.b16 %v520
        %v1100 = vunpack.c.h.b16 %v520
        %v1101 = vunpack.c.l.b16 %v521
        %v1102 = vunpack.c.h.b16 %v521
        %v1103 = vunpack.c.l.b16 %v522
        %v1104 = vunpack.c.h.b16 %v522
        %v1105 = vunpack.c.l.b16 %v523
        %v1106 = vunpack.c.h.b16 %v523
        %v1107 = vunpack.c.l.b16 %v524
        %v1108 = vunpack.c.h.b16 %v524
        %v1109 = vunpack.c.l.b16 %v525
        %v1110 = vunpack.c.h.b16 %v525
        %v1111 = vunpack.c.l.b16 %v526
        %v1112 = vunpack.c.h.b16 %v526
        %v1113 = vunpack.c.l.b16 %v527
        %v1114 = vunpack.c.h.b16 %v527
        %v1115 = vunpack.c.l.b16 %v528
        %v1116 = vunpack.c.h.b16 %v528
        %v1117 = vunpack.c.l.b16 %v529
        %v1118 = vunpack.c.h.b16 %v529
        %v1119 = vunpack.c.l.b16 %v530
        %v1120 = vunpack.c.h.b16 %v530
        %v1121 = vunpack.c.l.b16 %v531
        %v1122 = vunpack.c.h.b16 %v531
        %v1123 = vunpack.c.l.b16 %v532
        %v1124 = vunpack.c.h.b16 %v532
        %v1125 = vunpack.c.l.b16 %v533
        %v1126 = vunpack.c.h.b16 %v533
        %v1127 = vunpack.c.l.b16 %v534
        %v1128 = vunpack.c.h.b16 %v534
        %v1129 = vunpack.c.l.b16 %v535
        %v1130 = vunpack.c.h.b16 %v535
        %v1131 = vunpack.c.l.b16 %v536
        %v1132 = vunpack.c.h.b16 %v536
        %v1133 = vpack.c.b16 %v755, %v749
        %v1134 = vpack.c.b16 %v756, %v750
        %v1135 = vpack.c.b16 %v757, %v751
        %v1136 = vpack.c.b16 %v758, %v752
        %v1137 = vpack.c.b16 %v759, %v753
        %v1138 = vpack.c.b16 %v760, %v754
        %v1139 = vpack.c.b16 %v767, %v761
        %v1140 = vpack.c.b16 %v768, %v762
        %v1141 = vpack.c.b16 %v769, %v763
        %v1142 = vpack.c.b16 %v770, %v764
        %v1143 = vpack.c.b16 %v771, %v765
        %v1144 = vpack.c.b16 %v772, %v766
        %v1145 = vpack.c.b16 %v779, %v773
        %v1146 = vpack.c.b16 %v780, %v774
        %v1147 = vpack.c.b16 %v781, %v775
        %v1148 = vpack.c.b16 %v782, %v776
        %v1149 = vpack.c.b16 %v783, %v777
        %v1150 = vpack.c.b16 %v784, %v778
        %v1151 = vpack.c.b16 %v791, %v785
        %v1152 = vpack.c.b16 %v792, %v786
        %v1153 = vpack.c.b16 %v793, %v787
        %v1154 = vpack.c.b16 %v794, %v788
        %v1155 = vpack.c.b16 %v795, %v789
        %v1156 = vpack.c.b16 %v796, %v790
        %v1157 = vpack.c.b16 %v803, %v797
        %v1158 = vpack.c.b16 %v804, %v798
        %v1159 = vpack.c.b16 %v805, %v799
        %v1160 = vpack.c.b16 %v806, %v800
        %v1161 = vpack.c.b16 %v807, %v801
        %v1162 = vpack.c.b16 %v808, %v802
        %v1163 = vpack.c.b16 %v815, %v809
        %v1164 = vpack.c.b16 %v816, %v810
        %v1165 = vpack.c.b16 %v817, %v811
        %v1166 = vpack.c.b16 %v818, %v812
        %v1167 = vpack.c.b16 %v819, %v813
        %v1168 = vpack.c.b16 %v820, %v814
        %v1169 = vpack.c.b16 %v827, %v821
        %v1170 = vpack.c.b16 %v828, %v822
        %v1171 = vpack.c.b16 %v829, %v823
        %v1172 = vpack.c.b16 %v830, %v824
        %v1173 = vpack.c.b16 %v831, %v825
        %v1174 = vpack.c.b16 %v832, %v826
        %v1175 = vpack.c.b16 %v839, %v833
        %v1176 = vpack.c.b16 %v840, %v834
        %v1177 = vpack.c.b16 %v841, %v835
        %v1178 = vpack.c.b16 %v842, %v836
        %v1179 = vpack.c.b16 %v843, %v837
        %v1180 = vpack.c.b16 %v844, %v838
        %v1181 = vpack.c.b16 %v851, %v845
        %v1182 = vpack.c.b16 %v852, %v846
        %v1183 = vpack.c.b16 %v853, %v847
        %v1184 = vpack.c.b16 %v854, %v848
        %v1185 = vpack.c.b16 %v855, %v849
        %v1186 = vpack.c.b16 %v856, %v850
        %v1187 = vpack.c.b16 %v863, %v857
        %v1188 = vpack.c.b16 %v864, %v858
        %v1189 = vpack.c.b16 %v865, %v859
        %v1190 = vpack.c.b16 %v866, %v860
        %v1191 = vpack.c.b16 %v867, %v861
        %v1192 = vpack.c.b16 %v868, %v862
        %v1193 = vpack.c.b16 %v875, %v869
        %v1194 = vpack.c.b16 %v876, %v870
        %v1195 = vpack.c.b16 %v877, %v871
        %v1196 = vpack.c.b16 %v878, %v872
        %v1197 = vpack.c.b16 %v879, %v873
        %v1198 = vpack.c.b16 %v880, %v874
        %v1199 = vpack.c.b16 %v887, %v881
        %v1200 = vpack.c.b16 %v888, %v882
        %v1201 = vpack.c.b16 %v889, %v883
        %v1202 = vpack.c.b16 %v890, %v884
        %v1203 = vpack.c.b16 %v891, %v885
        %v1204 = vpack.c.b16 %v892, %v886
        %v1205 = vpack.c.b16 %v899, %v893
        %v1206 = vpack.c.b16 %v900, %v894
        %v1207 = vpack.c.b16 %v901, %v895
        %v1208 = vpack.c.b16 %v902, %v896
        %v1209 = vpack.c.b16 %v903, %v897
        %v1210 = vpack.c.b16 %v904, %v898
        %v1211 = vpack.c.b16 %v911, %v905
        %v1212 = vpack.c.b16 %v912, %v906
        %v1213 = vpack.c.b16 %v913, %v907
        %v1214 = vpack.c.b16 %v914, %v908
        %v1215 = vpack.c.b16 %v915, %v909
        %v1216 = vpack.c.b16 %v916, %v910
        %v1217 = vpack.c.b16 %v923, %v917
        %v1218 = vpack.c.b16 %v924, %v918
        %v1219 = vpack.c.b16 %v925, %v919
        %v1220 = vpack.c.b16 %v926, %v920
        %v1221 = vpack.c.b16 %v927, %v921
        %v1222 = vpack.c.b16 %v928, %v922
        %v1223 = vpack.c.b16 %v935, %v929
        %v1224 = vpack.c.b16 %v936, %v930
        %v1225 = vpack.c.b16 %v937, %v931
        %v1226 = vpack.c.b16 %v938, %v932
        %v1227 = vpack.c.b16 %v939, %v933
        %v1228 = vpack.c.b16 %v940, %v934
        %v1229 = vpack.c.b16 %v947, %v941
        %v1230 = vpack.c.b16 %v948, %v942
        %v1231 = vpack.c.b16 %v949, %v943
        %v1232 = vpack.c.b16 %v950, %v944
        %v1233 = vpack.c.b16 %v951, %v945
        %v1234 = vpack.c.b16 %v952, %v946
        %v1235 = vpack.c.b16 %v959, %v953
        %v1236 = vpack.c.b16 %v960, %v954
        %v1237 = vpack.c.b16 %v961, %v955
        %v1238 = vpack.c.b16 %v962, %v956
        %v1239 = vpack.c.b16 %v963, %v957
        %v1240 = vpack.c.b16 %v964, %v958
        %v1241 = vpack.c.b16 %v971, %v965
        %v1242 = vpack.c.b16 %v972, %v966
        %v1243 = vpack.c.b16 %v973, %v967
        %v1244 = vpack.c.b16 %v974, %v968
        %v1245 = vpack.c.b16 %v975, %v969
        %v1246 = vpack.c.b16 %v976, %v970
        %v1247 = vpack.c.b16 %v983, %v977
        %v1248 = vpack.c.b16 %v984, %v978
        %v1249 = vpack.c.b16 %v985, %v979
        %v1250 = vpack.c.b16 %v986, %v980
        %v1251 = vpack.c.b16 %v987, %v981
        %v1252 = vpack.c.b16 %v988, %v982
        %v1253 = vpack.c.b16 %v995, %v989
        %v1254 = vpack.c.b16 %v996, %v990
        %v1255 = vpack.c.b16 %v997, %v991
        %v1256 = vpack.c.b16 %v998, %v992
        %v1257 = vpack.c.b16 %v999, %v993
        %v1258 = vpack.c.b16 %v1000, %v994
        %v1259 = vpack.c.b16 %v1007, %v1001
        %v1260 = vpack.c.b16 %v1008, %v1002
        %v1261 = vpack.c.b16 %v1009, %v1003
        %v1262 = vpack.c.b16 %v1010, %v1004
        %v1263 = vpack.c.b16 %v1011, %v1005
        %v1264 = vpack.c.b16 %v1012, %v1006
        %v1265 = vpack.c.b16 %v1019, %v1013
        %v1266 = vpack.c.b16 %v1020, %v1014
        %v1267 = vpack.c.b16 %v1021, %v1015
        %v1268 = vpack.c.b16 %v1022, %v1016
        %v1269 = vpack.c.b16 %v1023, %v1017
        %v1270 = vpack.c.b16 %v1024, %v1018
        %v1271 = vpack.c.b16 %v1031, %v1025
        %v1272 = vpack.c.b16 %v1032, %v1026
        %v1273 = vpack.c.b16 %v1033, %v1027
        %v1274 = vpack.c.b16 %v1034, %v1028
        %v1275 = vpack.c.b16 %v1035, %v1029
        %v1276 = vpack.c.b16 %v1036, %v1030
        %v1277 = vpack.c.b16 %v1043, %v1037
        %v1278 = vpack.c.b16 %v1044, %v1038
        %v1279 = vpack.c.b16 %v1045, %v1039
        %v1280 = vpack.c.b16 %v1046, %v1040
        %v1281 = vpack.c.b16 %v1047, %v1041
        %v1282 = vpack.c.b16 %v1048, %v1042
        %v1283 = vpack.c.b16 %v1055, %v1049
        %v1284 = vpack.c.b16 %v1056, %v1050
        %v1285 = vpack.c.b16 %v1057, %v1051
        %v1286 = vpack.c.b16 %v1058, %v1052
        %v1287 = vpack.c.b16 %v1059, %v1053
        %v1288 = vpack.c.b16 %v1060, %v1054
        %v1289 = vpack.c.b16 %v1067, %v1061
        %v1290 = vpack.c.b16 %v1068, %v1062
        %v1291 = vpack.c.b16 %v1069, %v1063
        %v1292 = vpack.c.b16 %v1070, %v1064
        %v1293 = vpack.c.b16 %v1071, %v1065
        %v1294 = vpack.c.b16 %v1072, %v1066
        %v1295 = vpack.c.b16 %v1079, %v1073
        %v1296 = vpack.c.b16 %v1080, %v1074
        %v1297 = vpack.c.b16 %v1081, %v1075
        %v1298 = vpack.c.b16 %v1082, %v1076
        %v1299 = vpack.c.b16 %v1083, %v1077
        %v1300 = vpack.c.b16 %v1084, %v1078
        %v1301 = vpack.c.b16 %v1091, %v1085
        %v1302 = vpack.c.b16 %v1092, %v1086
        %v1303 = vpack.c.b16 %v1093, %v1087
        %v1304 = vpack.c.b16 %v1094, %v1088
        %v1305 = vpack.c.b16 %v1095, %v1089
        %v1306 = vpack.c.b16 %v1096, %v1090
        %v1307 = vpack.c.b16 %v1103, %v1097
        %v1308 = vpack.c.b16 %v1104, %v1098
        %v1309 = vpack.c.b16 %v1105, %v1099
        %v1310 = vpack.c.b16 %v1106, %v1100
        %v1311 = vpack.c.b16 %v1107, %v1101
        %v1312 = vpack.c.b16 %v1108, %v1102
        %v1313 = vpack.c.b16 %v1115, %v1109
        %v1314 = vpack.c.b16 %v1116, %v1110
        %v1315 = vpack.c.b16 %v1117, %v1111
        %v1316 = vpack.c.b16 %v1118, %v1112
        %v1317 = vpack.c.b16 %v1119, %v1113
        %v1318 = vpack.c.b16 %v1120, %v1114
        %v1319 = vpack.c.b16 %v1127, %v1121
        %v1320 = vpack.c.b16 %v1128, %v1122
        %v1321 = vpack.c.b16 %v1129, %v1123
        %v1322 = vpack.c.b16 %v1130, %v1124
        %v1323 = vpack.c.b16 %v1131, %v1125
        %v1324 = vpack.c.b16 %v1132, %v1126
        %1517 = vmatprep.subr.bf16.mxu0 %v1176
        %1518 = vmatpush1.bf16.msra.mxu0 %v1175
        %1519 = vmatprep.subr.bf16.mxu0 %v1170
        %1520 = vmatpush1.bf16.msra.mxu0 %v1169
        %1521 = vmatprep.subr.bf16.mxu0 %v1164
        %1522 = vmatpush1.bf16.msra.mxu0 %v1163
        %1523 = vmatprep.subr.bf16.mxu0 %v1158
        %1524 = vmatpush1.bf16.msra.mxu0 %v1157
        %1525 = vmatprep.subr.bf16.mxu0 %v1152
        %1526 = vmatpush1.bf16.msra.mxu0 %v1151
        %1527 = vmatprep.subr.bf16.mxu0 %v1146
        %1528 = vmatpush1.bf16.msra.mxu0 %v1145
        %1529 = vmatprep.subr.bf16.mxu0 %v1140
        %1530 = vmatpush1.bf16.msra.mxu0 %v1139
        %1531 = vmatprep.subr.bf16.mxu0 %v1134
        %1532 = vmatpush1.bf16.msra.mxu0 %v1133
        %1533 = vmatprep.subr.bf16.mxu0 %v1224
        %1534 = vmatpush2.bf16.msra.mxu0 %v1223
        %1535 = vmatprep.subr.bf16.mxu0 %v1218
        %1536 = vmatpush2.bf16.msra.mxu0 %v1217
        %1537 = vmatprep.subr.bf16.mxu0 %v1212
        %1538 = vmatpush2.bf16.msra.mxu0 %v1211
        %1539 = vmatprep.subr.bf16.mxu0 %v1206
        %1540 = vmatpush2.bf16.msra.mxu0 %v1205
        %1541 = vmatprep.subr.bf16.mxu0 %v1200
        %1542 = vmatpush2.bf16.msra.mxu0 %v1199
        %1543 = vmatprep.subr.bf16.mxu0 %v1194
        %1544 = vmatpush2.bf16.msra.mxu0 %v1193
        %1545 = vmatprep.subr.bf16.mxu0 %v1188
        %1546 = vmatpush2.bf16.msra.mxu0 %v1187
        %1547 = vmatprep.subr.bf16.mxu0 %v1182
        %1548 = vmatpush2.bf16.msra.mxu0 %v1181
        %1549 = vmatprep.mubr.bf16.mxu0 %v550
        %1550 = vmatmul.mubr.bf16.gmra.mxu0 %v549
        %v1551 = vpop.f32.mrf.mxu0
        %v1552 = vadd.f32 0.0, %v1551
        %v1553 = vpop.f32.mrf.mxu0
        %v1554 = vadd.f32 0.0, %v1553
        %v1555 = vpop.f32.mrf.mxu0
        %v1556 = vadd.f32 0.0, %v1555
        %v1557 = vpop.f32.mrf.mxu0
        %v1558 = vadd.f32 0.0, %v1557
        %1559 = vdwg.mxu0
        %1560 = vmatprep.subr.bf16.mxu0 %v1272
        %1561 = vmatpush1.bf16.msra.mxu0 %v1271
        %1562 = vmatprep.subr.bf16.mxu0 %v1266
        %1563 = vmatpush1.bf16.msra.mxu0 %v1265
        %1564 = vmatprep.subr.bf16.mxu0 %v1260
        %1565 = vmatpush1.bf16.msra.mxu0 %v1259
        %1566 = vmatprep.subr.bf16.mxu0 %v1254
        %1567 = vmatpush1.bf16.msra.mxu0 %v1253
        %1568 = vmatprep.subr.bf16.mxu0 %v1248
        %1569 = vmatpush1.bf16.msra.mxu0 %v1247
        %1570 = vmatprep.subr.bf16.mxu0 %v1242
        %1571 = vmatpush1.bf16.msra.mxu0 %v1241
        %1572 = vmatprep.subr.bf16.mxu0 %v1236
        %1573 = vmatpush1.bf16.msra.mxu0 %v1235
        %1574 = vmatprep.subr.bf16.mxu0 %v1230
        %1575 = vmatpush1.bf16.msra.mxu0 %v1229
        %1576 = vmatprep.subr.bf16.mxu0 %v1320
        %1577 = vmatpush2.bf16.msra.mxu0 %v1319
        %1578 = vmatprep.subr.bf16.mxu0 %v1314
        %1579 = vmatpush2.bf16.msra.mxu0 %v1313
        %1580 = vmatprep.subr.bf16.mxu0 %v1308
        %1581 = vmatpush2.bf16.msra.mxu0 %v1307
        %1582 = vmatprep.subr.bf16.mxu0 %v1302
        %1583 = vmatpush2.bf16.msra.mxu0 %v1301
        %1584 = vmatprep.subr.bf16.mxu0 %v1296
        %1585 = vmatpush2.bf16.msra.mxu0 %v1295
        %1586 = vmatprep.subr.bf16.mxu0 %v1290
        %1587 = vmatpush2.bf16.msra.mxu0 %v1289
        %1588 = vmatprep.subr.bf16.mxu0 %v1284
        %1589 = vmatpush2.bf16.msra.mxu0 %v1283
        %1590 = vmatprep.subr.bf16.mxu0 %v1278
        %1591 = vmatpush2.bf16.msra.mxu0 %v1277
        %1592 = vmatprep.mubr.bf16.mxu0 %v552
        %1593 = vmatmul.mubr.bf16.gmra.mxu0 %v551
        %v1594 = vpop.f32.mrf.mxu0
        %v1595 = vadd.f32 %v1552, %v1594
        %v1596 = vpop.f32.mrf.mxu0
        %v1597 = vadd.f32 %v1554, %v1596
        %v1598 = vpop.f32.mrf.mxu0
        %v1599 = vadd.f32 %v1556, %v1598
        %v1600 = vpop.f32.mrf.mxu0
        %v1601 = vadd.f32 %v1558, %v1600
        %1602 = vdwg.mxu0
        %1603 = vmatprep.subr.bf16.mxu0 %v1178
        %1604 = vmatpush1.bf16.msra.mxu0 %v1177
        %1605 = vmatprep.subr.bf16.mxu0 %v1172
        %1606 = vmatpush1.bf16.msra.mxu0 %v1171
        %1607 = vmatprep.subr.bf16.mxu0 %v1166
        %1608 = vmatpush1.bf16.msra.mxu0 %v1165
        %1609 = vmatprep.subr.bf16.mxu0 %v1160
        %1610 = vmatpush1.bf16.msra.mxu0 %v1159
        %1611 = vmatprep.subr.bf16.mxu0 %v1154
        %1612 = vmatpush1.bf16.msra.mxu0 %v1153
        %1613 = vmatprep.subr.bf16.mxu0 %v1148
        %1614 = vmatpush1.bf16.msra.mxu0 %v1147
        %1615 = vmatprep.subr.bf16.mxu0 %v1142
        %1616 = vmatpush1.bf16.msra.mxu0 %v1141
        %1617 = vmatprep.subr.bf16.mxu0 %v1136
        %1618 = vmatpush1.bf16.msra.mxu0 %v1135
        %1619 = vmatprep.subr.bf16.mxu0 %v1226
        %1620 = vmatpush2.bf16.msra.mxu0 %v1225
        %1621 = vmatprep.subr.bf16.mxu0 %v1220
        %1622 = vmatpush2.bf16.msra.mxu0 %v1219
        %1623 = vmatprep.subr.bf16.mxu0 %v1214
        %1624 = vmatpush2.bf16.msra.mxu0 %v1213
        %1625 = vmatprep.subr.bf16.mxu0 %v1208
        %1626 = vmatpush2.bf16.msra.mxu0 %v1207
        %1627 = vmatprep.subr.bf16.mxu0 %v1202
        %1628 = vmatpush2.bf16.msra.mxu0 %v1201
        %1629 = vmatprep.subr.bf16.mxu0 %v1196
        %1630 = vmatpush2.bf16.msra.mxu0 %v1195
        %1631 = vmatprep.subr.bf16.mxu0 %v1190
        %1632 = vmatpush2.bf16.msra.mxu0 %v1189
        %1633 = vmatprep.subr.bf16.mxu0 %v1184
        %1634 = vmatpush2.bf16.msra.mxu0 %v1183
        %1635 = vmatprep.mubr.bf16.mxu0 %v550
        %1636 = vmatmul.mubr.bf16.gmra.mxu0 %v549
        %v1637 = vpop.f32.mrf.mxu0
        %v1638 = vadd.f32 0.0, %v1637
        %v1639 = vpop.f32.mrf.mxu0
        %v1640 = vadd.f32 0.0, %v1639
        %v1641 = vpop.f32.mrf.mxu0
        %v1642 = vadd.f32 0.0, %v1641
        %v1643 = vpop.f32.mrf.mxu0
        %v1644 = vadd.f32 0.0, %v1643
        %1645 = vdwg.mxu0
        %1646 = vmatprep.subr.bf16.mxu0 %v1274
        %1647 = vmatpush1.bf16.msra.mxu0 %v1273
        %1648 = vmatprep.subr.bf16.mxu0 %v1268
        %1649 = vmatpush1.bf16.msra.mxu0 %v1267
        %1650 = vmatprep.subr.bf16.mxu0 %v1262
        %1651 = vmatpush1.bf16.msra.mxu0 %v1261
        %1652 = vmatprep.subr.bf16.mxu0 %v1256
        %1653 = vmatpush1.bf16.msra.mxu0 %v1255
        %1654 = vmatprep.subr.bf16.mxu0 %v1250
        %1655 = vmatpush1.bf16.msra.mxu0 %v1249
        %1656 = vmatprep.subr.bf16.mxu0 %v1244
        %1657 = vmatpush1.bf16.msra.mxu0 %v1243
        %1658 = vmatprep.subr.bf16.mxu0 %v1238
        %1659 = vmatpush1.bf16.msra.mxu0 %v1237
        %1660 = vmatprep.subr.bf16.mxu0 %v1232
        %1661 = vmatpush1.bf16.msra.mxu0 %v1231
        %1662 = vmatprep.subr.bf16.mxu0 %v1322
        %1663 = vmatpush2.bf16.msra.mxu0 %v1321
        %1664 = vmatprep.subr.bf16.mxu0 %v1316
        %1665 = vmatpush2.bf16.msra.mxu0 %v1315
        %1666 = vmatprep.subr.bf16.mxu0 %v1310
        %1667 = vmatpush2.bf16.msra.mxu0 %v1309
        %1668 = vmatprep.subr.bf16.mxu0 %v1304
        %1669 = vmatpush2.bf16.msra.mxu0 %v1303
        %1670 = vmatprep.subr.bf16.mxu0 %v1298
        %1671 = vmatpush2.bf16.msra.mxu0 %v1297
        %1672 = vmatprep.subr.bf16.mxu0 %v1292
        %1673 = vmatpush2.bf16.msra.mxu0 %v1291
        %1674 = vmatprep.subr.bf16.mxu0 %v1286
        %1675 = vmatpush2.bf16.msra.mxu0 %v1285
        %1676 = vmatprep.subr.bf16.mxu0 %v1280
        %1677 = vmatpush2.bf16.msra.mxu0 %v1279
        %1678 = vmatprep.mubr.bf16.mxu0 %v552
        %1679 = vmatmul.mubr.bf16.gmra.mxu0 %v551
        %v1680 = vpop.f32.mrf.mxu0
        %v1681 = vadd.f32 %v1638, %v1680
        %v1682 = vpop.f32.mrf.mxu0
        %v1683 = vadd.f32 %v1640, %v1682
        %v1684 = vpop.f32.mrf.mxu0
        %v1685 = vadd.f32 %v1642, %v1684
        %v1686 = vpop.f32.mrf.mxu0
        %v1687 = vadd.f32 %v1644, %v1686
        %1688 = vdwg.mxu0
        %1689 = vmatprep.subr.bf16.mxu0 %v1180
        %1690 = vmatpush1.bf16.msra.mxu0 %v1179
        %1691 = vmatprep.subr.bf16.mxu0 %v1174
        %1692 = vmatpush1.bf16.msra.mxu0 %v1173
        %1693 = vmatprep.subr.bf16.mxu0 %v1168
        %1694 = vmatpush1.bf16.msra.mxu0 %v1167
        %1695 = vmatprep.subr.bf16.mxu0 %v1162
        %1696 = vmatpush1.bf16.msra.mxu0 %v1161
        %1697 = vmatprep.subr.bf16.mxu0 %v1156
        %1698 = vmatpush1.bf16.msra.mxu0 %v1155
        %1699 = vmatprep.subr.bf16.mxu0 %v1150
        %1700 = vmatpush1.bf16.msra.mxu0 %v1149
        %1701 = vmatprep.subr.bf16.mxu0 %v1144
        %1702 = vmatpush1.bf16.msra.mxu0 %v1143
        %1703 = vmatprep.subr.bf16.mxu0 %v1138
        %1704 = vmatpush1.bf16.msra.mxu0 %v1137
        %1705 = vmatprep.subr.bf16.mxu0 %v1228
        %1706 = vmatpush2.bf16.msra.mxu0 %v1227
        %1707 = vmatprep.subr.bf16.mxu0 %v1222
        %1708 = vmatpush2.bf16.msra.mxu0 %v1221
        %1709 = vmatprep.subr.bf16.mxu0 %v1216
        %1710 = vmatpush2.bf16.msra.mxu0 %v1215
        %1711 = vmatprep.subr.bf16.mxu0 %v1210
        %1712 = vmatpush2.bf16.msra.mxu0 %v1209
        %1713 = vmatprep.subr.bf16.mxu0 %v1204
        %1714 = vmatpush2.bf16.msra.mxu0 %v1203
        %1715 = vmatprep.subr.bf16.mxu0 %v1198
        %1716 = vmatpush2.bf16.msra.mxu0 %v1197
        %1717 = vmatprep.subr.bf16.mxu0 %v1192
        %1718 = vmatpush2.bf16.msra.mxu0 %v1191
        %1719 = vmatprep.subr.bf16.mxu0 %v1186
        %1720 = vmatpush2.bf16.msra.mxu0 %v1185
        %1721 = vmatprep.mubr.bf16.mxu0 %v550
        %1722 = vmatmul.mubr.bf16.gmra.mxu0 %v549
        %v1723 = vpop.f32.mrf.mxu0
        %v1724 = vadd.f32 0.0, %v1723
        %v1725 = vpop.f32.mrf.mxu0
        %v1726 = vadd.f32 0.0, %v1725
        %v1727 = vpop.f32.mrf.mxu0
        %v1728 = vadd.f32 0.0, %v1727
        %v1729 = vpop.f32.mrf.mxu0
        %v1730 = vadd.f32 0.0, %v1729
        %1731 = vdwg.mxu0
        %1732 = vmatprep.subr.bf16.mxu0 %v1276
        %1733 = vmatpush1.bf16.msra.mxu0 %v1275
        %1734 = vmatprep.subr.bf16.mxu0 %v1270
        %1735 = vmatpush1.bf16.msra.mxu0 %v1269
        %1736 = vmatprep.subr.bf16.mxu0 %v1264
        %1737 = vmatpush1.bf16.msra.mxu0 %v1263
        %1738 = vmatprep.subr.bf16.mxu0 %v1258
        %1739 = vmatpush1.bf16.msra.mxu0 %v1257
        %1740 = vmatprep.subr.bf16.mxu0 %v1252
        %1741 = vmatpush1.bf16.msra.mxu0 %v1251
        %1742 = vmatprep.subr.bf16.mxu0 %v1246
        %1743 = vmatpush1.bf16.msra.mxu0 %v1245
        %1744 = vmatprep.subr.bf16.mxu0 %v1240
        %1745 = vmatpush1.bf16.msra.mxu0 %v1239
        %1746 = vmatprep.subr.bf16.mxu0 %v1234
        %1747 = vmatpush1.bf16.msra.mxu0 %v1233
        %1748 = vmatprep.subr.bf16.mxu0 %v1324
        %1749 = vmatpush2.bf16.msra.mxu0 %v1323
        %1750 = vmatprep.subr.bf16.mxu0 %v1318
        %1751 = vmatpush2.bf16.msra.mxu0 %v1317
        %1752 = vmatprep.subr.bf16.mxu0 %v1312
        %1753 = vmatpush2.bf16.msra.mxu0 %v1311
        %1754 = vmatprep.subr.bf16.mxu0 %v1306
        %1755 = vmatpush2.bf16.msra.mxu0 %v1305
        %1756 = vmatprep.subr.bf16.mxu0 %v1300
        %1757 = vmatpush2.bf16.msra.mxu0 %v1299
        %1758 = vmatprep.subr.bf16.mxu0 %v1294
        %1759 = vmatpush2.bf16.msra.mxu0 %v1293
        %1760 = vmatprep.subr.bf16.mxu0 %v1288
        %1761 = vmatpush2.bf16.msra.mxu0 %v1287
        %1762 = vmatprep.subr.bf16.mxu0 %v1282
        %1763 = vmatpush2.bf16.msra.mxu0 %v1281
        %1764 = vmatprep.mubr.bf16.mxu0 %v552
        %1765 = vmatmul.mubr.bf16.gmra.mxu0 %v551
        %v1766 = vpop.f32.mrf.mxu0
        %v1767 = vadd.f32 %v1724, %v1766
        %v1768 = vpop.f32.mrf.mxu0
        %v1769 = vadd.f32 %v1726, %v1768
        %v1770 = vpop.f32.mrf.mxu0
        %v1771 = vadd.f32 %v1728, %v1770
        %v1772 = vpop.f32.mrf.mxu0
        %v1773 = vadd.f32 %v1730, %v1772
        %1774 = vdwg.mxu0
        %v1775 = vadd.f32 %v329, %v1595
        %v1776 = vadd.f32 %v330, %v1597
        %v1777 = vadd.f32 %v331, %v1681
        %v1778 = vadd.f32 %v332, %v1683
        %v1779 = vadd.f32 %v333, %v1767
        %v1780 = vadd.f32 %v334, %v1769
        %v1781 = vadd.f32 %v335, %v1599
        %v1782 = vadd.f32 %v336, %v1601
        %v1783 = vadd.f32 %v337, %v1685
        %v1784 = vadd.f32 %v338, %v1687
        %v1785 = vadd.f32 %v339, %v1771
        %v1786 = vadd.f32 %v340, %v1773
        %1787 = vst [vmem:[#allocation2] sm:$0xff] %v1775
        %1788 = vst [vmem:[#allocation2 + $0x8] sm:$0xff] %v1776
        %1789 = vst [vmem:[#allocation2 + $0x10] sm:$0xff] %v1777
        %1790 = vst [vmem:[#allocation2 + $0x18] sm:$0xff] %v1778
        %1791 = vst [vmem:[#allocation2 + $0x20] sm:$0xff] %v1779
        %1792 = vst [vmem:[#allocation2 + $0x28] sm:$0xff] %v1780
        %1793 = vst [vmem:[#allocation2 + $0x30] sm:$0xff] %v1781
        %1794 = vst [vmem:[#allocation2 + $0x38] sm:$0xff] %v1782
        %1795 = vst [vmem:[#allocation2 + $0x40] sm:$0xff] %v1783
        %1796 = vst [vmem:[#allocation2 + $0x48] sm:$0xff] %v1784
        %1797 = vst [vmem:[#allocation2 + $0x50] sm:$0xff] %v1785
        %1798 = vst [vmem:[#allocation2 + $0x58] sm:$0xff] %v1786
        %p1799 = scmp.eq.s32.totalorder %s24, 1
        // Predicated region
        $region65: #{tpu_custom_call.1} parent=39 // pred_check
          %p1800 = pneg %p1799
        $region66: #{tpu_custom_call.1} parent=39 // pred_check_branch
          %1802 = sbr.rel (%p1800) target = $region68
        $region67: #{tpu_custom_call.1} parent=39 // pred_region
          %v1803 = vld [vmem:[#allocation2] sm:$0xff]
          %v1804 = vld [vmem:[#allocation2 + $0x8] sm:$0xff]
          %v1805 = vld [vmem:[#allocation2 + $0x10] sm:$0xff]
          %v1806 = vld [vmem:[#allocation2 + $0x18] sm:$0xff]
          %v1807 = vld [vmem:[#allocation2 + $0x20] sm:$0xff]
          %v1808 = vld [vmem:[#allocation2 + $0x28] sm:$0xff]
          %v1809 = vld [vmem:[#allocation2 + $0x30] sm:$0xff]
          %v1810 = vld [vmem:[#allocation2 + $0x38] sm:$0xff]
          %v1811 = vld [vmem:[#allocation2 + $0x40] sm:$0xff]
          %v1812 = vld [vmem:[#allocation2 + $0x48] sm:$0xff]
          %v1813 = vld [vmem:[#allocation2 + $0x50] sm:$0xff]
          %v1814 = vld [vmem:[#allocation2 + $0x58] sm:$0xff]
          %v1815 = vld [vmem:[#allocation8] sm:$0x3f]
          %v1817 = vlaneseq
          %v1818 = vshrl.u32 %v1817, 7
          %v1819 = vsub.s32 0, %v1818
          %v1820 = vrot.slane %v1815, %v1819
          %v1821 = vlaneseq
          %v1822 = vshrl.u32 %v1821, 7
          %v1823 = vsub.s32 1, %v1822
          %v1824 = vrot.slane %v1815, %v1823
          %v1825 = vlaneseq
          %v1826 = vshrl.u32 %v1825, 7
          %v1827 = vsub.s32 2, %v1826
          %v1828 = vrot.slane %v1815, %v1827
          %v1829 = vlaneseq
          %v1830 = vshrl.u32 %v1829, 7
          %v1831 = vsub.s32 3, %v1830
          %v1832 = vrot.slane %v1815, %v1831
          %v1833 = vlaneseq
          %v1834 = vshrl.u32 %v1833, 7
          %v1835 = vsub.s32 4, %v1834
          %v1836 = vrot.slane %v1815, %v1835
          %v1837 = vlaneseq
          %v1838 = vshrl.u32 %v1837, 7
          %v1839 = vsub.s32 5, %v1838
          %v1840 = vrot.slane %v1815, %v1839
          %v1847 = vadd.f32 %v1803, %v1820
          %v1848 = vadd.f32 %v1804, %v1824
          %v1849 = vadd.f32 %v1805, %v1828
          %v1850 = vadd.f32 %v1806, %v1832
          %v1851 = vadd.f32 %v1807, %v1836
          %v1852 = vadd.f32 %v1808, %v1840
          %v1853 = vadd.f32 %v1809, %v1820
          %v1854 = vadd.f32 %v1810, %v1824
          %v1855 = vadd.f32 %v1811, %v1828
          %v1856 = vadd.f32 %v1812, %v1832
          %v1857 = vadd.f32 %v1813, %v1836
          %v1858 = vadd.f32 %v1814, %v1840
          %vm1859 = vcmask 523264
          %v1861 = vsel %vm1859, %v1847, 0
          %v1864 = vsel %vm1859, %v1849, 0
          %1866 = vmatprep.subr.mxu0 0.0
          %1867 = vmatpush1.xpose.msra.mxu0 0.0
          %1868 = vmatprep.subr.mxu0 0.0
          %1869 = vmatpush1.xpose.msra.mxu0 0.0
          %1870 = vmatprep.subr.mxu0 0.0
          %1871 = vmatpush1.xpose.msra.mxu0 0.0
          %1872 = vmatprep.subr.mxu0 0.0
          %1873 = vmatpush1.xpose.msra.mxu0 0.0
          %1874 = vmatprep.subr.mxu0 0.0
          %1875 = vmatpush1.xpose.msra.mxu0 0.0
          %1876 = vmatprep.subr.mxu0 0.0
          %1877 = vmatpush1.xpose.msra.mxu0 0.0
          %1878 = vmatprep.subr.mxu0 0.0
          %1879 = vmatpush1.xpose.msra.mxu0 0.0
          %1880 = vmatprep.subr.mxu0 0.0
          %1881 = vmatpush1.xpose.msra.mxu0 0.0
          %1882 = vmatprep.subr.mxu0 0.0
          %1883 = vmatpush1.xpose.msra.mxu0 0.0
          %1884 = vmatprep.subr.mxu0 0.0
          %1885 = vmatpush1.xpose.msra.mxu0 0.0
          %1886 = vmatprep.subr.mxu0 0.0
          %1887 = vmatpush1.xpose.msra.mxu0 0.0
          %1888 = vmatprep.subr.mxu0 0.0
          %1889 = vmatpush1.xpose.msra.mxu0 0.0
          %1890 = vmatprep.subr.mxu0 0.0
          %1891 = vmatpush1.xpose.msra.mxu0 0.0
          %1892 = vmatprep.subr.mxu0 0.0
          %1893 = vmatpush1.xpose.msra.mxu0 0.0
          %1894 = vmatprep.subr.mxu0 0.0
          %1895 = vmatpush1.xpose.msra.mxu0 0.0
          %1896 = vmatprep.subr.mxu0 0.0
          %1897 = vmatpush1.xpose.msra.mxu0 %v1864
          %1898 = vmatprep.subr.mxu0 0.0
          %1899 = vmatpush2.xpose.msra.mxu0 0.0
          %1900 = vmatprep.subr.mxu0 0.0
          %1901 = vmatpush2.xpose.msra.mxu0 0.0
          %1902 = vmatprep.subr.mxu0 0.0
          %1903 = vmatpush2.xpose.msra.mxu0 0.0
          %1904 = vmatprep.subr.mxu0 0.0
          %1905 = vmatpush2.xpose.msra.mxu0 0.0
          %1906 = vmatprep.subr.mxu0 0.0
          %1907 = vmatpush2.xpose.msra.mxu0 0.0
          %1908 = vmatprep.subr.mxu0 0.0
          %1909 = vmatpush2.xpose.msra.mxu0 0.0
          %1910 = vmatprep.subr.mxu0 0.0
          %1911 = vmatpush2.xpose.msra.mxu0 0.0
          %1912 = vmatprep.subr.mxu0 0.0
          %1913 = vmatpush2.xpose.msra.mxu0 0.0
          %1914 = vmatprep.subr.mxu0 0.0
          %1915 = vmatpush2.xpose.msra.mxu0 0.0
          %1916 = vmatprep.subr.mxu0 0.0
          %1917 = vmatpush2.xpose.msra.mxu0 0.0
          %1918 = vmatprep.subr.mxu0 0.0
          %1919 = vmatpush2.xpose.msra.mxu0 0.0
          %1920 = vmatprep.subr.mxu0 0.0
          %1921 = vmatpush2.xpose.msra.mxu0 0.0
          %1922 = vmatprep.subr.mxu0 0.0
          %1923 = vmatpush2.xpose.msra.mxu0 0.0
          %1924 = vmatprep.subr.mxu0 0.0
          %1925 = vmatpush2.xpose.msra.mxu0 0.0
          %1926 = vmatprep.subr.mxu0 0.0
          %1927 = vmatpush2.xpose.msra.mxu0 0.0
          %1928 = vmatprep.subr.mxu0 0.0
          %1929 = vmatpush2.xpose.msra.mxu0 0.0
          %1930 = vmatprep.mubr.f32.mxu0 0.0
          %1931 = vmatmul.mubr.f32.gmra.mxu0 %v1861
          %v1932 = vpop.f32.mrf.mxu0
          %v1933 = vadd.f32 0.0, %v1932
          %v1934 = vpop.f32.mrf.mxu0
          %1935 = vdwg.mxu0
          %1936 = vrot.lane.b32.xlu0 %v1847, 64
          %v1937 = vpop.permute.xlu0 %1936
          %1938 = vrot.lane.b32.xlu0 %v1849, 64
          %v1939 = vpop.permute.xlu0 %1938
          %v1940 = vsel %vm1859, %v1937, 0
          %v1942 = vsel %vm1859, %v1939, 0
          %1944 = vmatprep.subr.mxu0 0.0
          %1945 = vmatpush1.xpose.msra.mxu0 0.0
          %1946 = vmatprep.subr.mxu0 0.0
          %1947 = vmatpush1.xpose.msra.mxu0 0.0
          %1948 = vmatprep.subr.mxu0 0.0
          %1949 = vmatpush1.xpose.msra.mxu0 0.0
          %1950 = vmatprep.subr.mxu0 0.0
          %1951 = vmatpush1.xpose.msra.mxu0 0.0
          %1952 = vmatprep.subr.mxu0 0.0
          %1953 = vmatpush1.xpose.msra.mxu0 0.0
          %1954 = vmatprep.subr.mxu0 0.0
          %1955 = vmatpush1.xpose.msra.mxu0 0.0
          %1956 = vmatprep.subr.mxu0 0.0
          %1957 = vmatpush1.xpose.msra.mxu0 0.0
          %1958 = vmatprep.subr.mxu0 0.0
          %1959 = vmatpush1.xpose.msra.mxu0 0.0
          %1960 = vmatprep.subr.mxu0 0.0
          %1961 = vmatpush1.xpose.msra.mxu0 0.0
          %1962 = vmatprep.subr.mxu0 0.0
          %1963 = vmatpush1.xpose.msra.mxu0 0.0
          %1964 = vmatprep.subr.mxu0 0.0
          %1965 = vmatpush1.xpose.msra.mxu0 0.0
          %1966 = vmatprep.subr.mxu0 0.0
          %1967 = vmatpush1.xpose.msra.mxu0 0.0
          %1968 = vmatprep.subr.mxu0 0.0
          %1969 = vmatpush1.xpose.msra.mxu0 0.0
          %1970 = vmatprep.subr.mxu0 0.0
          %1971 = vmatpush1.xpose.msra.mxu0 0.0
          %1972 = vmatprep.subr.mxu0 0.0
          %1973 = vmatpush1.xpose.msra.mxu0 0.0
          %1974 = vmatprep.subr.mxu0 0.0
          %1975 = vmatpush1.xpose.msra.mxu0 %v1942
          %1976 = vmatprep.subr.mxu0 0.0
          %1977 = vmatpush2.xpose.msra.mxu0 0.0
          %1978 = vmatprep.subr.mxu0 0.0
          %1979 = vmatpush2.xpose.msra.mxu0 0.0
          %1980 = vmatprep.subr.mxu0 0.0
          %1981 = vmatpush2.xpose.msra.mxu0 0.0
          %1982 = vmatprep.subr.mxu0 0.0
          %1983 = vmatpush2.xpose.msra.mxu0 0.0
          %1984 = vmatprep.subr.mxu0 0.0
          %1985 = vmatpush2.xpose.msra.mxu0 0.0
          %1986 = vmatprep.subr.mxu0 0.0
          %1987 = vmatpush2.xpose.msra.mxu0 0.0
          %1988 = vmatprep.subr.mxu0 0.0
          %1989 = vmatpush2.xpose.msra.mxu0 0.0
          %1990 = vmatprep.subr.mxu0 0.0
          %1991 = vmatpush2.xpose.msra.mxu0 0.0
          %1992 = vmatprep.subr.mxu0 0.0
          %1993 = vmatpush2.xpose.msra.mxu0 0.0
          %1994 = vmatprep.subr.mxu0 0.0
          %1995 = vmatpush2.xpose.msra.mxu0 0.0
          %1996 = vmatprep.subr.mxu0 0.0
          %1997 = vmatpush2.xpose.msra.mxu0 0.0
          %1998 = vmatprep.subr.mxu0 0.0
          %1999 = vmatpush2.xpose.msra.mxu0 0.0
          %2000 = vmatprep.subr.mxu0 0.0
          %2001 = vmatpush2.xpose.msra.mxu0 0.0
          %2002 = vmatprep.subr.mxu0 0.0
          %2003 = vmatpush2.xpose.msra.mxu0 0.0
          %2004 = vmatprep.subr.mxu0 0.0
          %2005 = vmatpush2.xpose.msra.mxu0 0.0
          %2006 = vmatprep.subr.mxu0 0.0
          %2007 = vmatpush2.xpose.msra.mxu0 0.0
          %2008 = vmatprep.mubr.f32.mxu0 0.0
          %2009 = vmatmul.mubr.f32.gmra.mxu0 %v1940
          %v2010 = vpop.f32.mrf.mxu0
          %v2011 = vadd.f32 0.0, %v2010
          %v2012 = vpop.f32.mrf.mxu0
          %2013 = vdwg.mxu0
          %v2015 = vsel %vm1859, %v1848, 0
          %v2018 = vsel %vm1859, %v1850, 0
          %2020 = vmatprep.subr.mxu0 0.0
          %2021 = vmatpush1.xpose.msra.mxu0 0.0
          %2022 = vmatprep.subr.mxu0 0.0
          %2023 = vmatpush1.xpose.msra.mxu0 0.0
          %2024 = vmatprep.subr.mxu0 0.0
          %2025 = vmatpush1.xpose.msra.mxu0 0.0
          %2026 = vmatprep.subr.mxu0 0.0
          %2027 = vmatpush1.xpose.msra.mxu0 0.0
          %2028 = vmatprep.subr.mxu0 0.0
          %2029 = vmatpush1.xpose.msra.mxu0 0.0
          %2030 = vmatprep.subr.mxu0 0.0
          %2031 = vmatpush1.xpose.msra.mxu0 0.0
          %2032 = vmatprep.subr.mxu0 0.0
          %2033 = vmatpush1.xpose.msra.mxu0 0.0
          %2034 = vmatprep.subr.mxu0 0.0
          %2035 = vmatpush1.xpose.msra.mxu0 0.0
          %2036 = vmatprep.subr.mxu0 0.0
          %2037 = vmatpush1.xpose.msra.mxu0 0.0
          %2038 = vmatprep.subr.mxu0 0.0
          %2039 = vmatpush1.xpose.msra.mxu0 0.0
          %2040 = vmatprep.subr.mxu0 0.0
          %2041 = vmatpush1.xpose.msra.mxu0 0.0
          %2042 = vmatprep.subr.mxu0 0.0
          %2043 = vmatpush1.xpose.msra.mxu0 0.0
          %2044 = vmatprep.subr.mxu0 0.0
          %2045 = vmatpush1.xpose.msra.mxu0 0.0
          %2046 = vmatprep.subr.mxu0 0.0
          %2047 = vmatpush1.xpose.msra.mxu0 0.0
          %2048 = vmatprep.subr.mxu0 0.0
          %2049 = vmatpush1.xpose.msra.mxu0 0.0
          %2050 = vmatprep.subr.mxu0 0.0
          %2051 = vmatpush1.xpose.msra.mxu0 %v2018
          %2052 = vmatprep.subr.mxu0 0.0
          %2053 = vmatpush2.xpose.msra.mxu0 0.0
          %2054 = vmatprep.subr.mxu0 0.0
          %2055 = vmatpush2.xpose.msra.mxu0 0.0
          %2056 = vmatprep.subr.mxu0 0.0
          %2057 = vmatpush2.xpose.msra.mxu0 0.0
          %2058 = vmatprep.subr.mxu0 0.0
          %2059 = vmatpush2.xpose.msra.mxu0 0.0
          %2060 = vmatprep.subr.mxu0 0.0
          %2061 = vmatpush2.xpose.msra.mxu0 0.0
          %2062 = vmatprep.subr.mxu0 0.0
          %2063 = vmatpush2.xpose.msra.mxu0 0.0
          %2064 = vmatprep.subr.mxu0 0.0
          %2065 = vmatpush2.xpose.msra.mxu0 0.0
          %2066 = vmatprep.subr.mxu0 0.0
          %2067 = vmatpush2.xpose.msra.mxu0 0.0
          %2068 = vmatprep.subr.mxu0 0.0
          %2069 = vmatpush2.xpose.msra.mxu0 0.0
          %2070 = vmatprep.subr.mxu0 0.0
          %2071 = vmatpush2.xpose.msra.mxu0 0.0
          %2072 = vmatprep.subr.mxu0 0.0
          %2073 = vmatpush2.xpose.msra.mxu0 0.0
          %2074 = vmatprep.subr.mxu0 0.0
          %2075 = vmatpush2.xpose.msra.mxu0 0.0
          %2076 = vmatprep.subr.mxu0 0.0
          %2077 = vmatpush2.xpose.msra.mxu0 0.0
          %2078 = vmatprep.subr.mxu0 0.0
          %2079 = vmatpush2.xpose.msra.mxu0 0.0
          %2080 = vmatprep.subr.mxu0 0.0
          %2081 = vmatpush2.xpose.msra.mxu0 0.0
          %2082 = vmatprep.subr.mxu0 0.0
          %2083 = vmatpush2.xpose.msra.mxu0 0.0
          %2084 = vmatprep.mubr.f32.mxu0 0.0
          %2085 = vmatmul.mubr.f32.gmra.mxu0 %v2015
          %v2086 = vpop.f32.mrf.mxu0
          %v2087 = vadd.f32 0.0, %v2086
          %v2088 = vpop.f32.mrf.mxu0
          %2089 = vdwg.mxu0
          %2090 = vrot.lane.b32.xlu0 %v1848, 64
          %v2091 = vpop.permute.xlu0 %2090
          %2092 = vrot.lane.b32.xlu0 %v1850, 64
          %v2093 = vpop.permute.xlu0 %2092
          %v2094 = vsel %vm1859, %v2091, 0
          %v2096 = vsel %vm1859, %v2093, 0
          %2098 = vmatprep.subr.mxu0 0.0
          %2099 = vmatpush1.xpose.msra.mxu0 0.0
          %2100 = vmatprep.subr.mxu0 0.0
          %2101 = vmatpush1.xpose.msra.mxu0 0.0
          %2102 = vmatprep.subr.mxu0 0.0
          %2103 = vmatpush1.xpose.msra.mxu0 0.0
          %2104 = vmatprep.subr.mxu0 0.0
          %2105 = vmatpush1.xpose.msra.mxu0 0.0
          %2106 = vmatprep.subr.mxu0 0.0
          %2107 = vmatpush1.xpose.msra.mxu0 0.0
          %2108 = vmatprep.subr.mxu0 0.0
          %2109 = vmatpush1.xpose.msra.mxu0 0.0
          %2110 = vmatprep.subr.mxu0 0.0
          %2111 = vmatpush1.xpose.msra.mxu0 0.0
          %2112 = vmatprep.subr.mxu0 0.0
          %2113 = vmatpush1.xpose.msra.mxu0 0.0
          %2114 = vmatprep.subr.mxu0 0.0
          %2115 = vmatpush1.xpose.msra.mxu0 0.0
          %2116 = vmatprep.subr.mxu0 0.0
          %2117 = vmatpush1.xpose.msra.mxu0 0.0
          %2118 = vmatprep.subr.mxu0 0.0
          %2119 = vmatpush1.xpose.msra.mxu0 0.0
          %2120 = vmatprep.subr.mxu0 0.0
          %2121 = vmatpush1.xpose.msra.mxu0 0.0
          %2122 = vmatprep.subr.mxu0 0.0
          %2123 = vmatpush1.xpose.msra.mxu0 0.0
          %2124 = vmatprep.subr.mxu0 0.0
          %2125 = vmatpush1.xpose.msra.mxu0 0.0
          %2126 = vmatprep.subr.mxu0 0.0
          %2127 = vmatpush1.xpose.msra.mxu0 0.0
          %2128 = vmatprep.subr.mxu0 0.0
          %2129 = vmatpush1.xpose.msra.mxu0 %v2096
          %2130 = vmatprep.subr.mxu0 0.0
          %2131 = vmatpush2.xpose.msra.mxu0 0.0
          %2132 = vmatprep.subr.mxu0 0.0
          %2133 = vmatpush2.xpose.msra.mxu0 0.0
          %2134 = vmatprep.subr.mxu0 0.0
          %2135 = vmatpush2.xpose.msra.mxu0 0.0
          %2136 = vmatprep.subr.mxu0 0.0
          %2137 = vmatpush2.xpose.msra.mxu0 0.0
          %2138 = vmatprep.subr.mxu0 0.0
          %2139 = vmatpush2.xpose.msra.mxu0 0.0
          %2140 = vmatprep.subr.mxu0 0.0
          %2141 = vmatpush2.xpose.msra.mxu0 0.0
          %2142 = vmatprep.subr.mxu0 0.0
          %2143 = vmatpush2.xpose.msra.mxu0 0.0
          %2144 = vmatprep.subr.mxu0 0.0
          %2145 = vmatpush2.xpose.msra.mxu0 0.0
          %2146 = vmatprep.subr.mxu0 0.0
          %2147 = vmatpush2.xpose.msra.mxu0 0.0
          %2148 = vmatprep.subr.mxu0 0.0
          %2149 = vmatpush2.xpose.msra.mxu0 0.0
          %2150 = vmatprep.subr.mxu0 0.0
          %2151 = vmatpush2.xpose.msra.mxu0 0.0
          %2152 = vmatprep.subr.mxu0 0.0
          %2153 = vmatpush2.xpose.msra.mxu0 0.0
          %2154 = vmatprep.subr.mxu0 0.0
          %2155 = vmatpush2.xpose.msra.mxu0 0.0
          %2156 = vmatprep.subr.mxu0 0.0
          %2157 = vmatpush2.xpose.msra.mxu0 0.0
          %2158 = vmatprep.subr.mxu0 0.0
          %2159 = vmatpush2.xpose.msra.mxu0 0.0
          %2160 = vmatprep.subr.mxu0 0.0
          %2161 = vmatpush2.xpose.msra.mxu0 0.0
          %2162 = vmatprep.mubr.f32.mxu0 0.0
          %2163 = vmatmul.mubr.f32.gmra.mxu0 %v2094
          %v2164 = vpop.f32.mrf.mxu0
          %v2165 = vadd.f32 0.0, %v2164
          %v2166 = vpop.f32.mrf.mxu0
          %2167 = vdwg.mxu0
          %v2169 = vsel %vm1859, %v1853, 0
          %v2172 = vsel %vm1859, %v1855, 0
          %2174 = vmatprep.subr.mxu0 0.0
          %2175 = vmatpush1.xpose.msra.mxu0 0.0
          %2176 = vmatprep.subr.mxu0 0.0
          %2177 = vmatpush1.xpose.msra.mxu0 0.0
          %2178 = vmatprep.subr.mxu0 0.0
          %2179 = vmatpush1.xpose.msra.mxu0 0.0
          %2180 = vmatprep.subr.mxu0 0.0
          %2181 = vmatpush1.xpose.msra.mxu0 0.0
          %2182 = vmatprep.subr.mxu0 0.0
          %2183 = vmatpush1.xpose.msra.mxu0 0.0
          %2184 = vmatprep.subr.mxu0 0.0
          %2185 = vmatpush1.xpose.msra.mxu0 0.0
          %2186 = vmatprep.subr.mxu0 0.0
          %2187 = vmatpush1.xpose.msra.mxu0 0.0
          %2188 = vmatprep.subr.mxu0 0.0
          %2189 = vmatpush1.xpose.msra.mxu0 0.0
          %2190 = vmatprep.subr.mxu0 0.0
          %2191 = vmatpush1.xpose.msra.mxu0 0.0
          %2192 = vmatprep.subr.mxu0 0.0
          %2193 = vmatpush1.xpose.msra.mxu0 0.0
          %2194 = vmatprep.subr.mxu0 0.0
          %2195 = vmatpush1.xpose.msra.mxu0 0.0
          %2196 = vmatprep.subr.mxu0 0.0
          %2197 = vmatpush1.xpose.msra.mxu0 0.0
          %2198 = vmatprep.subr.mxu0 0.0
          %2199 = vmatpush1.xpose.msra.mxu0 0.0
          %2200 = vmatprep.subr.mxu0 0.0
          %2201 = vmatpush1.xpose.msra.mxu0 0.0
          %2202 = vmatprep.subr.mxu0 0.0
          %2203 = vmatpush1.xpose.msra.mxu0 0.0
          %2204 = vmatprep.subr.mxu0 0.0
          %2205 = vmatpush1.xpose.msra.mxu0 %v2172
          %2206 = vmatprep.subr.mxu0 0.0
          %2207 = vmatpush2.xpose.msra.mxu0 0.0
          %2208 = vmatprep.subr.mxu0 0.0
          %2209 = vmatpush2.xpose.msra.mxu0 0.0
          %2210 = vmatprep.subr.mxu0 0.0
          %2211 = vmatpush2.xpose.msra.mxu0 0.0
          %2212 = vmatprep.subr.mxu0 0.0
          %2213 = vmatpush2.xpose.msra.mxu0 0.0
          %2214 = vmatprep.subr.mxu0 0.0
          %2215 = vmatpush2.xpose.msra.mxu0 0.0
          %2216 = vmatprep.subr.mxu0 0.0
          %2217 = vmatpush2.xpose.msra.mxu0 0.0
          %2218 = vmatprep.subr.mxu0 0.0
          %2219 = vmatpush2.xpose.msra.mxu0 0.0
          %2220 = vmatprep.subr.mxu0 0.0
          %2221 = vmatpush2.xpose.msra.mxu0 0.0
          %2222 = vmatprep.subr.mxu0 0.0
          %2223 = vmatpush2.xpose.msra.mxu0 0.0
          %2224 = vmatprep.subr.mxu0 0.0
          %2225 = vmatpush2.xpose.msra.mxu0 0.0
          %2226 = vmatprep.subr.mxu0 0.0
          %2227 = vmatpush2.xpose.msra.mxu0 0.0
          %2228 = vmatprep.subr.mxu0 0.0
          %2229 = vmatpush2.xpose.msra.mxu0 0.0
          %2230 = vmatprep.subr.mxu0 0.0
          %2231 = vmatpush2.xpose.msra.mxu0 0.0
          %2232 = vmatprep.subr.mxu0 0.0
          %2233 = vmatpush2.xpose.msra.mxu0 0.0
          %2234 = vmatprep.subr.mxu0 0.0
          %2235 = vmatpush2.xpose.msra.mxu0 0.0
          %2236 = vmatprep.subr.mxu0 0.0
          %2237 = vmatpush2.xpose.msra.mxu0 0.0
          %2238 = vmatprep.mubr.f32.mxu0 0.0
          %2239 = vmatmul.mubr.f32.gmra.mxu0 %v2169
          %v2240 = vpop.f32.mrf.mxu0
          %v2241 = vadd.f32 0.0, %v2240
          %v2242 = vpop.f32.mrf.mxu0
          %2243 = vdwg.mxu0
          %2244 = vrot.lane.b32.xlu0 %v1853, 64
          %v2245 = vpop.permute.xlu0 %2244
          %2246 = vrot.lane.b32.xlu0 %v1855, 64
          %v2247 = vpop.permute.xlu0 %2246
          %v2248 = vsel %vm1859, %v2245, 0
          %v2250 = vsel %vm1859, %v2247, 0
          %2252 = vmatprep.subr.mxu0 0.0
          %2253 = vmatpush1.xpose.msra.mxu0 0.0
          %2254 = vmatprep.subr.mxu0 0.0
          %2255 = vmatpush1.xpose.msra.mxu0 0.0
          %2256 = vmatprep.subr.mxu0 0.0
          %2257 = vmatpush1.xpose.msra.mxu0 0.0
          %2258 = vmatprep.subr.mxu0 0.0
          %2259 = vmatpush1.xpose.msra.mxu0 0.0
          %2260 = vmatprep.subr.mxu0 0.0
          %2261 = vmatpush1.xpose.msra.mxu0 0.0
          %2262 = vmatprep.subr.mxu0 0.0
          %2263 = vmatpush1.xpose.msra.mxu0 0.0
          %2264 = vmatprep.subr.mxu0 0.0
          %2265 = vmatpush1.xpose.msra.mxu0 0.0
          %2266 = vmatprep.subr.mxu0 0.0
          %2267 = vmatpush1.xpose.msra.mxu0 0.0
          %2268 = vmatprep.subr.mxu0 0.0
          %2269 = vmatpush1.xpose.msra.mxu0 0.0
          %2270 = vmatprep.subr.mxu0 0.0
          %2271 = vmatpush1.xpose.msra.mxu0 0.0
          %2272 = vmatprep.subr.mxu0 0.0
          %2273 = vmatpush1.xpose.msra.mxu0 0.0
          %2274 = vmatprep.subr.mxu0 0.0
          %2275 = vmatpush1.xpose.msra.mxu0 0.0
          %2276 = vmatprep.subr.mxu0 0.0
          %2277 = vmatpush1.xpose.msra.mxu0 0.0
          %2278 = vmatprep.subr.mxu0 0.0
          %2279 = vmatpush1.xpose.msra.mxu0 0.0
          %2280 = vmatprep.subr.mxu0 0.0
          %2281 = vmatpush1.xpose.msra.mxu0 0.0
          %2282 = vmatprep.subr.mxu0 0.0
          %2283 = vmatpush1.xpose.msra.mxu0 %v2250
          %2284 = vmatprep.subr.mxu0 0.0
          %2285 = vmatpush2.xpose.msra.mxu0 0.0
          %2286 = vmatprep.subr.mxu0 0.0
          %2287 = vmatpush2.xpose.msra.mxu0 0.0
          %2288 = vmatprep.subr.mxu0 0.0
          %2289 = vmatpush2.xpose.msra.mxu0 0.0
          %2290 = vmatprep.subr.mxu0 0.0
          %2291 = vmatpush2.xpose.msra.mxu0 0.0
          %2292 = vmatprep.subr.mxu0 0.0
          %2293 = vmatpush2.xpose.msra.mxu0 0.0
          %2294 = vmatprep.subr.mxu0 0.0
          %2295 = vmatpush2.xpose.msra.mxu0 0.0
          %2296 = vmatprep.subr.mxu0 0.0
          %2297 = vmatpush2.xpose.msra.mxu0 0.0
          %2298 = vmatprep.subr.mxu0 0.0
          %2299 = vmatpush2.xpose.msra.mxu0 0.0
          %2300 = vmatprep.subr.mxu0 0.0
          %2301 = vmatpush2.xpose.msra.mxu0 0.0
          %2302 = vmatprep.subr.mxu0 0.0
          %2303 = vmatpush2.xpose.msra.mxu0 0.0
          %2304 = vmatprep.subr.mxu0 0.0
          %2305 = vmatpush2.xpose.msra.mxu0 0.0
          %2306 = vmatprep.subr.mxu0 0.0
          %2307 = vmatpush2.xpose.msra.mxu0 0.0
          %2308 = vmatprep.subr.mxu0 0.0
          %2309 = vmatpush2.xpose.msra.mxu0 0.0
          %2310 = vmatprep.subr.mxu0 0.0
          %2311 = vmatpush2.xpose.msra.mxu0 0.0
          %2312 = vmatprep.subr.mxu0 0.0
          %2313 = vmatpush2.xpose.msra.mxu0 0.0
          %2314 = vmatprep.subr.mxu0 0.0
          %2315 = vmatpush2.xpose.msra.mxu0 0.0
          %2316 = vmatprep.mubr.f32.mxu0 0.0
          %2317 = vmatmul.mubr.f32.gmra.mxu0 %v2248
          %v2318 = vpop.f32.mrf.mxu0
          %v2319 = vadd.f32 0.0, %v2318
          %v2320 = vpop.f32.mrf.mxu0
          %2321 = vdwg.mxu0
          %v2323 = vsel %vm1859, %v1854, 0
          %v2326 = vsel %vm1859, %v1856, 0
          %2328 = vmatprep.subr.mxu0 0.0
          %2329 = vmatpush1.xpose.msra.mxu0 0.0
          %2330 = vmatprep.subr.mxu0 0.0
          %2331 = vmatpush1.xpose.msra.mxu0 0.0
          %2332 = vmatprep.subr.mxu0 0.0
          %2333 = vmatpush1.xpose.msra.mxu0 0.0
          %2334 = vmatprep.subr.mxu0 0.0
          %2335 = vmatpush1.xpose.msra.mxu0 0.0
          %2336 = vmatprep.subr.mxu0 0.0
          %2337 = vmatpush1.xpose.msra.mxu0 0.0
          %2338 = vmatprep.subr.mxu0 0.0
          %2339 = vmatpush1.xpose.msra.mxu0 0.0
          %2340 = vmatprep.subr.mxu0 0.0
          %2341 = vmatpush1.xpose.msra.mxu0 0.0
          %2342 = vmatprep.subr.mxu0 0.0
          %2343 = vmatpush1.xpose.msra.mxu0 0.0
          %2344 = vmatprep.subr.mxu0 0.0
          %2345 = vmatpush1.xpose.msra.mxu0 0.0
          %2346 = vmatprep.subr.mxu0 0.0
          %2347 = vmatpush1.xpose.msra.mxu0 0.0
          %2348 = vmatprep.subr.mxu0 0.0
          %2349 = vmatpush1.xpose.msra.mxu0 0.0
          %2350 = vmatprep.subr.mxu0 0.0
          %2351 = vmatpush1.xpose.msra.mxu0 0.0
          %2352 = vmatprep.subr.mxu0 0.0
          %2353 = vmatpush1.xpose.msra.mxu0 0.0
          %2354 = vmatprep.subr.mxu0 0.0
          %2355 = vmatpush1.xpose.msra.mxu0 0.0
          %2356 = vmatprep.subr.mxu0 0.0
          %2357 = vmatpush1.xpose.msra.mxu0 0.0
          %2358 = vmatprep.subr.mxu0 0.0
          %2359 = vmatpush1.xpose.msra.mxu0 %v2326
          %2360 = vmatprep.subr.mxu0 0.0
          %2361 = vmatpush2.xpose.msra.mxu0 0.0
          %2362 = vmatprep.subr.mxu0 0.0
          %2363 = vmatpush2.xpose.msra.mxu0 0.0
          %2364 = vmatprep.subr.mxu0 0.0
          %2365 = vmatpush2.xpose.msra.mxu0 0.0
          %2366 = vmatprep.subr.mxu0 0.0
          %2367 = vmatpush2.xpose.msra.mxu0 0.0
          %2368 = vmatprep.subr.mxu0 0.0
          %2369 = vmatpush2.xpose.msra.mxu0 0.0
          %2370 = vmatprep.subr.mxu0 0.0
          %2371 = vmatpush2.xpose.msra.mxu0 0.0
          %2372 = vmatprep.subr.mxu0 0.0
          %2373 = vmatpush2.xpose.msra.mxu0 0.0
          %2374 = vmatprep.subr.mxu0 0.0
          %2375 = vmatpush2.xpose.msra.mxu0 0.0
          %2376 = vmatprep.subr.mxu0 0.0
          %2377 = vmatpush2.xpose.msra.mxu0 0.0
          %2378 = vmatprep.subr.mxu0 0.0
          %2379 = vmatpush2.xpose.msra.mxu0 0.0
          %2380 = vmatprep.subr.mxu0 0.0
          %2381 = vmatpush2.xpose.msra.mxu0 0.0
          %2382 = vmatprep.subr.mxu0 0.0
          %2383 = vmatpush2.xpose.msra.mxu0 0.0
          %2384 = vmatprep.subr.mxu0 0.0
          %2385 = vmatpush2.xpose.msra.mxu0 0.0
          %2386 = vmatprep.subr.mxu0 0.0
          %2387 = vmatpush2.xpose.msra.mxu0 0.0
          %2388 = vmatprep.subr.mxu0 0.0
          %2389 = vmatpush2.xpose.msra.mxu0 0.0
          %2390 = vmatprep.subr.mxu0 0.0
          %2391 = vmatpush2.xpose.msra.mxu0 0.0
          %2392 = vmatprep.mubr.f32.mxu0 0.0
          %2393 = vmatmul.mubr.f32.gmra.mxu0 %v2323
          %v2394 = vpop.f32.mrf.mxu0
          %v2395 = vadd.f32 0.0, %v2394
          %v2396 = vpop.f32.mrf.mxu0
          %2397 = vdwg.mxu0
          %2398 = vrot.lane.b32.xlu0 %v1854, 64
          %v2399 = vpop.permute.xlu0 %2398
          %2400 = vrot.lane.b32.xlu0 %v1856, 64
          %v2401 = vpop.permute.xlu0 %2400
          %v2402 = vsel %vm1859, %v2399, 0
          %v2404 = vsel %vm1859, %v2401, 0
          %2406 = vmatprep.subr.mxu0 0.0
          %2407 = vmatpush1.xpose.msra.mxu0 0.0
          %2408 = vmatprep.subr.mxu0 0.0
          %2409 = vmatpush1.xpose.msra.mxu0 0.0
          %2410 = vmatprep.subr.mxu0 0.0
          %2411 = vmatpush1.xpose.msra.mxu0 0.0
          %2412 = vmatprep.subr.mxu0 0.0
          %2413 = vmatpush1.xpose.msra.mxu0 0.0
          %2414 = vmatprep.subr.mxu0 0.0
          %2415 = vmatpush1.xpose.msra.mxu0 0.0
          %2416 = vmatprep.subr.mxu0 0.0
          %2417 = vmatpush1.xpose.msra.mxu0 0.0
          %2418 = vmatprep.subr.mxu0 0.0
          %2419 = vmatpush1.xpose.msra.mxu0 0.0
          %2420 = vmatprep.subr.mxu0 0.0
          %2421 = vmatpush1.xpose.msra.mxu0 0.0
          %2422 = vmatprep.subr.mxu0 0.0
          %2423 = vmatpush1.xpose.msra.mxu0 0.0
          %2424 = vmatprep.subr.mxu0 0.0
          %2425 = vmatpush1.xpose.msra.mxu0 0.0
          %2426 = vmatprep.subr.mxu0 0.0
          %2427 = vmatpush1.xpose.msra.mxu0 0.0
          %2428 = vmatprep.subr.mxu0 0.0
          %2429 = vmatpush1.xpose.msra.mxu0 0.0
          %2430 = vmatprep.subr.mxu0 0.0
          %2431 = vmatpush1.xpose.msra.mxu0 0.0
          %2432 = vmatprep.subr.mxu0 0.0
          %2433 = vmatpush1.xpose.msra.mxu0 0.0
          %2434 = vmatprep.subr.mxu0 0.0
          %2435 = vmatpush1.xpose.msra.mxu0 0.0
          %2436 = vmatprep.subr.mxu0 0.0
          %2437 = vmatpush1.xpose.msra.mxu0 %v2404
          %2438 = vmatprep.subr.mxu0 0.0
          %2439 = vmatpush2.xpose.msra.mxu0 0.0
          %2440 = vmatprep.subr.mxu0 0.0
          %2441 = vmatpush2.xpose.msra.mxu0 0.0
          %2442 = vmatprep.subr.mxu0 0.0
          %2443 = vmatpush2.xpose.msra.mxu0 0.0
          %2444 = vmatprep.subr.mxu0 0.0
          %2445 = vmatpush2.xpose.msra.mxu0 0.0
          %2446 = vmatprep.subr.mxu0 0.0
          %2447 = vmatpush2.xpose.msra.mxu0 0.0
          %2448 = vmatprep.subr.mxu0 0.0
          %2449 = vmatpush2.xpose.msra.mxu0 0.0
          %2450 = vmatprep.subr.mxu0 0.0
          %2451 = vmatpush2.xpose.msra.mxu0 0.0
          %2452 = vmatprep.subr.mxu0 0.0
          %2453 = vmatpush2.xpose.msra.mxu0 0.0
          %2454 = vmatprep.subr.mxu0 0.0
          %2455 = vmatpush2.xpose.msra.mxu0 0.0
          %2456 = vmatprep.subr.mxu0 0.0
          %2457 = vmatpush2.xpose.msra.mxu0 0.0
          %2458 = vmatprep.subr.mxu0 0.0
          %2459 = vmatpush2.xpose.msra.mxu0 0.0
          %2460 = vmatprep.subr.mxu0 0.0
          %2461 = vmatpush2.xpose.msra.mxu0 0.0
          %2462 = vmatprep.subr.mxu0 0.0
          %2463 = vmatpush2.xpose.msra.mxu0 0.0
          %2464 = vmatprep.subr.mxu0 0.0
          %2465 = vmatpush2.xpose.msra.mxu0 0.0
          %2466 = vmatprep.subr.mxu0 0.0
          %2467 = vmatpush2.xpose.msra.mxu0 0.0
          %2468 = vmatprep.subr.mxu0 0.0
          %2469 = vmatpush2.xpose.msra.mxu0 0.0
          %2470 = vmatprep.mubr.f32.mxu0 0.0
          %2471 = vmatmul.mubr.f32.gmra.mxu0 %v2402
          %v2472 = vpop.f32.mrf.mxu0
          %v2473 = vadd.f32 0.0, %v2472
          %v2474 = vpop.f32.mrf.mxu0
          %2475 = vdwg.mxu0
          %vm2476 = vcmask 64512
          %v2477 = vsel %vm2476, %v1933, -inf
          %2478 = vmax.xlane.f32.xlu0 %v2477
          %v2479 = vpop.xlane.xlu0 %2478
          %v2480 = vsel %vm2476, %v2011, -inf
          %2481 = vmax.xlane.f32.xlu0 %v2480
          %v2482 = vpop.xlane.xlu0 %2481
          %v2483 = vsel %vm2476, %v2087, -inf
          %2484 = vmax.xlane.f32.xlu0 %v2483
          %v2485 = vpop.xlane.xlu0 %2484
          %v2486 = vsel %vm2476, %v2165, -inf
          %2487 = vmax.xlane.f32.xlu0 %v2486
          %v2488 = vpop.xlane.xlu0 %2487
          %v2489 = vsel %vm2476, %v2241, -inf
          %2490 = vmax.xlane.f32.xlu0 %v2489
          %v2491 = vpop.xlane.xlu0 %2490
          %v2492 = vsel %vm2476, %v2319, -inf
          %2493 = vmax.xlane.f32.xlu0 %v2492
          %v2494 = vpop.xlane.xlu0 %2493
          %v2495 = vsel %vm2476, %v2395, -inf
          %2496 = vmax.xlane.f32.xlu0 %v2495
          %v2497 = vpop.xlane.xlu0 %2496
          %v2498 = vsel %vm2476, %v2473, -inf
          %2499 = vmax.xlane.f32.xlu0 %v2498
          %v2500 = vpop.xlane.xlu0 %2499
          %v2501 = vsub.f32 %v1933, %v2479
          %v2502 = vsub.f32 %v2011, %v2482
          %v2503 = vsub.f32 %v2087, %v2485
          %v2504 = vsub.f32 %v2165, %v2488
          %v2505 = vsub.f32 %v2241, %v2491
          %v2506 = vsub.f32 %v2319, %v2494
          %v2507 = vsub.f32 %v2395, %v2497
          %v2508 = vsub.f32 %v2473, %v2500
          %v2509 = vmul.f32 %v2501, 1.442695
          %v2510 = vpow.pop %v2509
          %v2511 = vmul.f32 %v2502, 1.442695
          %v2512 = vpow.pop %v2511
          %v2513 = vmul.f32 %v2503, 1.442695
          %v2514 = vpow.pop %v2513
          %v2515 = vmul.f32 %v2504, 1.442695
          %v2516 = vpow.pop %v2515
          %v2517 = vmul.f32 %v2505, 1.442695
          %v2518 = vpow.pop %v2517
          %v2519 = vmul.f32 %v2506, 1.442695
          %v2520 = vpow.pop %v2519
          %v2521 = vmul.f32 %v2507, 1.442695
          %v2522 = vpow.pop %v2521
          %v2523 = vmul.f32 %v2508, 1.442695
          %v2524 = vpow.pop %v2523
          %v2525 = vsel %vm2476, %v2510, 0.0
          %2526 = vadd.xlane.f32.xlu0 %v2525
          %v2527 = vpop.xlane.xlu0 %2526
          %v2528 = vsel %vm2476, %v2512, 0.0
          %2529 = vadd.xlane.f32.xlu0 %v2528
          %v2530 = vpop.xlane.xlu0 %2529
          %v2531 = vsel %vm2476, %v2514, 0.0
          %2532 = vadd.xlane.f32.xlu0 %v2531
          %v2533 = vpop.xlane.xlu0 %2532
          %v2534 = vsel %vm2476, %v2516, 0.0
          %2535 = vadd.xlane.f32.xlu0 %v2534
          %v2536 = vpop.xlane.xlu0 %2535
          %v2537 = vsel %vm2476, %v2518, 0.0
          %2538 = vadd.xlane.f32.xlu0 %v2537
          %v2539 = vpop.xlane.xlu0 %2538
          %v2540 = vsel %vm2476, %v2520, 0.0
          %2541 = vadd.xlane.f32.xlu0 %v2540
          %v2542 = vpop.xlane.xlu0 %2541
          %v2543 = vsel %vm2476, %v2522, 0.0
          %2544 = vadd.xlane.f32.xlu0 %v2543
          %v2545 = vpop.xlane.xlu0 %2544
          %v2546 = vsel %vm2476, %v2524, 0.0
          %2547 = vadd.xlane.f32.xlu0 %v2546
          %v2548 = vpop.xlane.xlu0 %2547
          %v2549 = vrcp.pop %v2527
          %v2550 = vrcp.pop %v2530
          %v2551 = vrcp.pop %v2533
          %v2552 = vrcp.pop %v2536
          %v2553 = vrcp.pop %v2539
          %v2554 = vrcp.pop %v2542
          %v2555 = vrcp.pop %v2545
          %v2556 = vrcp.pop %v2548
          %v2557 = vmul.f32 %v2510, %v2549
          %v2558 = vmul.f32 %v2512, %v2550
          %v2559 = vmul.f32 %v2514, %v2551
          %v2560 = vmul.f32 %v2516, %v2552
          %v2561 = vmul.f32 %v2518, %v2553
          %v2562 = vmul.f32 %v2520, %v2554
          %v2563 = vmul.f32 %v2522, %v2555
          %v2564 = vmul.f32 %v2524, %v2556
          %v2565 = vsel %vm2476, %v2557, 0.0
          %v2566 = vrot.slane %v2565, 4
          %v2567 = vadd.f32 %v2565, %v2566
          %v2568 = vrot.slane %v2567, 2
          %v2569 = vadd.f32 %v2567, %v2568
          %v2570 = vrot.slane %v2569, 1
          %v2571 = vadd.f32 %v2569, %v2570
          %v2572 = vmul.f32 %v2571, 0.125
          %v2574 = vsel %vm2476, %v2572, 0
          %2576 = vmatprep.subr.mxu0 0.0
          %2577 = vmatpush1.msra.mxu0 0.0
          %2578 = vmatprep.subr.mxu0 0.0
          %2579 = vmatpush1.msra.mxu0 0.0
          %2580 = vmatprep.subr.mxu0 0.0
          %2581 = vmatpush1.msra.mxu0 0.0
          %2582 = vmatprep.subr.mxu0 0.0
          %2583 = vmatpush1.msra.mxu0 0.0
          %2584 = vmatprep.subr.mxu0 0.0
          %2585 = vmatpush1.msra.mxu0 0.0
          %2586 = vmatprep.subr.mxu0 0.0
          %2587 = vmatpush1.msra.mxu0 0.0
          %2588 = vmatprep.subr.mxu0 0.0
          %2589 = vmatpush1.msra.mxu0 0.0
          %2590 = vmatprep.subr.mxu0 0.0
          %2591 = vmatpush1.msra.mxu0 0.0
          %2592 = vmatprep.subr.mxu0 0.0
          %2593 = vmatpush1.msra.mxu0 0.0
          %2594 = vmatprep.subr.mxu0 0.0
          %2595 = vmatpush1.msra.mxu0 0.0
          %2596 = vmatprep.subr.mxu0 0.0
          %2597 = vmatpush1.msra.mxu0 0.0
          %2598 = vmatprep.subr.mxu0 0.0
          %2599 = vmatpush1.msra.mxu0 0.0
          %2600 = vmatprep.subr.mxu0 0.0
          %2601 = vmatpush1.msra.mxu0 0.0
          %2602 = vmatprep.subr.mxu0 0.0
          %2603 = vmatpush1.msra.mxu0 0.0
          %2604 = vmatprep.subr.mxu0 0.0
          %2605 = vmatpush1.msra.mxu0 0.0
          %2606 = vmatprep.subr.mxu0 0.0
          %2607 = vmatpush1.msra.mxu0 %v1851
          %2608 = vmatprep.subr.mxu0 0.0
          %2609 = vmatpush2.msra.mxu0 0.0
          %2610 = vmatprep.subr.mxu0 0.0
          %2611 = vmatpush2.msra.mxu0 0.0
          %2612 = vmatprep.subr.mxu0 0.0
          %2613 = vmatpush2.msra.mxu0 0.0
          %2614 = vmatprep.subr.mxu0 0.0
          %2615 = vmatpush2.msra.mxu0 0.0
          %2616 = vmatprep.subr.mxu0 0.0
          %2617 = vmatpush2.msra.mxu0 0.0
          %2618 = vmatprep.subr.mxu0 0.0
          %2619 = vmatpush2.msra.mxu0 0.0
          %2620 = vmatprep.subr.mxu0 0.0
          %2621 = vmatpush2.msra.mxu0 0.0
          %2622 = vmatprep.subr.mxu0 0.0
          %2623 = vmatpush2.msra.mxu0 0.0
          %2624 = vmatprep.subr.mxu0 0.0
          %2625 = vmatpush2.msra.mxu0 0.0
          %2626 = vmatprep.subr.mxu0 0.0
          %2627 = vmatpush2.msra.mxu0 0.0
          %2628 = vmatprep.subr.mxu0 0.0
          %2629 = vmatpush2.msra.mxu0 0.0
          %2630 = vmatprep.subr.mxu0 0.0
          %2631 = vmatpush2.msra.mxu0 0.0
          %2632 = vmatprep.subr.mxu0 0.0
          %2633 = vmatpush2.msra.mxu0 0.0
          %2634 = vmatprep.subr.mxu0 0.0
          %2635 = vmatpush2.msra.mxu0 0.0
          %2636 = vmatprep.subr.mxu0 0.0
          %2637 = vmatpush2.msra.mxu0 0.0
          %2638 = vmatprep.subr.mxu0 0.0
          %2639 = vmatpush2.msra.mxu0 0.0
          %2640 = vmatprep.mubr.f32.mxu0 0.0
          %2641 = vmatmul.mubr.f32.gmra.mxu0 %v2574
          %v2642 = vpop.f32.mrf.mxu0
          %v2643 = vadd.f32 0.0, %v2642
          %v2644 = vpop.f32.mrf.mxu0
          %2645 = vdwg.mxu0
          %v2646 = vsel %vm2476, %v2558, 0.0
          %v2647 = vrot.slane %v2646, 4
          %v2648 = vadd.f32 %v2646, %v2647
          %v2649 = vrot.slane %v2648, 2
          %v2650 = vadd.f32 %v2648, %v2649
          %v2651 = vrot.slane %v2650, 1
          %v2652 = vadd.f32 %v2650, %v2651
          %v2653 = vmul.f32 %v2652, 0.125
          %2655 = vrot.lane.b32.xlu0 %v1851, 64
          %v2656 = vpop.permute.xlu0 %2655
          %v2659 = vsel %vm2476, %v2653, 0
          %2661 = vmatprep.subr.mxu0 0.0
          %2662 = vmatpush1.msra.mxu0 0.0
          %2663 = vmatprep.subr.mxu0 0.0
          %2664 = vmatpush1.msra.mxu0 0.0
          %2665 = vmatprep.subr.mxu0 0.0
          %2666 = vmatpush1.msra.mxu0 0.0
          %2667 = vmatprep.subr.mxu0 0.0
          %2668 = vmatpush1.msra.mxu0 0.0
          %2669 = vmatprep.subr.mxu0 0.0
          %2670 = vmatpush1.msra.mxu0 0.0
          %2671 = vmatprep.subr.mxu0 0.0
          %2672 = vmatpush1.msra.mxu0 0.0
          %2673 = vmatprep.subr.mxu0 0.0
          %2674 = vmatpush1.msra.mxu0 0.0
          %2675 = vmatprep.subr.mxu0 0.0
          %2676 = vmatpush1.msra.mxu0 0.0
          %2677 = vmatprep.subr.mxu0 0.0
          %2678 = vmatpush1.msra.mxu0 0.0
          %2679 = vmatprep.subr.mxu0 0.0
          %2680 = vmatpush1.msra.mxu0 0.0
          %2681 = vmatprep.subr.mxu0 0.0
          %2682 = vmatpush1.msra.mxu0 0.0
          %2683 = vmatprep.subr.mxu0 0.0
          %2684 = vmatpush1.msra.mxu0 0.0
          %2685 = vmatprep.subr.mxu0 0.0
          %2686 = vmatpush1.msra.mxu0 0.0
          %2687 = vmatprep.subr.mxu0 0.0
          %2688 = vmatpush1.msra.mxu0 0.0
          %2689 = vmatprep.subr.mxu0 0.0
          %2690 = vmatpush1.msra.mxu0 0.0
          %2691 = vmatprep.subr.mxu0 0.0
          %2692 = vmatpush1.msra.mxu0 %v2656
          %2693 = vmatprep.subr.mxu0 0.0
          %2694 = vmatpush2.msra.mxu0 0.0
          %2695 = vmatprep.subr.mxu0 0.0
          %2696 = vmatpush2.msra.mxu0 0.0
          %2697 = vmatprep.subr.mxu0 0.0
          %2698 = vmatpush2.msra.mxu0 0.0
          %2699 = vmatprep.subr.mxu0 0.0
          %2700 = vmatpush2.msra.mxu0 0.0
          %2701 = vmatprep.subr.mxu0 0.0
          %2702 = vmatpush2.msra.mxu0 0.0
          %2703 = vmatprep.subr.mxu0 0.0
          %2704 = vmatpush2.msra.mxu0 0.0
          %2705 = vmatprep.subr.mxu0 0.0
          %2706 = vmatpush2.msra.mxu0 0.0
          %2707 = vmatprep.subr.mxu0 0.0
          %2708 = vmatpush2.msra.mxu0 0.0
          %2709 = vmatprep.subr.mxu0 0.0
          %2710 = vmatpush2.msra.mxu0 0.0
          %2711 = vmatprep.subr.mxu0 0.0
          %2712 = vmatpush2.msra.mxu0 0.0
          %2713 = vmatprep.subr.mxu0 0.0
          %2714 = vmatpush2.msra.mxu0 0.0
          %2715 = vmatprep.subr.mxu0 0.0
          %2716 = vmatpush2.msra.mxu0 0.0
          %2717 = vmatprep.subr.mxu0 0.0
          %2718 = vmatpush2.msra.mxu0 0.0
          %2719 = vmatprep.subr.mxu0 0.0
          %2720 = vmatpush2.msra.mxu0 0.0
          %2721 = vmatprep.subr.mxu0 0.0
          %2722 = vmatpush2.msra.mxu0 0.0
          %2723 = vmatprep.subr.mxu0 0.0
          %2724 = vmatpush2.msra.mxu0 0.0
          %2725 = vmatprep.mubr.f32.mxu0 0.0
          %2726 = vmatmul.mubr.f32.gmra.mxu0 %v2659
          %v2727 = vpop.f32.mrf.mxu0
          %v2728 = vadd.f32 0.0, %v2727
          %v2729 = vpop.f32.mrf.mxu0
          %2730 = vdwg.mxu0
          %v2731 = vsel %vm2476, %v2559, 0.0
          %v2732 = vrot.slane %v2731, 4
          %v2733 = vadd.f32 %v2731, %v2732
          %v2734 = vrot.slane %v2733, 2
          %v2735 = vadd.f32 %v2733, %v2734
          %v2736 = vrot.slane %v2735, 1
          %v2737 = vadd.f32 %v2735, %v2736
          %v2738 = vmul.f32 %v2737, 0.125
          %v2740 = vsel %vm2476, %v2738, 0
          %2742 = vmatprep.subr.mxu0 0.0
          %2743 = vmatpush1.msra.mxu0 0.0
          %2744 = vmatprep.subr.mxu0 0.0
          %2745 = vmatpush1.msra.mxu0 0.0
          %2746 = vmatprep.subr.mxu0 0.0
          %2747 = vmatpush1.msra.mxu0 0.0
          %2748 = vmatprep.subr.mxu0 0.0
          %2749 = vmatpush1.msra.mxu0 0.0
          %2750 = vmatprep.subr.mxu0 0.0
          %2751 = vmatpush1.msra.mxu0 0.0
          %2752 = vmatprep.subr.mxu0 0.0
          %2753 = vmatpush1.msra.mxu0 0.0
          %2754 = vmatprep.subr.mxu0 0.0
          %2755 = vmatpush1.msra.mxu0 0.0
          %2756 = vmatprep.subr.mxu0 0.0
          %2757 = vmatpush1.msra.mxu0 0.0
          %2758 = vmatprep.subr.mxu0 0.0
          %2759 = vmatpush1.msra.mxu0 0.0
          %2760 = vmatprep.subr.mxu0 0.0
          %2761 = vmatpush1.msra.mxu0 0.0
          %2762 = vmatprep.subr.mxu0 0.0
          %2763 = vmatpush1.msra.mxu0 0.0
          %2764 = vmatprep.subr.mxu0 0.0
          %2765 = vmatpush1.msra.mxu0 0.0
          %2766 = vmatprep.subr.mxu0 0.0
          %2767 = vmatpush1.msra.mxu0 0.0
          %2768 = vmatprep.subr.mxu0 0.0
          %2769 = vmatpush1.msra.mxu0 0.0
          %2770 = vmatprep.subr.mxu0 0.0
          %2771 = vmatpush1.msra.mxu0 0.0
          %2772 = vmatprep.subr.mxu0 0.0
          %2773 = vmatpush1.msra.mxu0 %v1852
          %2774 = vmatprep.subr.mxu0 0.0
          %2775 = vmatpush2.msra.mxu0 0.0
          %2776 = vmatprep.subr.mxu0 0.0
          %2777 = vmatpush2.msra.mxu0 0.0
          %2778 = vmatprep.subr.mxu0 0.0
          %2779 = vmatpush2.msra.mxu0 0.0
          %2780 = vmatprep.subr.mxu0 0.0
          %2781 = vmatpush2.msra.mxu0 0.0
          %2782 = vmatprep.subr.mxu0 0.0
          %2783 = vmatpush2.msra.mxu0 0.0
          %2784 = vmatprep.subr.mxu0 0.0
          %2785 = vmatpush2.msra.mxu0 0.0
          %2786 = vmatprep.subr.mxu0 0.0
          %2787 = vmatpush2.msra.mxu0 0.0
          %2788 = vmatprep.subr.mxu0 0.0
          %2789 = vmatpush2.msra.mxu0 0.0
          %2790 = vmatprep.subr.mxu0 0.0
          %2791 = vmatpush2.msra.mxu0 0.0
          %2792 = vmatprep.subr.mxu0 0.0
          %2793 = vmatpush2.msra.mxu0 0.0
          %2794 = vmatprep.subr.mxu0 0.0
          %2795 = vmatpush2.msra.mxu0 0.0
          %2796 = vmatprep.subr.mxu0 0.0
          %2797 = vmatpush2.msra.mxu0 0.0
          %2798 = vmatprep.subr.mxu0 0.0
          %2799 = vmatpush2.msra.mxu0 0.0
          %2800 = vmatprep.subr.mxu0 0.0
          %2801 = vmatpush2.msra.mxu0 0.0
          %2802 = vmatprep.subr.mxu0 0.0
          %2803 = vmatpush2.msra.mxu0 0.0
          %2804 = vmatprep.subr.mxu0 0.0
          %2805 = vmatpush2.msra.mxu0 0.0
          %2806 = vmatprep.mubr.f32.mxu0 0.0
          %2807 = vmatmul.mubr.f32.gmra.mxu0 %v2740
          %v2808 = vpop.f32.mrf.mxu0
          %v2809 = vadd.f32 0.0, %v2808
          %v2810 = vpop.f32.mrf.mxu0
          %2811 = vdwg.mxu0
          %v2812 = vsel %vm2476, %v2560, 0.0
          %v2813 = vrot.slane %v2812, 4
          %v2814 = vadd.f32 %v2812, %v2813
          %v2815 = vrot.slane %v2814, 2
          %v2816 = vadd.f32 %v2814, %v2815
          %v2817 = vrot.slane %v2816, 1
          %v2818 = vadd.f32 %v2816, %v2817
          %v2819 = vmul.f32 %v2818, 0.125
          %2821 = vrot.lane.b32.xlu0 %v1852, 64
          %v2822 = vpop.permute.xlu0 %2821
          %v2825 = vsel %vm2476, %v2819, 0
          %2827 = vmatprep.subr.mxu0 0.0
          %2828 = vmatpush1.msra.mxu0 0.0
          %2829 = vmatprep.subr.mxu0 0.0
          %2830 = vmatpush1.msra.mxu0 0.0
          %2831 = vmatprep.subr.mxu0 0.0
          %2832 = vmatpush1.msra.mxu0 0.0
          %2833 = vmatprep.subr.mxu0 0.0
          %2834 = vmatpush1.msra.mxu0 0.0
          %2835 = vmatprep.subr.mxu0 0.0
          %2836 = vmatpush1.msra.mxu0 0.0
          %2837 = vmatprep.subr.mxu0 0.0
          %2838 = vmatpush1.msra.mxu0 0.0
          %2839 = vmatprep.subr.mxu0 0.0
          %2840 = vmatpush1.msra.mxu0 0.0
          %2841 = vmatprep.subr.mxu0 0.0
          %2842 = vmatpush1.msra.mxu0 0.0
          %2843 = vmatprep.subr.mxu0 0.0
          %2844 = vmatpush1.msra.mxu0 0.0
          %2845 = vmatprep.subr.mxu0 0.0
          %2846 = vmatpush1.msra.mxu0 0.0
          %2847 = vmatprep.subr.mxu0 0.0
          %2848 = vmatpush1.msra.mxu0 0.0
          %2849 = vmatprep.subr.mxu0 0.0
          %2850 = vmatpush1.msra.mxu0 0.0
          %2851 = vmatprep.subr.mxu0 0.0
          %2852 = vmatpush1.msra.mxu0 0.0
          %2853 = vmatprep.subr.mxu0 0.0
          %2854 = vmatpush1.msra.mxu0 0.0
          %2855 = vmatprep.subr.mxu0 0.0
          %2856 = vmatpush1.msra.mxu0 0.0
          %2857 = vmatprep.subr.mxu0 0.0
          %2858 = vmatpush1.msra.mxu0 %v2822
          %2859 = vmatprep.subr.mxu0 0.0
          %2860 = vmatpush2.msra.mxu0 0.0
          %2861 = vmatprep.subr.mxu0 0.0
          %2862 = vmatpush2.msra.mxu0 0.0
          %2863 = vmatprep.subr.mxu0 0.0
          %2864 = vmatpush2.msra.mxu0 0.0
          %2865 = vmatprep.subr.mxu0 0.0
          %2866 = vmatpush2.msra.mxu0 0.0
          %2867 = vmatprep.subr.mxu0 0.0
          %2868 = vmatpush2.msra.mxu0 0.0
          %2869 = vmatprep.subr.mxu0 0.0
          %2870 = vmatpush2.msra.mxu0 0.0
          %2871 = vmatprep.subr.mxu0 0.0
          %2872 = vmatpush2.msra.mxu0 0.0
          %2873 = vmatprep.subr.mxu0 0.0
          %2874 = vmatpush2.msra.mxu0 0.0
          %2875 = vmatprep.subr.mxu0 0.0
          %2876 = vmatpush2.msra.mxu0 0.0
          %2877 = vmatprep.subr.mxu0 0.0
          %2878 = vmatpush2.msra.mxu0 0.0
          %2879 = vmatprep.subr.mxu0 0.0
          %2880 = vmatpush2.msra.mxu0 0.0
          %2881 = vmatprep.subr.mxu0 0.0
          %2882 = vmatpush2.msra.mxu0 0.0
          %2883 = vmatprep.subr.mxu0 0.0
          %2884 = vmatpush2.msra.mxu0 0.0
          %2885 = vmatprep.subr.mxu0 0.0
          %2886 = vmatpush2.msra.mxu0 0.0
          %2887 = vmatprep.subr.mxu0 0.0
          %2888 = vmatpush2.msra.mxu0 0.0
          %2889 = vmatprep.subr.mxu0 0.0
          %2890 = vmatpush2.msra.mxu0 0.0
          %2891 = vmatprep.mubr.f32.mxu0 0.0
          %2892 = vmatmul.mubr.f32.gmra.mxu0 %v2825
          %v2893 = vpop.f32.mrf.mxu0
          %v2894 = vadd.f32 0.0, %v2893
          %v2895 = vpop.f32.mrf.mxu0
          %2896 = vdwg.mxu0
          %2898 = vrot.lane.b32.xlu0 %v2728, 64
          %v2899 = vpop.permute.xlu0 %2898
          %2902 = vrot.lane.b32.xlu0 %v2894, 64
          %v2903 = vpop.permute.xlu0 %2902
          %v2905 = vsel %vm1859, %v2643, %v2899
          %v2906 = vsel %vm1859, %v2809, %v2903
          %v2907 = vsel %vm2476, %v2561, 0.0
          %v2908 = vrot.slane %v2907, 4
          %v2909 = vadd.f32 %v2907, %v2908
          %v2910 = vrot.slane %v2909, 2
          %v2911 = vadd.f32 %v2909, %v2910
          %v2912 = vrot.slane %v2911, 1
          %v2913 = vadd.f32 %v2911, %v2912
          %v2914 = vmul.f32 %v2913, 0.125
          %v2916 = vsel %vm2476, %v2914, 0
          %2918 = vmatprep.subr.mxu0 0.0
          %2919 = vmatpush1.msra.mxu0 0.0
          %2920 = vmatprep.subr.mxu0 0.0
          %2921 = vmatpush1.msra.mxu0 0.0
          %2922 = vmatprep.subr.mxu0 0.0
          %2923 = vmatpush1.msra.mxu0 0.0
          %2924 = vmatprep.subr.mxu0 0.0
          %2925 = vmatpush1.msra.mxu0 0.0
          %2926 = vmatprep.subr.mxu0 0.0
          %2927 = vmatpush1.msra.mxu0 0.0
          %2928 = vmatprep.subr.mxu0 0.0
          %2929 = vmatpush1.msra.mxu0 0.0
          %2930 = vmatprep.subr.mxu0 0.0
          %2931 = vmatpush1.msra.mxu0 0.0
          %2932 = vmatprep.subr.mxu0 0.0
          %2933 = vmatpush1.msra.mxu0 0.0
          %2934 = vmatprep.subr.mxu0 0.0
          %2935 = vmatpush1.msra.mxu0 0.0
          %2936 = vmatprep.subr.mxu0 0.0
          %2937 = vmatpush1.msra.mxu0 0.0
          %2938 = vmatprep.subr.mxu0 0.0
          %2939 = vmatpush1.msra.mxu0 0.0
          %2940 = vmatprep.subr.mxu0 0.0
          %2941 = vmatpush1.msra.mxu0 0.0
          %2942 = vmatprep.subr.mxu0 0.0
          %2943 = vmatpush1.msra.mxu0 0.0
          %2944 = vmatprep.subr.mxu0 0.0
          %2945 = vmatpush1.msra.mxu0 0.0
          %2946 = vmatprep.subr.mxu0 0.0
          %2947 = vmatpush1.msra.mxu0 0.0
          %2948 = vmatprep.subr.mxu0 0.0
          %2949 = vmatpush1.msra.mxu0 %v1857
          %2950 = vmatprep.subr.mxu0 0.0
          %2951 = vmatpush2.msra.mxu0 0.0
          %2952 = vmatprep.subr.mxu0 0.0
          %2953 = vmatpush2.msra.mxu0 0.0
          %2954 = vmatprep.subr.mxu0 0.0
          %2955 = vmatpush2.msra.mxu0 0.0
          %2956 = vmatprep.subr.mxu0 0.0
          %2957 = vmatpush2.msra.mxu0 0.0
          %2958 = vmatprep.subr.mxu0 0.0
          %2959 = vmatpush2.msra.mxu0 0.0
          %2960 = vmatprep.subr.mxu0 0.0
          %2961 = vmatpush2.msra.mxu0 0.0
          %2962 = vmatprep.subr.mxu0 0.0
          %2963 = vmatpush2.msra.mxu0 0.0
          %2964 = vmatprep.subr.mxu0 0.0
          %2965 = vmatpush2.msra.mxu0 0.0
          %2966 = vmatprep.subr.mxu0 0.0
          %2967 = vmatpush2.msra.mxu0 0.0
          %2968 = vmatprep.subr.mxu0 0.0
          %2969 = vmatpush2.msra.mxu0 0.0
          %2970 = vmatprep.subr.mxu0 0.0
          %2971 = vmatpush2.msra.mxu0 0.0
          %2972 = vmatprep.subr.mxu0 0.0
          %2973 = vmatpush2.msra.mxu0 0.0
          %2974 = vmatprep.subr.mxu0 0.0
          %2975 = vmatpush2.msra.mxu0 0.0
          %2976 = vmatprep.subr.mxu0 0.0
          %2977 = vmatpush2.msra.mxu0 0.0
          %2978 = vmatprep.subr.mxu0 0.0
          %2979 = vmatpush2.msra.mxu0 0.0
          %2980 = vmatprep.subr.mxu0 0.0
          %2981 = vmatpush2.msra.mxu0 0.0
          %2982 = vmatprep.mubr.f32.mxu0 0.0
          %2983 = vmatmul.mubr.f32.gmra.mxu0 %v2916
          %v2984 = vpop.f32.mrf.mxu0
          %v2985 = vadd.f32 0.0, %v2984
          %v2986 = vpop.f32.mrf.mxu0
          %2987 = vdwg.mxu0
          %v2988 = vsel %vm2476, %v2562, 0.0
          %v2989 = vrot.slane %v2988, 4
          %v2990 = vadd.f32 %v2988, %v2989
          %v2991 = vrot.slane %v2990, 2
          %v2992 = vadd.f32 %v2990, %v2991
          %v2993 = vrot.slane %v2992, 1
          %v2994 = vadd.f32 %v2992, %v2993
          %v2995 = vmul.f32 %v2994, 0.125
          %2997 = vrot.lane.b32.xlu0 %v1857, 64
          %v2998 = vpop.permute.xlu0 %2997
          %v3001 = vsel %vm2476, %v2995, 0
          %3003 = vmatprep.subr.mxu0 0.0
          %3004 = vmatpush1.msra.mxu0 0.0
          %3005 = vmatprep.subr.mxu0 0.0
          %3006 = vmatpush1.msra.mxu0 0.0
          %3007 = vmatprep.subr.mxu0 0.0
          %3008 = vmatpush1.msra.mxu0 0.0
          %3009 = vmatprep.subr.mxu0 0.0
          %3010 = vmatpush1.msra.mxu0 0.0
          %3011 = vmatprep.subr.mxu0 0.0
          %3012 = vmatpush1.msra.mxu0 0.0
          %3013 = vmatprep.subr.mxu0 0.0
          %3014 = vmatpush1.msra.mxu0 0.0
          %3015 = vmatprep.subr.mxu0 0.0
          %3016 = vmatpush1.msra.mxu0 0.0
          %3017 = vmatprep.subr.mxu0 0.0
          %3018 = vmatpush1.msra.mxu0 0.0
          %3019 = vmatprep.subr.mxu0 0.0
          %3020 = vmatpush1.msra.mxu0 0.0
          %3021 = vmatprep.subr.mxu0 0.0
          %3022 = vmatpush1.msra.mxu0 0.0
          %3023 = vmatprep.subr.mxu0 0.0
          %3024 = vmatpush1.msra.mxu0 0.0
          %3025 = vmatprep.subr.mxu0 0.0
          %3026 = vmatpush1.msra.mxu0 0.0
          %3027 = vmatprep.subr.mxu0 0.0
          %3028 = vmatpush1.msra.mxu0 0.0
          %3029 = vmatprep.subr.mxu0 0.0
          %3030 = vmatpush1.msra.mxu0 0.0
          %3031 = vmatprep.subr.mxu0 0.0
          %3032 = vmatpush1.msra.mxu0 0.0
          %3033 = vmatprep.subr.mxu0 0.0
          %3034 = vmatpush1.msra.mxu0 %v2998
          %3035 = vmatprep.subr.mxu0 0.0
          %3036 = vmatpush2.msra.mxu0 0.0
          %3037 = vmatprep.subr.mxu0 0.0
          %3038 = vmatpush2.msra.mxu0 0.0
          %3039 = vmatprep.subr.mxu0 0.0
          %3040 = vmatpush2.msra.mxu0 0.0
          %3041 = vmatprep.subr.mxu0 0.0
          %3042 = vmatpush2.msra.mxu0 0.0
          %3043 = vmatprep.subr.mxu0 0.0
          %3044 = vmatpush2.msra.mxu0 0.0
          %3045 = vmatprep.subr.mxu0 0.0
          %3046 = vmatpush2.msra.mxu0 0.0
          %3047 = vmatprep.subr.mxu0 0.0
          %3048 = vmatpush2.msra.mxu0 0.0
          %3049 = vmatprep.subr.mxu0 0.0
          %3050 = vmatpush2.msra.mxu0 0.0
          %3051 = vmatprep.subr.mxu0 0.0
          %3052 = vmatpush2.msra.mxu0 0.0
          %3053 = vmatprep.subr.mxu0 0.0
          %3054 = vmatpush2.msra.mxu0 0.0
          %3055 = vmatprep.subr.mxu0 0.0
          %3056 = vmatpush2.msra.mxu0 0.0
          %3057 = vmatprep.subr.mxu0 0.0
          %3058 = vmatpush2.msra.mxu0 0.0
          %3059 = vmatprep.subr.mxu0 0.0
          %3060 = vmatpush2.msra.mxu0 0.0
          %3061 = vmatprep.subr.mxu0 0.0
          %3062 = vmatpush2.msra.mxu0 0.0
          %3063 = vmatprep.subr.mxu0 0.0
          %3064 = vmatpush2.msra.mxu0 0.0
          %3065 = vmatprep.subr.mxu0 0.0
          %3066 = vmatpush2.msra.mxu0 0.0
          %3067 = vmatprep.mubr.f32.mxu0 0.0
          %3068 = vmatmul.mubr.f32.gmra.mxu0 %v3001
          %v3069 = vpop.f32.mrf.mxu0
          %v3070 = vadd.f32 0.0, %v3069
          %v3071 = vpop.f32.mrf.mxu0
          %3072 = vdwg.mxu0
          %v3073 = vsel %vm2476, %v2563, 0.0
          %v3074 = vrot.slane %v3073, 4
          %v3075 = vadd.f32 %v3073, %v3074
          %v3076 = vrot.slane %v3075, 2
          %v3077 = vadd.f32 %v3075, %v3076
          %v3078 = vrot.slane %v3077, 1
          %v3079 = vadd.f32 %v3077, %v3078
          %v3080 = vmul.f32 %v3079, 0.125
          %v3082 = vsel %vm2476, %v3080, 0
          %3084 = vmatprep.subr.mxu0 0.0
          %3085 = vmatpush1.msra.mxu0 0.0
          %3086 = vmatprep.subr.mxu0 0.0
          %3087 = vmatpush1.msra.mxu0 0.0
          %3088 = vmatprep.subr.mxu0 0.0
          %3089 = vmatpush1.msra.mxu0 0.0
          %3090 = vmatprep.subr.mxu0 0.0
          %3091 = vmatpush1.msra.mxu0 0.0
          %3092 = vmatprep.subr.mxu0 0.0
          %3093 = vmatpush1.msra.mxu0 0.0
          %3094 = vmatprep.subr.mxu0 0.0
          %3095 = vmatpush1.msra.mxu0 0.0
          %3096 = vmatprep.subr.mxu0 0.0
          %3097 = vmatpush1.msra.mxu0 0.0
          %3098 = vmatprep.subr.mxu0 0.0
          %3099 = vmatpush1.msra.mxu0 0.0
          %3100 = vmatprep.subr.mxu0 0.0
          %3101 = vmatpush1.msra.mxu0 0.0
          %3102 = vmatprep.subr.mxu0 0.0
          %3103 = vmatpush1.msra.mxu0 0.0
          %3104 = vmatprep.subr.mxu0 0.0
          %3105 = vmatpush1.msra.mxu0 0.0
          %3106 = vmatprep.subr.mxu0 0.0
          %3107 = vmatpush1.msra.mxu0 0.0
          %3108 = vmatprep.subr.mxu0 0.0
          %3109 = vmatpush1.msra.mxu0 0.0
          %3110 = vmatprep.subr.mxu0 0.0
          %3111 = vmatpush1.msra.mxu0 0.0
          %3112 = vmatprep.subr.mxu0 0.0
          %3113 = vmatpush1.msra.mxu0 0.0
          %3114 = vmatprep.subr.mxu0 0.0
          %3115 = vmatpush1.msra.mxu0 %v1858
          %3116 = vmatprep.subr.mxu0 0.0
          %3117 = vmatpush2.msra.mxu0 0.0
          %3118 = vmatprep.subr.mxu0 0.0
          %3119 = vmatpush2.msra.mxu0 0.0
          %3120 = vmatprep.subr.mxu0 0.0
          %3121 = vmatpush2.msra.mxu0 0.0
          %3122 = vmatprep.subr.mxu0 0.0
          %3123 = vmatpush2.msra.mxu0 0.0
          %3124 = vmatprep.subr.mxu0 0.0
          %3125 = vmatpush2.msra.mxu0 0.0
          %3126 = vmatprep.subr.mxu0 0.0
          %3127 = vmatpush2.msra.mxu0 0.0
          %3128 = vmatprep.subr.mxu0 0.0
          %3129 = vmatpush2.msra.mxu0 0.0
          %3130 = vmatprep.subr.mxu0 0.0
          %3131 = vmatpush2.msra.mxu0 0.0
          %3132 = vmatprep.subr.mxu0 0.0
          %3133 = vmatpush2.msra.mxu0 0.0
          %3134 = vmatprep.subr.mxu0 0.0
          %3135 = vmatpush2.msra.mxu0 0.0
          %3136 = vmatprep.subr.mxu0 0.0
          %3137 = vmatpush2.msra.mxu0 0.0
          %3138 = vmatprep.subr.mxu0 0.0
          %3139 = vmatpush2.msra.mxu0 0.0
          %3140 = vmatprep.subr.mxu0 0.0
          %3141 = vmatpush2.msra.mxu0 0.0
          %3142 = vmatprep.subr.mxu0 0.0
          %3143 = vmatpush2.msra.mxu0 0.0
          %3144 = vmatprep.subr.mxu0 0.0
          %3145 = vmatpush2.msra.mxu0 0.0
          %3146 = vmatprep.subr.mxu0 0.0
          %3147 = vmatpush2.msra.mxu0 0.0
          %3148 = vmatprep.mubr.f32.mxu0 0.0
          %3149 = vmatmul.mubr.f32.gmra.mxu0 %v3082
          %v3150 = vpop.f32.mrf.mxu0
          %v3151 = vadd.f32 0.0, %v3150
          %v3152 = vpop.f32.mrf.mxu0
          %3153 = vdwg.mxu0
          %v3154 = vsel %vm2476, %v2564, 0.0
          %v3155 = vrot.slane %v3154, 4
          %v3156 = vadd.f32 %v3154, %v3155
          %v3157 = vrot.slane %v3156, 2
          %v3158 = vadd.f32 %v3156, %v3157
          %v3159 = vrot.slane %v3158, 1
          %v3160 = vadd.f32 %v3158, %v3159
          %v3161 = vmul.f32 %v3160, 0.125
          %3163 = vrot.lane.b32.xlu0 %v1858, 64
          %v3164 = vpop.permute.xlu0 %3163
          %v3167 = vsel %vm2476, %v3161, 0
          %3169 = vmatprep.subr.mxu0 0.0
          %3170 = vmatpush1.msra.mxu0 0.0
          %3171 = vmatprep.subr.mxu0 0.0
          %3172 = vmatpush1.msra.mxu0 0.0
          %3173 = vmatprep.subr.mxu0 0.0
          %3174 = vmatpush1.msra.mxu0 0.0
          %3175 = vmatprep.subr.mxu0 0.0
          %3176 = vmatpush1.msra.mxu0 0.0
          %3177 = vmatprep.subr.mxu0 0.0
          %3178 = vmatpush1.msra.mxu0 0.0
          %3179 = vmatprep.subr.mxu0 0.0
          %3180 = vmatpush1.msra.mxu0 0.0
          %3181 = vmatprep.subr.mxu0 0.0
          %3182 = vmatpush1.msra.mxu0 0.0
          %3183 = vmatprep.subr.mxu0 0.0
          %3184 = vmatpush1.msra.mxu0 0.0
          %3185 = vmatprep.subr.mxu0 0.0
          %3186 = vmatpush1.msra.mxu0 0.0
          %3187 = vmatprep.subr.mxu0 0.0
          %3188 = vmatpush1.msra.mxu0 0.0
          %3189 = vmatprep.subr.mxu0 0.0
          %3190 = vmatpush1.msra.mxu0 0.0
          %3191 = vmatprep.subr.mxu0 0.0
          %3192 = vmatpush1.msra.mxu0 0.0
          %3193 = vmatprep.subr.mxu0 0.0
          %3194 = vmatpush1.msra.mxu0 0.0
          %3195 = vmatprep.subr.mxu0 0.0
          %3196 = vmatpush1.msra.mxu0 0.0
          %3197 = vmatprep.subr.mxu0 0.0
          %3198 = vmatpush1.msra.mxu0 0.0
          %3199 = vmatprep.subr.mxu0 0.0
          %3200 = vmatpush1.msra.mxu0 %v3164
          %3201 = vmatprep.subr.mxu0 0.0
          %3202 = vmatpush2.msra.mxu0 0.0
          %3203 = vmatprep.subr.mxu0 0.0
          %3204 = vmatpush2.msra.mxu0 0.0
          %3205 = vmatprep.subr.mxu0 0.0
          %3206 = vmatpush2.msra.mxu0 0.0
          %3207 = vmatprep.subr.mxu0 0.0
          %3208 = vmatpush2.msra.mxu0 0.0
          %3209 = vmatprep.subr.mxu0 0.0
          %3210 = vmatpush2.msra.mxu0 0.0
          %3211 = vmatprep.subr.mxu0 0.0
          %3212 = vmatpush2.msra.mxu0 0.0
          %3213 = vmatprep.subr.mxu0 0.0
          %3214 = vmatpush2.msra.mxu0 0.0
          %3215 = vmatprep.subr.mxu0 0.0
          %3216 = vmatpush2.msra.mxu0 0.0
          %3217 = vmatprep.subr.mxu0 0.0
          %3218 = vmatpush2.msra.mxu0 0.0
          %3219 = vmatprep.subr.mxu0 0.0
          %3220 = vmatpush2.msra.mxu0 0.0
          %3221 = vmatprep.subr.mxu0 0.0
          %3222 = vmatpush2.msra.mxu0 0.0
          %3223 = vmatprep.subr.mxu0 0.0
          %3224 = vmatpush2.msra.mxu0 0.0
          %3225 = vmatprep.subr.mxu0 0.0
          %3226 = vmatpush2.msra.mxu0 0.0
          %3227 = vmatprep.subr.mxu0 0.0
          %3228 = vmatpush2.msra.mxu0 0.0
          %3229 = vmatprep.subr.mxu0 0.0
          %3230 = vmatpush2.msra.mxu0 0.0
          %3231 = vmatprep.subr.mxu0 0.0
          %3232 = vmatpush2.msra.mxu0 0.0
          %3233 = vmatprep.mubr.f32.mxu0 0.0
          %3234 = vmatmul.mubr.f32.gmra.mxu0 %v3167
          %v3235 = vpop.f32.mrf.mxu0
          %v3236 = vadd.f32 0.0, %v3235
          %v3237 = vpop.f32.mrf.mxu0
          %3238 = vdwg.mxu0
          %3240 = vrot.lane.b32.xlu0 %v3070, 64
          %v3241 = vpop.permute.xlu0 %3240
          %3244 = vrot.lane.b32.xlu0 %v3236, 64
          %v3245 = vpop.permute.xlu0 %3244
          %v3247 = vsel %vm1859, %v2985, %v3241
          %v3248 = vsel %vm1859, %v3151, %v3245
          %v3251 = vrot.slane %v3247, 7
          %v3252 = vrot.slane %v3248, 7
          %vm3255 = vcmask 1040384
          %v3256 = vsel %vm3255, %v2905, %v3251
          %v3257 = vsel %vm3255, %v2906, %v3252
          %v3258 = vld [vmem:[#allocation9] sm:$0xff]
          %v3259 = vld [vmem:[#allocation9 + $0x8] sm:$0xff]
          %v3260 = vld [vmem:[#allocation9 + $0x10] sm:$0xff]
          %v3261 = vld [vmem:[#allocation9 + $0x18] sm:$0xff]
          %v3262 = vld [vmem:[#allocation9 + $0x20] sm:$0xff]
          %v3263 = vld [vmem:[#allocation9 + $0x28] sm:$0xff]
          %v3264 = vld [vmem:[#allocation9 + $0x30] sm:$0xff]
          %v3265 = vld [vmem:[#allocation9 + $0x38] sm:$0xff]
          %v3266 = vld [vmem:[#allocation9 + $0x40] sm:$0xff]
          %v3267 = vld [vmem:[#allocation9 + $0x48] sm:$0xff]
          %v3268 = vld [vmem:[#allocation9 + $0x50] sm:$0xff]
          %v3269 = vld [vmem:[#allocation9 + $0x58] sm:$0xff]
          %v3270 = vld [vmem:[#allocation9 + $0x60] sm:$0xff]
          %v3271 = vld [vmem:[#allocation9 + $0x68] sm:$0xff]
          %v3272 = vld [vmem:[#allocation9 + $0x70] sm:$0xff]
          %v3273 = vld [vmem:[#allocation9 + $0x78] sm:$0xff]
          %v3274 = vld [vmem:[#allocation9 + $0x80] sm:$0xff]
          %v3275 = vld [vmem:[#allocation9 + $0x88] sm:$0xff]
          %v3276 = vld [vmem:[#allocation9 + $0x90] sm:$0xff]
          %v3277 = vld [vmem:[#allocation9 + $0x98] sm:$0xff]
          %v3278 = vld [vmem:[#allocation9 + $0xa0] sm:$0xff]
          %v3279 = vld [vmem:[#allocation9 + $0xa8] sm:$0xff]
          %v3280 = vld [vmem:[#allocation9 + $0xb0] sm:$0xff]
          %v3281 = vld [vmem:[#allocation9 + $0xb8] sm:$0xff]
          %v3282 = vld [vmem:[#allocation9 + $0xc0] sm:$0xff]
          %v3283 = vld [vmem:[#allocation9 + $0xc8] sm:$0xff]
          %v3284 = vld [vmem:[#allocation9 + $0xd0] sm:$0xff]
          %v3285 = vld [vmem:[#allocation9 + $0xd8] sm:$0xff]
          %v3286 = vld [vmem:[#allocation9 + $0xe0] sm:$0xff]
          %v3287 = vld [vmem:[#allocation9 + $0xe8] sm:$0xff]
          %v3288 = vld [vmem:[#allocation9 + $0xf0] sm:$0xff]
          %v3289 = vld [vmem:[#allocation9 + $0xf8] sm:$0xff]
          %v3290 = vld [vmem:[#allocation11] sm:$0x1]
          %v3292 = vlaneseq
          %v3293 = vshrl.u32 %v3292, 7
          %v3294 = vsub.s32 0, %v3293
          %v3295 = vrot.slane %v3290, %v3294
          %3297 = vmatprep.subr.mxu0 0.0
          %3298 = vmatpush1.msra.mxu0 %v3273
          %3299 = vmatprep.subr.mxu0 0.0
          %3300 = vmatpush1.msra.mxu0 %v3272
          %3301 = vmatprep.subr.mxu0 0.0
          %3302 = vmatpush1.msra.mxu0 %v3271
          %3303 = vmatprep.subr.mxu0 0.0
          %3304 = vmatpush1.msra.mxu0 %v3270
          %3305 = vmatprep.subr.mxu0 0.0
          %3306 = vmatpush1.msra.mxu0 %v3269
          %3307 = vmatprep.subr.mxu0 0.0
          %3308 = vmatpush1.msra.mxu0 %v3268
          %3309 = vmatprep.subr.mxu0 0.0
          %3310 = vmatpush1.msra.mxu0 %v3267
          %3311 = vmatprep.subr.mxu0 0.0
          %3312 = vmatpush1.msra.mxu0 %v3266
          %3313 = vmatprep.subr.mxu0 0.0
          %3314 = vmatpush1.msra.mxu0 %v3265
          %3315 = vmatprep.subr.mxu0 0.0
          %3316 = vmatpush1.msra.mxu0 %v3264
          %3317 = vmatprep.subr.mxu0 0.0
          %3318 = vmatpush1.msra.mxu0 %v3263
          %3319 = vmatprep.subr.mxu0 0.0
          %3320 = vmatpush1.msra.mxu0 %v3262
          %3321 = vmatprep.subr.mxu0 0.0
          %3322 = vmatpush1.msra.mxu0 %v3261
          %3323 = vmatprep.subr.mxu0 0.0
          %3324 = vmatpush1.msra.mxu0 %v3260
          %3325 = vmatprep.subr.mxu0 0.0
          %3326 = vmatpush1.msra.mxu0 %v3259
          %3327 = vmatprep.subr.mxu0 0.0
          %3328 = vmatpush1.msra.mxu0 %v3258
          %3329 = vmatprep.subr.mxu0 0.0
          %3330 = vmatpush2.msra.mxu0 %v3289
          %3331 = vmatprep.subr.mxu0 0.0
          %3332 = vmatpush2.msra.mxu0 %v3288
          %3333 = vmatprep.subr.mxu0 0.0
          %3334 = vmatpush2.msra.mxu0 %v3287
          %3335 = vmatprep.subr.mxu0 0.0
          %3336 = vmatpush2.msra.mxu0 %v3286
          %3337 = vmatprep.subr.mxu0 0.0
          %3338 = vmatpush2.msra.mxu0 %v3285
          %3339 = vmatprep.subr.mxu0 0.0
          %3340 = vmatpush2.msra.mxu0 %v3284
          %3341 = vmatprep.subr.mxu0 0.0
          %3342 = vmatpush2.msra.mxu0 %v3283
          %3343 = vmatprep.subr.mxu0 0.0
          %3344 = vmatpush2.msra.mxu0 %v3282
          %3345 = vmatprep.subr.mxu0 0.0
          %3346 = vmatpush2.msra.mxu0 %v3281
          %3347 = vmatprep.subr.mxu0 0.0
          %3348 = vmatpush2.msra.mxu0 %v3280
          %3349 = vmatprep.subr.mxu0 0.0
          %3350 = vmatpush2.msra.mxu0 %v3279
          %3351 = vmatprep.subr.mxu0 0.0
          %3352 = vmatpush2.msra.mxu0 %v3278
          %3353 = vmatprep.subr.mxu0 0.0
          %3354 = vmatpush2.msra.mxu0 %v3277
          %3355 = vmatprep.subr.mxu0 0.0
          %3356 = vmatpush2.msra.mxu0 %v3276
          %3357 = vmatprep.subr.mxu0 0.0
          %3358 = vmatpush2.msra.mxu0 %v3275
          %3359 = vmatprep.subr.mxu0 0.0
          %3360 = vmatpush2.msra.mxu0 %v3274
          %3361 = vmatprep.mubr.f32.mxu0 %v3257
          %3362 = vmatmul.mubr.f32.gmra.mxu0 %v3256
          %v3363 = vpop.f32.mrf.mxu0
          %v3364 = vadd.f32 %v3295, %v3363
          %v3365 = vpop.f32.mrf.mxu0
          %3366 = vdwg.mxu0
          %v3367 = vtanh.pop %v3364
          %3368 = vst [vmem:[#allocation12] sm:$0x3] %v3367
        $region68: #{tpu_custom_call.1} parent=39 // pred_fallthru
          _
        // Predicated region
        $region69: #{tpu_custom_call.1} parent=39 // pred_check
          %p3369 = pneg %p152
        $region70: #{tpu_custom_call.1} parent=39 // pred_check_branch
          %3371 = sbr.rel (%p3369) target = $region72
        $region71: #{tpu_custom_call.1} parent=39 // pred_region
          %s3373 = ssub.s32 32, 32
          %3374 = vsyncadd [#allocation5], %s3373
          %s3376 = sshll.u32 [#allocation12], 4
          %s3377 = int_to_ptr.vmem [resolvable:$true] %s3376
          %3379 = dma.vmem_to_hbm [thread:$0]  %s3377, 32, %s5, [#allocation5]
        $region72: #{tpu_custom_call.1} parent=39 // pred_fallthru
          _
        // Predicated region
        $region73: #{tpu_custom_call.1} parent=39 // pred_check
          %p3380 = pneg %p152
        $region74: #{tpu_custom_call.1} parent=39 // pred_check_branch
          %3382 = sbr.rel (%p3380) target = $region76
        $region75: #{tpu_custom_call.1} parent=39 // pred_region
          %3383 = dma.done [#allocation5], 32
        $region76: #{tpu_custom_call.1} parent=39 // pred_fallthru
          _
      $region40: #{tpu_custom_call.1} parent=5 // pred_fallthru
        _
      %p3384 = scmp.le.s32.totalorder 2, %s19
      // Predicated region
      $region77: #{tpu_custom_call.1} parent=5 // pred_check
        %p3385 = pneg %p3384
      $region78: #{tpu_custom_call.1} parent=5 // pred_check_branch
        %3387 = sbr.rel (%p3385) target = $region80
      $region79: #{tpu_custom_call.1} parent=5 // pred_region
        %s3388 = ssub.s32 %s19, 2
      $region80: #{tpu_custom_call.1} parent=5 // pred_fallthru
        _
    $region6: #{tpu_custom_call.1} parent=1 // loop_footer
      %s23 = sadd.s32 1, %s19
    $region7: #{tpu_custom_call.1} parent=1 // loop_footer_branch
      %18 = sbr.rel target = $region3
    $region8: #{tpu_custom_call.1} parent=1 // loop_exit
      _
    %3389 = vsyncpa [#allocation4], 1
    %s3390 = scalar_lea.sflag [#allocation4], 1
    %3391 = vsyncpa %s3390, 1
    %3392 = vsyncpa [#allocation7], 1
    %s3393 = scalar_lea.sflag [#allocation7], 1
    %3394 = vsyncpa %s3393, 1
    %3395 = vsyncpa [#allocation10], 1
    %3396 = vsyncpa [#allocation5], 1
    %s3397 = scalar_lea.sflag [#allocation5], 1
    %3398 = vsyncpa %s3397, 1

</llo_original>
